<compile_context>
chip_gen: v7x
topology: tpu7x:2x2x1
jax: 0.10.0
libtpu: 0.0.40
codegen_flags: <defaults>
</compile_context>

<pallas_src>
import functools

import jax
import jax.numpy as jnp
from jax.experimental import pallas as pl
from jax.experimental.pallas import tpu as pltpu


# ---------------------------------------------------------------------------
# Shared in-kernel body: 3 x [Conv3x3 + BN(batch stats) + ReLU + MaxPool2]
# followed by the kxk conv and the 1x1 mid convs -> (1, 64) feature.
# ---------------------------------------------------------------------------
def _feature_body(refs, num_mid):
    x = refs[0][...].astype(jnp.float32)          # (S, S, Cin0) channels-last
    idx = 1
    for _ in range(3):
        w = refs[idx][...]                        # (9*Cin, 64), rows in (kh, kw, ci) order
        b = refs[idx + 1][...]                    # (1, 64) conv bias
        gamma = refs[idx + 2][...]                # (1, 64) BN gamma
        beta = refs[idx + 3][...]                 # (1, 64) BN beta
        idx += 4

        H, W, cin = x.shape

        # Zero-pad H and W by 1 in-kernel (no padded HBM copy).
        zrow = jnp.zeros((1, W, cin), jnp.float32)
        xp = jnp.concatenate([zrow, x, zrow], axis=0)          # (H+2, W, cin)
        zcol = jnp.zeros((H + 2, 1, cin), jnp.float32)
        xp = jnp.concatenate([zcol, xp, zcol], axis=1)         # (H+2, W+2, cin)

        # im2col once -> a single deep-K contraction on the MXU (K = 9*cin).
        taps = [xp[kh:kh + H, kw:kw + W, :]
                for kh in range(3) for kw in range(3)]
        patch = jnp.concatenate(taps, axis=-1).reshape(H * W, 9 * cin)
        acc = jnp.dot(patch, w, preferred_element_type=jnp.float32) + b

        # BatchNorm2d (training-mode batch stats, biased var, eps=1e-5), one pass.
        inv_n = 1.0 / float(H * W)
        s1 = jnp.sum(acc, axis=0, keepdims=True)
        s2 = jnp.sum(acc * acc, axis=0, keepdims=True)
        mean = s1 * inv_n
        var = jnp.maximum(s2 * inv_n - mean * mean, 0.0)
        y = (acc - mean) * jax.lax.rsqrt(var + 1e-5) * gamma + beta

        # ReLU
        y = jnp.maximum(y, 0.0)                   # (H*W, 64), rows = (h, w) row-major

        # MaxPool 2x2 stride 2: one reshape + two maxes.
        y = y.reshape(H // 2, 2, W // 2, 2, 64)
        y = jnp.maximum(y[:, 0], y[:, 1])         # (H//2, W//2, 2, 64)
        y = jnp.maximum(y[:, :, 0], y[:, :, 1])   # (H//2, W//2, 64)
        x = y

    # Tail: the kxk conv collapses the spatial extent to 1x1, so it and every
    # following 1x1 conv is a plain (1, K) x (K, 64) matmul. Flatten the
    # (kh, kw, ci) activation via lane-axis concatenation (matches the
    # (kh, kw, ci, co) weight layout built in the wrapper).
    k = x.shape[0]
    pieces = [x[i:i + 1, j:j + 1, :].reshape(1, 64)
              for i in range(k) for j in range(k)]
    h = pieces[0] if len(pieces) == 1 else jnp.concatenate(pieces, axis=-1)

    for _ in range(num_mid):
        wm = refs[idx][...]
        bm = refs[idx + 1][...]
        idx += 2
        h = jnp.dot(h, wm, preferred_element_type=jnp.float32) + bm
    return h, idx


def _feature_kernel(*refs, num_mid):
    # refs = [x, (w, b, gamma, beta) * 3, (w, b) * num_mid, out(1,64)]
    h, _ = _feature_body(refs, num_mid)
    refs[-1][...] = h


def _fused_kernel(*refs, num_mid):
    # refs = [x, (w, b, gamma, beta) * 3, (w, b) * num_mid, w_head, b_head, out(1,N)]
    h, idx = _feature_body(refs, num_mid)
    w_head = refs[idx][...]                       # (64, N)
    b_head = refs[idx + 1][...]                   # (1, N)
    refs[-1][...] = (jnp.dot(h, w_head, preferred_element_type=jnp.float32)
                     + b_head)


def _full_spec(shape):
    return pl.BlockSpec(shape, lambda *_: (0,) * len(shape))


def _single_call(kernel, args, out_shape):
    return pl.pallas_call(
        kernel,
        out_shape=jax.ShapeDtypeStruct(out_shape, jnp.float32),
        grid=(1,),
        in_specs=[_full_spec(a.shape) for a in args],
        out_specs=_full_spec(out_shape),
        compiler_params=pltpu.CompilerParams(dimension_semantics=("arbitrary",)),
    )(*args)


def fused_forward(x_hwc, block_args, mid_args, head_args, n_out):
    """Whole network (including the head) in one pallas_call."""
    args = [x_hwc]
    for tup in block_args:
        args.extend(tup)
    for tup in mid_args:
        args.extend(tup)
    args.extend(head_args)
    kern = functools.partial(_fused_kernel, num_mid=len(mid_args))
    return _single_call(kern, args, (1, n_out))


def fused_feature(x_hwc, block_args, mid_args):
    """Feature extractor only (used when the head is tiled separately)."""
    args = [x_hwc]
    for tup in block_args:
        args.extend(tup)
    for tup in mid_args:
        args.extend(tup)
    kern = functools.partial(_feature_kernel, num_mid=len(mid_args))
    return _single_call(kern, args, (1, 64))


# ---------------------------------------------------------------------------
# Fallback head kernel (large input_size): 1x1 conv == (1, 64) x (64, 3*S*S)
# matmul, N-tiled & pipelined. Output tiles are lane-dense (multiple of 128);
# the grid axis is "parallel" so multi-TensorCore chips (v7x) split the tiles.
# ---------------------------------------------------------------------------
def _head_kernel(f_ref, w_ref, b_ref, o_ref):
    o_ref[...] = (jnp.dot(f_ref[...], w_ref[...], preferred_element_type=jnp.float32)
                  + b_ref[...])


def _pick_head_tile(n):
    for t in (4096, 2048, 1024, 512, 256, 128):
        if n % t == 0:
            return t
    return 128


def head_matmul(feat, w_head, b_head):
    # feat: (1, 64); w_head: (64, N); b_head: (1, N)
    n = w_head.shape[1]
    tn = _pick_head_tile(n)
    n_pad = pl.cdiv(n, tn) * tn
    if n_pad != n:
        w_head = jnp.pad(w_head, ((0, 0), (0, n_pad - n)))
        b_head = jnp.pad(b_head, ((0, 0), (0, n_pad - n)))
    out = pl.pallas_call(
        _head_kernel,
        out_shape=jax.ShapeDtypeStruct((1, n_pad), jnp.float32),
        grid=(n_pad // tn,),
        in_specs=[
            pl.BlockSpec((1, 64), lambda i: (0, 0)),     # feature stays resident
            pl.BlockSpec((64, tn), lambda i: (0, i)),    # weight tiles, double-buffered
            pl.BlockSpec((1, tn), lambda i: (0, i)),
        ],
        out_specs=pl.BlockSpec((1, tn), lambda i: (0, i)),   # lane-dense stores
        compiler_params=pltpu.CompilerParams(dimension_semantics=("parallel",)),
    )(feat, w_head, b_head)
    return out[:, :n]


# ---------------------------------------------------------------------------
# Parameter init (deterministic, mirrors _initialize_weights: kaiming_normal
# fan_out/relu for conv weights, zero conv biases, BN gamma=1 / beta=0).
# ---------------------------------------------------------------------------
def init_params(key, num_layer, input_size):
    def kaiming(k, shape):  # shape = (Cout, Cin, kh, kw)
        fan_out = shape[0] * shape[2] * shape[3]
        std = (2.0 / fan_out) ** 0.5
        return jax.random.normal(k, shape, jnp.float32) * std

    keys = jax.random.split(key, 3 + num_layer + 1)
    blocks = []
    cin = 6
    for i in range(3):
        blocks.append(dict(
            w=kaiming(keys[i], (64, cin, 3, 3)),
            b=jnp.zeros((64,), jnp.float32),
            gamma=jnp.ones((64,), jnp.float32),
            beta=jnp.zeros((64,), jnp.float32),
        ))
        cin = 64
    mid = []
    for i in range(num_layer):
        ks = (input_size // 8) if i == 0 else 1
        mid.append(dict(
            w=kaiming(keys[3 + i], (64, 64, ks, ks)),
            b=jnp.zeros((64,), jnp.float32),
        ))
    head = dict(
        w=kaiming(keys[-1], (input_size * input_size * 3, 64, 1, 1)),
        b=jnp.zeros((input_size * input_size * 3,), jnp.float32),
    )
    return blocks, mid, head


# ---------------------------------------------------------------------------
# Forward: layout plumbing (transposes / weight reshapes) in plain JAX,
# all compute in the Pallas kernels above.
# ---------------------------------------------------------------------------
def pred_image_forward(x_nchw, blocks, mid, head, input_size):
    S = input_size
    assert S % 8 == 0, "input_size must be a multiple of 8"
    x = jnp.transpose(x_nchw[0], (1, 2, 0)).astype(jnp.float32)      # (S, S, 6)

    # Pad input channels 6 -> 8 (zeros) for friendlier lane packing; the first
    # conv weight gets matching zero rows, so the math is unchanged.
    cin0 = x.shape[-1]
    cin_eff = 8
    x = jnp.pad(x, ((0, 0), (0, 0), (0, cin_eff - cin0)))

    block_args = []
    cin = cin_eff
    for p in blocks:
        w = p["w"]                                                   # (64, cin_real, 3, 3)
        if w.shape[1] < cin:
            w = jnp.pad(w, ((0, 0), (0, cin - w.shape[1]), (0, 0), (0, 0)))
        wf = jnp.transpose(w, (2, 3, 1, 0)).reshape(9 * cin, 64)     # (kh, kw, ci) rows
        block_args.append((wf, p["b"].reshape(1, 64),
                           p["gamma"].reshape(1, 64), p["beta"].reshape(1, 64)))
        cin = 64

    mid_args = []
    for p in mid:
        w = p["w"]                                                   # (64, 64, ks, ks)
        ks = w.shape[2]
        wf = jnp.transpose(w, (2, 3, 1, 0)).reshape(ks * ks * 64, 64)
        mid_args.append((wf, p["b"].reshape(1, 64)))

    n_out = S * S * 3
    w_head = jnp.transpose(head["w"], (2, 3, 1, 0)).reshape(64, n_out)
    b_head = head["b"].reshape(1, n_out)

    # Fully fused single launch when the head weight comfortably fits in VMEM
    # alongside the feature-stack intermediates; otherwise tile the head.
    head_bytes = 4 * 64 * n_out
    if S <= 32 and head_bytes <= (2 << 20):
        out = fused_forward(x, block_args, mid_args, (w_head, b_head), n_out)
    else:
        feat = fused_feature(x, block_args, mid_args)                # (1, 64)
        out = head_matmul(feat, w_head, b_head)                      # (1, 3*S*S)

    # torch: (1, 3*S*S, 1, 1).view(1, 3, S, S)
    return out.reshape(1, 3, S, S)


if __name__ == "__main__":
    num_layer = 2
    input_size = 16   # multiple of 8 (three MaxPool(2) stages + k=S//8 conv)

    key = jax.random.PRNGKey(0)
    kx, kp = jax.random.split(key)
    x = jax.random.normal(kx, (1, 6, input_size, input_size), jnp.float32)
    blocks, mid, head = init_params(kp, num_layer, input_size)

    fwd = jax.jit(lambda inp: pred_image_forward(inp, blocks, mid, head, input_size))
    out = jax.block_until_ready(fwd(x))

    assert out.shape == (1, 3, input_size, input_size)
    assert bool(jnp.all(jnp.isfinite(out)))
    print("KERNEL_OK")
</pallas_src>

<mosaic_0001>
module attributes {stable_mosaic.version = 11 : i64} {
  func.func @_fused_kernel(%arg0: i32, %arg1: memref<16x16x8xf32, #tpu.memory_space<vmem>>, %arg2: memref<72x64xf32, #tpu.memory_space<vmem>>, %arg3: memref<1x64xf32, #tpu.memory_space<vmem>>, %arg4: memref<1x64xf32, #tpu.memory_space<vmem>>, %arg5: memref<1x64xf32, #tpu.memory_space<vmem>>, %arg6: memref<576x64xf32, #tpu.memory_space<vmem>>, %arg7: memref<1x64xf32, #tpu.memory_space<vmem>>, %arg8: memref<1x64xf32, #tpu.memory_space<vmem>>, %arg9: memref<1x64xf32, #tpu.memory_space<vmem>>, %arg10: memref<576x64xf32, #tpu.memory_space<vmem>>, %arg11: memref<1x64xf32, #tpu.memory_space<vmem>>, %arg12: memref<1x64xf32, #tpu.memory_space<vmem>>, %arg13: memref<1x64xf32, #tpu.memory_space<vmem>>, %arg14: memref<256x64xf32, #tpu.memory_space<vmem>>, %arg15: memref<1x64xf32, #tpu.memory_space<vmem>>, %arg16: memref<64x64xf32, #tpu.memory_space<vmem>>, %arg17: memref<1x64xf32, #tpu.memory_space<vmem>>, %arg18: memref<64x768xf32, #tpu.memory_space<vmem>>, %arg19: memref<1x768xf32, #tpu.memory_space<vmem>>, %arg20: memref<1x768xf32, #tpu.memory_space<vmem>>) attributes {dimension_semantics = [#tpu.dimension_semantics<arbitrary>], iteration_bounds = array<i64: 1>, scalar_prefetch = 0 : i64, scratch_operands = 0 : i64, tpu.core_type = #tpu.core_type<tc>, window_params = [{pipeline_mode = #tpu.pipeline_mode<synchronous>, transform_indices = @transform_0, window_bounds = array<i64: 16, 16, 8>}, {pipeline_mode = #tpu.pipeline_mode<synchronous>, transform_indices = @transform_1, window_bounds = array<i64: 72, 64>}, {pipeline_mode = #tpu.pipeline_mode<synchronous>, transform_indices = @transform_2, window_bounds = array<i64: 1, 64>}, {pipeline_mode = #tpu.pipeline_mode<synchronous>, transform_indices = @transform_3, window_bounds = array<i64: 1, 64>}, {pipeline_mode = #tpu.pipeline_mode<synchronous>, transform_indices = @transform_4, window_bounds = array<i64: 1, 64>}, {pipeline_mode = #tpu.pipeline_mode<synchronous>, transform_indices = @transform_5, window_bounds = array<i64: 576, 64>}, {pipeline_mode = #tpu.pipeline_mode<synchronous>, transform_indices = @transform_6, window_bounds = array<i64: 1, 64>}, {pipeline_mode = #tpu.pipeline_mode<synchronous>, transform_indices = @transform_7, window_bounds = array<i64: 1, 64>}, {pipeline_mode = #tpu.pipeline_mode<synchronous>, transform_indices = @transform_8, window_bounds = array<i64: 1, 64>}, {pipeline_mode = #tpu.pipeline_mode<synchronous>, transform_indices = @transform_9, window_bounds = array<i64: 576, 64>}, {pipeline_mode = #tpu.pipeline_mode<synchronous>, transform_indices = @transform_10, window_bounds = array<i64: 1, 64>}, {pipeline_mode = #tpu.pipeline_mode<synchronous>, transform_indices = @transform_11, window_bounds = array<i64: 1, 64>}, {pipeline_mode = #tpu.pipeline_mode<synchronous>, transform_indices = @transform_12, window_bounds = array<i64: 1, 64>}, {pipeline_mode = #tpu.pipeline_mode<synchronous>, transform_indices = @transform_13, window_bounds = array<i64: 256, 64>}, {pipeline_mode = #tpu.pipeline_mode<synchronous>, transform_indices = @transform_14, window_bounds = array<i64: 1, 64>}, {pipeline_mode = #tpu.pipeline_mode<synchronous>, transform_indices = @transform_15, window_bounds = array<i64: 64, 64>}, {pipeline_mode = #tpu.pipeline_mode<synchronous>, transform_indices = @transform_16, window_bounds = array<i64: 1, 64>}, {pipeline_mode = #tpu.pipeline_mode<synchronous>, transform_indices = @transform_17, window_bounds = array<i64: 64, 768>}, {pipeline_mode = #tpu.pipeline_mode<synchronous>, transform_indices = @transform_18, window_bounds = array<i64: 1, 768>}, {pipeline_mode = #tpu.pipeline_mode<synchronous>, transform_indices = @transform_19, window_bounds = array<i64: 1, 768>}]} {
    %c0 = arith.constant 0 : index
    %c0_0 = arith.constant 0 : index
    %c0_1 = arith.constant 0 : index
    %0 = vector.load %arg1[%c0, %c0_0, %c0_1] : memref<16x16x8xf32, #tpu.memory_space<vmem>>, vector<16x16x8xf32>
    %c0_2 = arith.constant 0 : index
    %c0_3 = arith.constant 0 : index
    %1 = vector.load %arg2[%c0_2, %c0_3] : memref<72x64xf32, #tpu.memory_space<vmem>>, vector<72x64xf32>
    %c0_4 = arith.constant 0 : index
    %c0_5 = arith.constant 0 : index
    %2 = vector.load %arg3[%c0_4, %c0_5] : memref<1x64xf32, #tpu.memory_space<vmem>>, vector<1x64xf32>
    %c0_6 = arith.constant 0 : index
    %c0_7 = arith.constant 0 : index
    %3 = vector.load %arg4[%c0_6, %c0_7] : memref<1x64xf32, #tpu.memory_space<vmem>>, vector<1x64xf32>
    %c0_8 = arith.constant 0 : index
    %c0_9 = arith.constant 0 : index
    %4 = vector.load %arg5[%c0_8, %c0_9] : memref<1x64xf32, #tpu.memory_space<vmem>>, vector<1x64xf32>
    %cst = arith.constant 0.000000e+00 : f32
    %5 = vector.broadcast %cst : f32 to vector<1x16x8xf32>
    %6 = tpu.concatenate %5, %0, %5 in 0 : vector<1x16x8xf32>, vector<16x16x8xf32>, vector<1x16x8xf32> -> vector<18x16x8xf32>
    %cst_10 = arith.constant 0.000000e+00 : f32
    %7 = vector.broadcast %cst_10 : f32 to vector<18x1x8xf32>
    %8 = tpu.concatenate %7, %6, %7 in 1 : vector<18x1x8xf32>, vector<18x16x8xf32>, vector<18x1x8xf32> -> vector<18x18x8xf32>
    %9 = vector.extract_strided_slice %8 {offsets = [0, 0, 0], sizes = [16, 16, 8], strides = [1, 1, 1]} : vector<18x18x8xf32> to vector<16x16x8xf32>
    %10 = vector.extract_strided_slice %8 {offsets = [0, 1, 0], sizes = [16, 16, 8], strides = [1, 1, 1]} : vector<18x18x8xf32> to vector<16x16x8xf32>
    %11 = vector.extract_strided_slice %8 {offsets = [0, 2, 0], sizes = [16, 16, 8], strides = [1, 1, 1]} : vector<18x18x8xf32> to vector<16x16x8xf32>
    %12 = vector.extract_strided_slice %8 {offsets = [1, 0, 0], sizes = [16, 16, 8], strides = [1, 1, 1]} : vector<18x18x8xf32> to vector<16x16x8xf32>
    %13 = vector.extract_strided_slice %8 {offsets = [1, 1, 0], sizes = [16, 16, 8], strides = [1, 1, 1]} : vector<18x18x8xf32> to vector<16x16x8xf32>
    %14 = vector.extract_strided_slice %8 {offsets = [1, 2, 0], sizes = [16, 16, 8], strides = [1, 1, 1]} : vector<18x18x8xf32> to vector<16x16x8xf32>
    %15 = vector.extract_strided_slice %8 {offsets = [2, 0, 0], sizes = [16, 16, 8], strides = [1, 1, 1]} : vector<18x18x8xf32> to vector<16x16x8xf32>
    %16 = vector.extract_strided_slice %8 {offsets = [2, 1, 0], sizes = [16, 16, 8], strides = [1, 1, 1]} : vector<18x18x8xf32> to vector<16x16x8xf32>
    %17 = vector.extract_strided_slice %8 {offsets = [2, 2, 0], sizes = [16, 16, 8], strides = [1, 1, 1]} : vector<18x18x8xf32> to vector<16x16x8xf32>
    %18 = tpu.concatenate %9, %10, %11, %12, %13, %14, %15, %16, %17 in 2 : vector<16x16x8xf32>, vector<16x16x8xf32>, vector<16x16x8xf32>, vector<16x16x8xf32>, vector<16x16x8xf32>, vector<16x16x8xf32>, vector<16x16x8xf32>, vector<16x16x8xf32>, vector<16x16x8xf32> -> vector<16x16x72xf32>
    %19 = vector.shape_cast %18 : vector<16x16x72xf32> to vector<256x72xf32>
    %cst_11 = arith.constant dense<0.000000e+00> : vector<256x64xf32>
    %20 = tpu.matmul %19, %1, %cst_11 {dimension_numbers = #tpu.dot_dimension_numbers<[1], [0], [0], [1], [0, 0, 1, 1], [], []>} : vector<256x72xf32>, vector<72x64xf32>, vector<256x64xf32> -> vector<256x64xf32>
    %21 = vector.broadcast %2 : vector<1x64xf32> to vector<256x64xf32>
    %22 = arith.addf %20, %21 : vector<256x64xf32>
    %cst_12 = arith.constant dense<0.000000e+00> : vector<64xf32>
    %23 = vector.multi_reduction <add>, %22, %cst_12 [0] : vector<256x64xf32> to vector<64xf32>
    %24 = vector.shape_cast %23 : vector<64xf32> to vector<1x64xf32>
    %25 = arith.mulf %22, %22 : vector<256x64xf32>
    %cst_13 = arith.constant dense<0.000000e+00> : vector<64xf32>
    %26 = vector.multi_reduction <add>, %25, %cst_13 [0] : vector<256x64xf32> to vector<64xf32>
    %27 = vector.shape_cast %26 : vector<64xf32> to vector<1x64xf32>
    %cst_14 = arith.constant 3.906250e-03 : f32
    %28 = vector.broadcast %cst_14 : f32 to vector<1x64xf32>
    %29 = arith.mulf %24, %28 : vector<1x64xf32>
    %cst_15 = arith.constant 3.906250e-03 : f32
    %30 = vector.broadcast %cst_15 : f32 to vector<1x64xf32>
    %31 = arith.mulf %27, %30 : vector<1x64xf32>
    %32 = arith.mulf %29, %29 : vector<1x64xf32>
    %33 = arith.subf %31, %32 : vector<1x64xf32>
    %cst_16 = arith.constant 0.000000e+00 : f32
    %34 = vector.broadcast %cst_16 : f32 to vector<1x64xf32>
    %35 = arith.maximumf %33, %34 : vector<1x64xf32>
    %36 = vector.broadcast %29 : vector<1x64xf32> to vector<256x64xf32>
    %37 = arith.subf %22, %36 : vector<256x64xf32>
    %cst_17 = arith.constant 9.99999974E-6 : f32
    %38 = vector.broadcast %cst_17 : f32 to vector<1x64xf32>
    %39 = arith.addf %35, %38 : vector<1x64xf32>
    %40 = math.rsqrt %39 : vector<1x64xf32>
    %41 = vector.broadcast %40 : vector<1x64xf32> to vector<256x64xf32>
    %42 = arith.mulf %37, %41 : vector<256x64xf32>
    %43 = vector.broadcast %3 : vector<1x64xf32> to vector<256x64xf32>
    %44 = arith.mulf %42, %43 : vector<256x64xf32>
    %45 = vector.broadcast %4 : vector<1x64xf32> to vector<256x64xf32>
    %46 = arith.addf %44, %45 : vector<256x64xf32>
    %cst_18 = arith.constant 0.000000e+00 : f32
    %47 = vector.broadcast %cst_18 : f32 to vector<256x64xf32>
    %48 = arith.maximumf %46, %47 : vector<256x64xf32>
    %49 = vector.shape_cast %48 : vector<256x64xf32> to vector<8x2x8x2x64xf32>
    %50 = vector.extract_strided_slice %49 {offsets = [0, 0, 0, 0, 0], sizes = [8, 1, 8, 2, 64], strides = [1, 1, 1, 1, 1]} : vector<8x2x8x2x64xf32> to vector<8x1x8x2x64xf32>
    %51 = vector.shape_cast %50 : vector<8x1x8x2x64xf32> to vector<8x8x2x64xf32>
    %52 = vector.extract_strided_slice %49 {offsets = [0, 1, 0, 0, 0], sizes = [8, 1, 8, 2, 64], strides = [1, 1, 1, 1, 1]} : vector<8x2x8x2x64xf32> to vector<8x1x8x2x64xf32>
    %53 = vector.shape_cast %52 : vector<8x1x8x2x64xf32> to vector<8x8x2x64xf32>
    %54 = arith.maximumf %51, %53 : vector<8x8x2x64xf32>
    %55 = vector.extract_strided_slice %54 {offsets = [0, 0, 0, 0], sizes = [8, 8, 1, 64], strides = [1, 1, 1, 1]} : vector<8x8x2x64xf32> to vector<8x8x1x64xf32>
    %56 = vector.shape_cast %55 : vector<8x8x1x64xf32> to vector<8x8x64xf32>
    %57 = vector.extract_strided_slice %54 {offsets = [0, 0, 1, 0], sizes = [8, 8, 1, 64], strides = [1, 1, 1, 1]} : vector<8x8x2x64xf32> to vector<8x8x1x64xf32>
    %58 = vector.shape_cast %57 : vector<8x8x1x64xf32> to vector<8x8x64xf32>
    %59 = arith.maximumf %56, %58 : vector<8x8x64xf32>
    %c0_19 = arith.constant 0 : index
    %c0_20 = arith.constant 0 : index
    %60 = vector.load %arg6[%c0_19, %c0_20] : memref<576x64xf32, #tpu.memory_space<vmem>>, vector<576x64xf32>
    %c0_21 = arith.constant 0 : index
    %c0_22 = arith.constant 0 : index
    %61 = vector.load %arg7[%c0_21, %c0_22] : memref<1x64xf32, #tpu.memory_space<vmem>>, vector<1x64xf32>
    %c0_23 = arith.constant 0 : index
    %c0_24 = arith.constant 0 : index
    %62 = vector.load %arg8[%c0_23, %c0_24] : memref<1x64xf32, #tpu.memory_space<vmem>>, vector<1x64xf32>
    %c0_25 = arith.constant 0 : index
    %c0_26 = arith.constant 0 : index
    %63 = vector.load %arg9[%c0_25, %c0_26] : memref<1x64xf32, #tpu.memory_space<vmem>>, vector<1x64xf32>
    %cst_27 = arith.constant 0.000000e+00 : f32
    %64 = vector.broadcast %cst_27 : f32 to vector<1x8x64xf32>
    %65 = tpu.concatenate %64, %59, %64 in 0 : vector<1x8x64xf32>, vector<8x8x64xf32>, vector<1x8x64xf32> -> vector<10x8x64xf32>
    %cst_28 = arith.constant 0.000000e+00 : f32
    %66 = vector.broadcast %cst_28 : f32 to vector<10x1x64xf32>
    %67 = tpu.concatenate %66, %65, %66 in 1 : vector<10x1x64xf32>, vector<10x8x64xf32>, vector<10x1x64xf32> -> vector<10x10x64xf32>
    %68 = vector.extract_strided_slice %67 {offsets = [0, 0, 0], sizes = [8, 8, 64], strides = [1, 1, 1]} : vector<10x10x64xf32> to vector<8x8x64xf32>
    %69 = vector.extract_strided_slice %67 {offsets = [0, 1, 0], sizes = [8, 8, 64], strides = [1, 1, 1]} : vector<10x10x64xf32> to vector<8x8x64xf32>
    %70 = vector.extract_strided_slice %67 {offsets = [0, 2, 0], sizes = [8, 8, 64], strides = [1, 1, 1]} : vector<10x10x64xf32> to vector<8x8x64xf32>
    %71 = vector.extract_strided_slice %67 {offsets = [1, 0, 0], sizes = [8, 8, 64], strides = [1, 1, 1]} : vector<10x10x64xf32> to vector<8x8x64xf32>
    %72 = vector.extract_strided_slice %67 {offsets = [1, 1, 0], sizes = [8, 8, 64], strides = [1, 1, 1]} : vector<10x10x64xf32> to vector<8x8x64xf32>
    %73 = vector.extract_strided_slice %67 {offsets = [1, 2, 0], sizes = [8, 8, 64], strides = [1, 1, 1]} : vector<10x10x64xf32> to vector<8x8x64xf32>
    %74 = vector.extract_strided_slice %67 {offsets = [2, 0, 0], sizes = [8, 8, 64], strides = [1, 1, 1]} : vector<10x10x64xf32> to vector<8x8x64xf32>
    %75 = vector.extract_strided_slice %67 {offsets = [2, 1, 0], sizes = [8, 8, 64], strides = [1, 1, 1]} : vector<10x10x64xf32> to vector<8x8x64xf32>
    %76 = vector.extract_strided_slice %67 {offsets = [2, 2, 0], sizes = [8, 8, 64], strides = [1, 1, 1]} : vector<10x10x64xf32> to vector<8x8x64xf32>
    %77 = tpu.concatenate %68, %69, %70, %71, %72, %73, %74, %75, %76 in 2 : vector<8x8x64xf32>, vector<8x8x64xf32>, vector<8x8x64xf32>, vector<8x8x64xf32>, vector<8x8x64xf32>, vector<8x8x64xf32>, vector<8x8x64xf32>, vector<8x8x64xf32>, vector<8x8x64xf32> -> vector<8x8x576xf32>
    %78 = vector.shape_cast %77 : vector<8x8x576xf32> to vector<64x576xf32>
    %cst_29 = arith.constant dense<0.000000e+00> : vector<64x64xf32>
    %79 = tpu.matmul %78, %60, %cst_29 {dimension_numbers = #tpu.dot_dimension_numbers<[1], [0], [0], [1], [0, 0, 1, 1], [], []>} : vector<64x576xf32>, vector<576x64xf32>, vector<64x64xf32> -> vector<64x64xf32>
    %80 = vector.broadcast %61 : vector<1x64xf32> to vector<64x64xf32>
    %81 = arith.addf %79, %80 : vector<64x64xf32>
    %cst_30 = arith.constant dense<0.000000e+00> : vector<64xf32>
    %82 = vector.multi_reduction <add>, %81, %cst_30 [0] : vector<64x64xf32> to vector<64xf32>
    %83 = vector.shape_cast %82 : vector<64xf32> to vector<1x64xf32>
    %84 = arith.mulf %81, %81 : vector<64x64xf32>
    %cst_31 = arith.constant dense<0.000000e+00> : vector<64xf32>
    %85 = vector.multi_reduction <add>, %84, %cst_31 [0] : vector<64x64xf32> to vector<64xf32>
    %86 = vector.shape_cast %85 : vector<64xf32> to vector<1x64xf32>
    %cst_32 = arith.constant 1.562500e-02 : f32
    %87 = vector.broadcast %cst_32 : f32 to vector<1x64xf32>
    %88 = arith.mulf %83, %87 : vector<1x64xf32>
    %cst_33 = arith.constant 1.562500e-02 : f32
    %89 = vector.broadcast %cst_33 : f32 to vector<1x64xf32>
    %90 = arith.mulf %86, %89 : vector<1x64xf32>
    %91 = arith.mulf %88, %88 : vector<1x64xf32>
    %92 = arith.subf %90, %91 : vector<1x64xf32>
    %cst_34 = arith.constant 0.000000e+00 : f32
    %93 = vector.broadcast %cst_34 : f32 to vector<1x64xf32>
    %94 = arith.maximumf %92, %93 : vector<1x64xf32>
    %95 = vector.broadcast %88 : vector<1x64xf32> to vector<64x64xf32>
    %96 = arith.subf %81, %95 : vector<64x64xf32>
    %cst_35 = arith.constant 9.99999974E-6 : f32
    %97 = vector.broadcast %cst_35 : f32 to vector<1x64xf32>
    %98 = arith.addf %94, %97 : vector<1x64xf32>
    %99 = math.rsqrt %98 : vector<1x64xf32>
    %100 = vector.broadcast %99 : vector<1x64xf32> to vector<64x64xf32>
    %101 = arith.mulf %96, %100 : vector<64x64xf32>
    %102 = vector.broadcast %62 : vector<1x64xf32> to vector<64x64xf32>
    %103 = arith.mulf %101, %102 : vector<64x64xf32>
    %104 = vector.broadcast %63 : vector<1x64xf32> to vector<64x64xf32>
    %105 = arith.addf %103, %104 : vector<64x64xf32>
    %cst_36 = arith.constant 0.000000e+00 : f32
    %106 = vector.broadcast %cst_36 : f32 to vector<64x64xf32>
    %107 = arith.maximumf %105, %106 : vector<64x64xf32>
    %108 = vector.shape_cast %107 : vector<64x64xf32> to vector<4x2x4x2x64xf32>
    %109 = vector.extract_strided_slice %108 {offsets = [0, 0, 0, 0, 0], sizes = [4, 1, 4, 2, 64], strides = [1, 1, 1, 1, 1]} : vector<4x2x4x2x64xf32> to vector<4x1x4x2x64xf32>
    %110 = vector.shape_cast %109 : vector<4x1x4x2x64xf32> to vector<4x4x2x64xf32>
    %111 = vector.extract_strided_slice %108 {offsets = [0, 1, 0, 0, 0], sizes = [4, 1, 4, 2, 64], strides = [1, 1, 1, 1, 1]} : vector<4x2x4x2x64xf32> to vector<4x1x4x2x64xf32>
    %112 = vector.shape_cast %111 : vector<4x1x4x2x64xf32> to vector<4x4x2x64xf32>
    %113 = arith.maximumf %110, %112 : vector<4x4x2x64xf32>
    %114 = vector.extract_strided_slice %113 {offsets = [0, 0, 0, 0], sizes = [4, 4, 1, 64], strides = [1, 1, 1, 1]} : vector<4x4x2x64xf32> to vector<4x4x1x64xf32>
    %115 = vector.shape_cast %114 : vector<4x4x1x64xf32> to vector<4x4x64xf32>
    %116 = vector.extract_strided_slice %113 {offsets = [0, 0, 1, 0], sizes = [4, 4, 1, 64], strides = [1, 1, 1, 1]} : vector<4x4x2x64xf32> to vector<4x4x1x64xf32>
    %117 = vector.shape_cast %116 : vector<4x4x1x64xf32> to vector<4x4x64xf32>
    %118 = arith.maximumf %115, %117 : vector<4x4x64xf32>
    %c0_37 = arith.constant 0 : index
    %c0_38 = arith.constant 0 : index
    %119 = vector.load %arg10[%c0_37, %c0_38] : memref<576x64xf32, #tpu.memory_space<vmem>>, vector<576x64xf32>
    %c0_39 = arith.constant 0 : index
    %c0_40 = arith.constant 0 : index
    %120 = vector.load %arg11[%c0_39, %c0_40] : memref<1x64xf32, #tpu.memory_space<vmem>>, vector<1x64xf32>
    %c0_41 = arith.constant 0 : index
    %c0_42 = arith.constant 0 : index
    %121 = vector.load %arg12[%c0_41, %c0_42] : memref<1x64xf32, #tpu.memory_space<vmem>>, vector<1x64xf32>
    %c0_43 = arith.constant 0 : index
    %c0_44 = arith.constant 0 : index
    %122 = vector.load %arg13[%c0_43, %c0_44] : memref<1x64xf32, #tpu.memory_space<vmem>>, vector<1x64xf32>
    %cst_45 = arith.constant 0.000000e+00 : f32
    %123 = vector.broadcast %cst_45 : f32 to vector<1x4x64xf32>
    %124 = tpu.concatenate %123, %118, %123 in 0 : vector<1x4x64xf32>, vector<4x4x64xf32>, vector<1x4x64xf32> -> vector<6x4x64xf32>
    %cst_46 = arith.constant 0.000000e+00 : f32
    %125 = vector.broadcast %cst_46 : f32 to vector<6x1x64xf32>
    %126 = tpu.concatenate %125, %124, %125 in 1 : vector<6x1x64xf32>, vector<6x4x64xf32>, vector<6x1x64xf32> -> vector<6x6x64xf32>
    %127 = vector.extract_strided_slice %126 {offsets = [0, 0, 0], sizes = [4, 4, 64], strides = [1, 1, 1]} : vector<6x6x64xf32> to vector<4x4x64xf32>
    %128 = vector.extract_strided_slice %126 {offsets = [0, 1, 0], sizes = [4, 4, 64], strides = [1, 1, 1]} : vector<6x6x64xf32> to vector<4x4x64xf32>
    %129 = vector.extract_strided_slice %126 {offsets = [0, 2, 0], sizes = [4, 4, 64], strides = [1, 1, 1]} : vector<6x6x64xf32> to vector<4x4x64xf32>
    %130 = vector.extract_strided_slice %126 {offsets = [1, 0, 0], sizes = [4, 4, 64], strides = [1, 1, 1]} : vector<6x6x64xf32> to vector<4x4x64xf32>
    %131 = vector.extract_strided_slice %126 {offsets = [1, 1, 0], sizes = [4, 4, 64], strides = [1, 1, 1]} : vector<6x6x64xf32> to vector<4x4x64xf32>
    %132 = vector.extract_strided_slice %126 {offsets = [1, 2, 0], sizes = [4, 4, 64], strides = [1, 1, 1]} : vector<6x6x64xf32> to vector<4x4x64xf32>
    %133 = vector.extract_strided_slice %126 {offsets = [2, 0, 0], sizes = [4, 4, 64], strides = [1, 1, 1]} : vector<6x6x64xf32> to vector<4x4x64xf32>
    %134 = vector.extract_strided_slice %126 {offsets = [2, 1, 0], sizes = [4, 4, 64], strides = [1, 1, 1]} : vector<6x6x64xf32> to vector<4x4x64xf32>
    %135 = vector.extract_strided_slice %126 {offsets = [2, 2, 0], sizes = [4, 4, 64], strides = [1, 1, 1]} : vector<6x6x64xf32> to vector<4x4x64xf32>
    %136 = tpu.concatenate %127, %128, %129, %130, %131, %132, %133, %134, %135 in 2 : vector<4x4x64xf32>, vector<4x4x64xf32>, vector<4x4x64xf32>, vector<4x4x64xf32>, vector<4x4x64xf32>, vector<4x4x64xf32>, vector<4x4x64xf32>, vector<4x4x64xf32>, vector<4x4x64xf32> -> vector<4x4x576xf32>
    %137 = vector.shape_cast %136 : vector<4x4x576xf32> to vector<16x576xf32>
    %cst_47 = arith.constant dense<0.000000e+00> : vector<16x64xf32>
    %138 = tpu.matmul %137, %119, %cst_47 {dimension_numbers = #tpu.dot_dimension_numbers<[1], [0], [0], [1], [0, 0, 1, 1], [], []>} : vector<16x576xf32>, vector<576x64xf32>, vector<16x64xf32> -> vector<16x64xf32>
    %139 = vector.broadcast %120 : vector<1x64xf32> to vector<16x64xf32>
    %140 = arith.addf %138, %139 : vector<16x64xf32>
    %cst_48 = arith.constant dense<0.000000e+00> : vector<64xf32>
    %141 = vector.multi_reduction <add>, %140, %cst_48 [0] : vector<16x64xf32> to vector<64xf32>
    %142 = vector.shape_cast %141 : vector<64xf32> to vector<1x64xf32>
    %143 = arith.mulf %140, %140 : vector<16x64xf32>
    %cst_49 = arith.constant dense<0.000000e+00> : vector<64xf32>
    %144 = vector.multi_reduction <add>, %143, %cst_49 [0] : vector<16x64xf32> to vector<64xf32>
    %145 = vector.shape_cast %144 : vector<64xf32> to vector<1x64xf32>
    %cst_50 = arith.constant 6.250000e-02 : f32
    %146 = vector.broadcast %cst_50 : f32 to vector<1x64xf32>
    %147 = arith.mulf %142, %146 : vector<1x64xf32>
    %cst_51 = arith.constant 6.250000e-02 : f32
    %148 = vector.broadcast %cst_51 : f32 to vector<1x64xf32>
    %149 = arith.mulf %145, %148 : vector<1x64xf32>
    %150 = arith.mulf %147, %147 : vector<1x64xf32>
    %151 = arith.subf %149, %150 : vector<1x64xf32>
    %cst_52 = arith.constant 0.000000e+00 : f32
    %152 = vector.broadcast %cst_52 : f32 to vector<1x64xf32>
    %153 = arith.maximumf %151, %152 : vector<1x64xf32>
    %154 = vector.broadcast %147 : vector<1x64xf32> to vector<16x64xf32>
    %155 = arith.subf %140, %154 : vector<16x64xf32>
    %cst_53 = arith.constant 9.99999974E-6 : f32
    %156 = vector.broadcast %cst_53 : f32 to vector<1x64xf32>
    %157 = arith.addf %153, %156 : vector<1x64xf32>
    %158 = math.rsqrt %157 : vector<1x64xf32>
    %159 = vector.broadcast %158 : vector<1x64xf32> to vector<16x64xf32>
    %160 = arith.mulf %155, %159 : vector<16x64xf32>
    %161 = vector.broadcast %121 : vector<1x64xf32> to vector<16x64xf32>
    %162 = arith.mulf %160, %161 : vector<16x64xf32>
    %163 = vector.broadcast %122 : vector<1x64xf32> to vector<16x64xf32>
    %164 = arith.addf %162, %163 : vector<16x64xf32>
    %cst_54 = arith.constant 0.000000e+00 : f32
    %165 = vector.broadcast %cst_54 : f32 to vector<16x64xf32>
    %166 = arith.maximumf %164, %165 : vector<16x64xf32>
    %167 = vector.shape_cast %166 : vector<16x64xf32> to vector<2x2x2x2x64xf32>
    %168 = vector.extract_strided_slice %167 {offsets = [0, 0, 0, 0, 0], sizes = [2, 1, 2, 2, 64], strides = [1, 1, 1, 1, 1]} : vector<2x2x2x2x64xf32> to vector<2x1x2x2x64xf32>
    %169 = vector.shape_cast %168 : vector<2x1x2x2x64xf32> to vector<2x2x2x64xf32>
    %170 = vector.extract_strided_slice %167 {offsets = [0, 1, 0, 0, 0], sizes = [2, 1, 2, 2, 64], strides = [1, 1, 1, 1, 1]} : vector<2x2x2x2x64xf32> to vector<2x1x2x2x64xf32>
    %171 = vector.shape_cast %170 : vector<2x1x2x2x64xf32> to vector<2x2x2x64xf32>
    %172 = arith.maximumf %169, %171 : vector<2x2x2x64xf32>
    %173 = vector.extract_strided_slice %172 {offsets = [0, 0, 0, 0], sizes = [2, 2, 1, 64], strides = [1, 1, 1, 1]} : vector<2x2x2x64xf32> to vector<2x2x1x64xf32>
    %174 = vector.shape_cast %173 : vector<2x2x1x64xf32> to vector<2x2x64xf32>
    %175 = vector.extract_strided_slice %172 {offsets = [0, 0, 1, 0], sizes = [2, 2, 1, 64], strides = [1, 1, 1, 1]} : vector<2x2x2x64xf32> to vector<2x2x1x64xf32>
    %176 = vector.shape_cast %175 : vector<2x2x1x64xf32> to vector<2x2x64xf32>
    %177 = arith.maximumf %174, %176 : vector<2x2x64xf32>
    %178 = vector.extract_strided_slice %177 {offsets = [0, 0, 0], sizes = [1, 1, 64], strides = [1, 1, 1]} : vector<2x2x64xf32> to vector<1x1x64xf32>
    %179 = vector.shape_cast %178 : vector<1x1x64xf32> to vector<1x64xf32>
    %180 = vector.extract_strided_slice %177 {offsets = [0, 1, 0], sizes = [1, 1, 64], strides = [1, 1, 1]} : vector<2x2x64xf32> to vector<1x1x64xf32>
    %181 = vector.shape_cast %180 : vector<1x1x64xf32> to vector<1x64xf32>
    %182 = vector.extract_strided_slice %177 {offsets = [1, 0, 0], sizes = [1, 1, 64], strides = [1, 1, 1]} : vector<2x2x64xf32> to vector<1x1x64xf32>
    %183 = vector.shape_cast %182 : vector<1x1x64xf32> to vector<1x64xf32>
    %184 = vector.extract_strided_slice %177 {offsets = [1, 1, 0], sizes = [1, 1, 64], strides = [1, 1, 1]} : vector<2x2x64xf32> to vector<1x1x64xf32>
    %185 = vector.shape_cast %184 : vector<1x1x64xf32> to vector<1x64xf32>
    %186 = tpu.concatenate %179, %181, %183, %185 in 1 : vector<1x64xf32>, vector<1x64xf32>, vector<1x64xf32>, vector<1x64xf32> -> vector<1x256xf32>
    %c0_55 = arith.constant 0 : index
    %c0_56 = arith.constant 0 : index
    %187 = vector.load %arg14[%c0_55, %c0_56] : memref<256x64xf32, #tpu.memory_space<vmem>>, vector<256x64xf32>
    %c0_57 = arith.constant 0 : index
    %c0_58 = arith.constant 0 : index
    %188 = vector.load %arg15[%c0_57, %c0_58] : memref<1x64xf32, #tpu.memory_space<vmem>>, vector<1x64xf32>
    %cst_59 = arith.constant dense<0.000000e+00> : vector<1x64xf32>
    %189 = tpu.matmul %186, %187, %cst_59 {dimension_numbers = #tpu.dot_dimension_numbers<[1], [0], [0], [1], [0, 0, 1, 1], [], []>} : vector<1x256xf32>, vector<256x64xf32>, vector<1x64xf32> -> vector<1x64xf32>
    %190 = arith.addf %189, %188 : vector<1x64xf32>
    %c0_60 = arith.constant 0 : index
    %c0_61 = arith.constant 0 : index
    %191 = vector.load %arg16[%c0_60, %c0_61] : memref<64x64xf32, #tpu.memory_space<vmem>>, vector<64x64xf32>
    %c0_62 = arith.constant 0 : index
    %c0_63 = arith.constant 0 : index
    %192 = vector.load %arg17[%c0_62, %c0_63] : memref<1x64xf32, #tpu.memory_space<vmem>>, vector<1x64xf32>
    %cst_64 = arith.constant dense<0.000000e+00> : vector<1x64xf32>
    %193 = tpu.matmul %190, %191, %cst_64 {dimension_numbers = #tpu.dot_dimension_numbers<[1], [0], [0], [1], [0, 0, 1, 1], [], []>} : vector<1x64xf32>, vector<64x64xf32>, vector<1x64xf32> -> vector<1x64xf32>
    %194 = arith.addf %193, %192 : vector<1x64xf32>
    %c0_65 = arith.constant 0 : index
    %c0_66 = arith.constant 0 : index
    %195 = vector.load %arg18[%c0_65, %c0_66] : memref<64x768xf32, #tpu.memory_space<vmem>>, vector<64x768xf32>
    %c0_67 = arith.constant 0 : index
    %c0_68 = arith.constant 0 : index
    %196 = vector.load %arg19[%c0_67, %c0_68] : memref<1x768xf32, #tpu.memory_space<vmem>>, vector<1x768xf32>
    %cst_69 = arith.constant dense<0.000000e+00> : vector<1x768xf32>
    %197 = tpu.matmul %194, %195, %cst_69 {dimension_numbers = #tpu.dot_dimension_numbers<[1], [0], [0], [1], [0, 0, 1, 1], [], []>} : vector<1x64xf32>, vector<64x768xf32>, vector<1x768xf32> -> vector<1x768xf32>
    %198 = arith.addf %197, %196 : vector<1x768xf32>
    %c0_70 = arith.constant 0 : index
    %c0_71 = arith.constant 0 : index
    %199 = vector.load %arg20[%c0_70, %c0_71] : memref<1x768xf32, #tpu.memory_space<vmem>>, vector<1x768xf32>
    tpu.vector_store %arg20[%c0_70, %c0_71], %198 {strides = array<i32>} : memref<1x768xf32, #tpu.memory_space<vmem>>, vector<1x768xf32>,
    return
  }
  func.func @transform_0(%arg0: i32) -> (i32, i32, i32) {
    %c0_i32 = arith.constant 0 : i32
    %c0_i32_0 = arith.constant 0 : i32
    %c0_i32_1 = arith.constant 0 : i32
    %c0_i32_2 = arith.constant 0 : i32
    return %c0_i32, %c0_i32_0, %c0_i32_1 : i32, i32, i32
  }
  func.func @transform_1(%arg0: i32) -> (i32, i32) {
    %c0_i32 = arith.constant 0 : i32
    %c0_i32_0 = arith.constant 0 : i32
    %c0_i32_1 = arith.constant 0 : i32
    return %c0_i32, %c0_i32_0 : i32, i32
  }
  func.func @transform_2(%arg0: i32) -> (i32, i32) {
    %c0_i32 = arith.constant 0 : i32
    %c0_i32_0 = arith.constant 0 : i32
    %c0_i32_1 = arith.constant 0 : i32
    return %c0_i32, %c0_i32_0 : i32, i32
  }
  func.func @transform_3(%arg0: i32) -> (i32, i32) {
    %c0_i32 = arith.constant 0 : i32
    %c0_i32_0 = arith.constant 0 : i32
    %c0_i32_1 = arith.constant 0 : i32
    return %c0_i32, %c0_i32_0 : i32, i32
  }
  func.func @transform_4(%arg0: i32) -> (i32, i32) {
    %c0_i32 = arith.constant 0 : i32
    %c0_i32_0 = arith.constant 0 : i32
    %c0_i32_1 = arith.constant 0 : i32
    return %c0_i32, %c0_i32_0 : i32, i32
  }
  func.func @transform_5(%arg0: i32) -> (i32, i32) {
    %c0_i32 = arith.constant 0 : i32
    %c0_i32_0 = arith.constant 0 : i32
    %c0_i32_1 = arith.constant 0 : i32
    return %c0_i32, %c0_i32_0 : i32, i32
  }
  func.func @transform_6(%arg0: i32) -> (i32, i32) {
    %c0_i32 = arith.constant 0 : i32
    %c0_i32_0 = arith.constant 0 : i32
    %c0_i32_1 = arith.constant 0 : i32
    return %c0_i32, %c0_i32_0 : i32, i32
  }
  func.func @transform_7(%arg0: i32) -> (i32, i32) {
    %c0_i32 = arith.constant 0 : i32
    %c0_i32_0 = arith.constant 0 : i32
    %c0_i32_1 = arith.constant 0 : i32
    return %c0_i32, %c0_i32_0 : i32, i32
  }
  func.func @transform_8(%arg0: i32) -> (i32, i32) {
    %c0_i32 = arith.constant 0 : i32
    %c0_i32_0 = arith.constant 0 : i32
    %c0_i32_1 = arith.constant 0 : i32
    return %c0_i32, %c0_i32_0 : i32, i32
  }
  func.func @transform_9(%arg0: i32) -> (i32, i32) {
    %c0_i32 = arith.constant 0 : i32
    %c0_i32_0 = arith.constant 0 : i32
    %c0_i32_1 = arith.constant 0 : i32
    return %c0_i32, %c0_i32_0 : i32, i32
  }
  func.func @transform_10(%arg0: i32) -> (i32, i32) {
    %c0_i32 = arith.constant 0 : i32
    %c0_i32_0 = arith.constant 0 : i32
    %c0_i32_1 = arith.constant 0 : i32
    return %c0_i32, %c0_i32_0 : i32, i32
  }
  func.func @transform_11(%arg0: i32) -> (i32, i32) {
    %c0_i32 = arith.constant 0 : i32
    %c0_i32_0 = arith.constant 0 : i32
    %c0_i32_1 = arith.constant 0 : i32
    return %c0_i32, %c0_i32_0 : i32, i32
  }
  func.func @transform_12(%arg0: i32) -> (i32, i32) {
    %c0_i32 = arith.constant 0 : i32
    %c0_i32_0 = arith.constant 0 : i32
    %c0_i32_1 = arith.constant 0 : i32
    return %c0_i32, %c0_i32_0 : i32, i32
  }
  func.func @transform_13(%arg0: i32) -> (i32, i32) {
    %c0_i32 = arith.constant 0 : i32
    %c0_i32_0 = arith.constant 0 : i32
    %c0_i32_1 = arith.constant 0 : i32
    return %c0_i32, %c0_i32_0 : i32, i32
  }
  func.func @transform_14(%arg0: i32) -> (i32, i32) {
    %c0_i32 = arith.constant 0 : i32
    %c0_i32_0 = arith.constant 0 : i32
    %c0_i32_1 = arith.constant 0 : i32
    return %c0_i32, %c0_i32_0 : i32, i32
  }
  func.func @transform_15(%arg0: i32) -> (i32, i32) {
    %c0_i32 = arith.constant 0 : i32
    %c0_i32_0 = arith.constant 0 : i32
    %c0_i32_1 = arith.constant 0 : i32
    return %c0_i32, %c0_i32_0 : i32, i32
  }
  func.func @transform_16(%arg0: i32) -> (i32, i32) {
    %c0_i32 = arith.constant 0 : i32
    %c0_i32_0 = arith.constant 0 : i32
    %c0_i32_1 = arith.constant 0 : i32
    return %c0_i32, %c0_i32_0 : i32, i32
  }
  func.func @transform_17(%arg0: i32) -> (i32, i32) {
    %c0_i32 = arith.constant 0 : i32
    %c0_i32_0 = arith.constant 0 : i32
    %c0_i32_1 = arith.constant 0 : i32
    return %c0_i32, %c0_i32_0 : i32, i32
  }
  func.func @transform_18(%arg0: i32) -> (i32, i32) {
    %c0_i32 = arith.constant 0 : i32
    %c0_i32_0 = arith.constant 0 : i32
    %c0_i32_1 = arith.constant 0 : i32
    return %c0_i32, %c0_i32_0 : i32, i32
  }
  func.func @transform_19(%arg0: i32) -> (i32, i32) {
    %c0_i32 = arith.constant 0 : i32
    %c0_i32_0 = arith.constant 0 : i32
    %c0_i32_1 = arith.constant 0 : i32
    return %c0_i32, %c0_i32_0 : i32, i32
  }
}

</mosaic_0001>

<llo_original>
// kernel: _lambda_.1
$region0: #{_lambda_.1}
  #allocation0 [shape = 'u32[]', space=smem, size = 0x4, offset = 0x4, fixed_abs, tag = 'smem constant byte address 0x4 - core index']
  #allocation1 [shape = 'u32[144,128]{1,0:T(1,128)}', space=vmem, size = 0x12000, scoped, tag = 'internal scratch']
  %s0 = inlined_call_operand.vmem [shape: f32[16,16,8], index: 0, kind: input, shape index: {}]
  %s1 = inlined_call_operand.hbm [shape: f32[72,64], index: 1, kind: input, shape index: {}]
  %s2 = inlined_call_operand.vmem [shape: f32[1,64], index: 2, kind: input, shape index: {}, may-alias: {2,4,6,8,10,12,14,16}]
  %s3 = inlined_call_operand.vmem [shape: f32[1,64], index: 3, kind: input, shape index: {}, may-alias: {3,7,11}]
  %s4 = inlined_call_operand.vmem [shape: f32[1,64], index: 4, kind: input, shape index: {}, may-alias: {2,4,6,8,10,12,14,16}]
  %s5 = inlined_call_operand.hbm [shape: f32[576,64], index: 5, kind: input, shape index: {}]
  %s6 = inlined_call_operand.vmem [shape: f32[1,64], index: 6, kind: input, shape index: {}, may-alias: {2,4,6,8,10,12,14,16}]
  %s7 = inlined_call_operand.vmem [shape: f32[1,64], index: 7, kind: input, shape index: {}, may-alias: {3,7,11}]
  %s8 = inlined_call_operand.vmem [shape: f32[1,64], index: 8, kind: input, shape index: {}, may-alias: {2,4,6,8,10,12,14,16}]
  %s9 = inlined_call_operand.vmem [shape: f32[576,64], index: 9, kind: input, shape index: {}]
  %s10 = inlined_call_operand.vmem [shape: f32[1,64], index: 10, kind: input, shape index: {}, may-alias: {2,4,6,8,10,12,14,16}]
  %s11 = inlined_call_operand.vmem [shape: f32[1,64], index: 11, kind: input, shape index: {}, may-alias: {3,7,11}]
  %s12 = inlined_call_operand.vmem [shape: f32[1,64], index: 12, kind: input, shape index: {}, may-alias: {2,4,6,8,10,12,14,16}]
  %s13 = inlined_call_operand.vmem [shape: f32[256,64], index: 13, kind: input, shape index: {}]
  %s14 = inlined_call_operand.vmem [shape: f32[1,64], index: 14, kind: input, shape index: {}, may-alias: {2,4,6,8,10,12,14,16}]
  %s15 = inlined_call_operand.vmem [shape: f32[64,64], index: 15, kind: input, shape index: {}]
  %s16 = inlined_call_operand.vmem [shape: f32[1,64], index: 16, kind: input, shape index: {}, may-alias: {2,4,6,8,10,12,14,16}]
  %s17 = inlined_call_operand.hbm [shape: f32[64,768], index: 17, kind: input, shape index: {}]
  %s18 = inlined_call_operand.vmem [shape: f32[1,768], index: 18, kind: input, shape index: {}]
  %s19 = inlined_call_operand.vmem [shape: f32[1,768], index: 19, kind: output, shape index: {}]
  %s20 = sld [smem:[#allocation0]]
  $region98: #{_lambda_.1} parent=0
    _
  %s22 = ssub.s32 1, %s20
  %s23 = scalar_select 0, %s22, %s20
  $region1: #{_lambda_.1} parent=0
    #allocation2 [shape = 'u8[36864]{0}', space=vmem, size = 0x9000, scoped, tag = 'input window, operand 1, single buffered']
    #allocation3 [shape = 's32[1]{0}', space=sflag, size = 0x4, scoped, tag = 'scoped memory for _lambda_.1']
    #allocation4 [shape = 'u8[294912]{0}', space=vmem, size = 0x48000, scoped, tag = 'input window, operand 5, single buffered']
    #allocation5 [shape = 's32[1]{0}', space=sflag, size = 0x4, scoped, tag = 'scoped memory for _lambda_.1']
    #allocation6 [shape = 'u8[196608]{0}', space=vmem, size = 0x30000, scoped, tag = 'input window, operand 17, single buffered']
    %24 = vsyncpa [#allocation3], 0
    %25 = vsyncpa [#allocation5], 0
    // Predicated region
    $region2: #{_lambda_.1} parent=1 // pred_check
      _
    $region3: #{_lambda_.1} parent=1 // pred_check_branch
      %27 = sbr.rel (0) target = $region5
    $region4: #{_lambda_.1} parent=1 // pred_region
      _
    $region5: #{_lambda_.1} parent=1 // pred_fallthru
      _
    // Predicated region
    $region6: #{_lambda_.1} parent=1 // pred_check
      _
    $region7: #{_lambda_.1} parent=1 // pred_check_branch
      %29 = sbr.rel (0) target = $region9
    $region8: #{_lambda_.1} parent=1 // pred_region
      %s31 = ssub.s32 1152, 1152
      %32 = vsyncadd [#allocation3], %s31
      %s33 = sshll.u32 [#allocation2], 4
      %s34 = int_to_ptr.vmem [resolvable:$true] %s33
      %39 = dma.hbm_to_vmem [thread:$0]  %s1, 1152, %s34, [#allocation3], 128, 128, 8
    $region9: #{_lambda_.1} parent=1 // pred_fallthru
      _
    // Predicated region
    $region10: #{_lambda_.1} parent=1 // pred_check
      _
    $region11: #{_lambda_.1} parent=1 // pred_check_branch
      %41 = sbr.rel (0) target = $region13
    $region12: #{_lambda_.1} parent=1 // pred_region
      _
    $region13: #{_lambda_.1} parent=1 // pred_fallthru
      _
    // Predicated region
    $region14: #{_lambda_.1} parent=1 // pred_check
      _
    $region15: #{_lambda_.1} parent=1 // pred_check_branch
      %43 = sbr.rel (0) target = $region17
    $region16: #{_lambda_.1} parent=1 // pred_region
      _
    $region17: #{_lambda_.1} parent=1 // pred_fallthru
      _
    // Predicated region
    $region18: #{_lambda_.1} parent=1 // pred_check
      _
    $region19: #{_lambda_.1} parent=1 // pred_check_branch
      %45 = sbr.rel (0) target = $region21
    $region20: #{_lambda_.1} parent=1 // pred_region
      _
    $region21: #{_lambda_.1} parent=1 // pred_fallthru
      _
    // Predicated region
    $region22: #{_lambda_.1} parent=1 // pred_check
      _
    $region23: #{_lambda_.1} parent=1 // pred_check_branch
      %47 = sbr.rel (0) target = $region25
    $region24: #{_lambda_.1} parent=1 // pred_region
      %s49 = ssub.s32 9216, 9216
      %50 = vsyncadd [#allocation5], %s49
      %s51 = sshll.u32 [#allocation4], 4
      %s52 = int_to_ptr.vmem [resolvable:$true] %s51
      %57 = dma.hbm_to_vmem [thread:$0]  %s5, 9216, %s52, [#allocation5], 128, 128, 8
    $region25: #{_lambda_.1} parent=1 // pred_fallthru
      _
    // Predicated region
    $region26: #{_lambda_.1} parent=1 // pred_check
      _
    $region27: #{_lambda_.1} parent=1 // pred_check_branch
      %59 = sbr.rel (0) target = $region29
    $region28: #{_lambda_.1} parent=1 // pred_region
      _
    $region29: #{_lambda_.1} parent=1 // pred_fallthru
      _
    // Predicated region
    $region30: #{_lambda_.1} parent=1 // pred_check
      _
    $region31: #{_lambda_.1} parent=1 // pred_check_branch
      %61 = sbr.rel (0) target = $region33
    $region32: #{_lambda_.1} parent=1 // pred_region
      _
    $region33: #{_lambda_.1} parent=1 // pred_fallthru
      _
    // Predicated region
    $region34: #{_lambda_.1} parent=1 // pred_check
      _
    $region35: #{_lambda_.1} parent=1 // pred_check_branch
      %63 = sbr.rel (0) target = $region37
    $region36: #{_lambda_.1} parent=1 // pred_region
      _
    $region37: #{_lambda_.1} parent=1 // pred_fallthru
      _
    // Predicated region
    $region38: #{_lambda_.1} parent=1 // pred_check
      _
    $region39: #{_lambda_.1} parent=1 // pred_check_branch
      %65 = sbr.rel (0) target = $region41
    $region40: #{_lambda_.1} parent=1 // pred_region
      _
    $region41: #{_lambda_.1} parent=1 // pred_fallthru
      _
    // Predicated region
    $region42: #{_lambda_.1} parent=1 // pred_check
      _
    $region43: #{_lambda_.1} parent=1 // pred_check_branch
      %67 = sbr.rel (0) target = $region45
    $region44: #{_lambda_.1} parent=1 // pred_region
      _
    $region45: #{_lambda_.1} parent=1 // pred_fallthru
      _
    // Predicated region
    $region46: #{_lambda_.1} parent=1 // pred_check
      _
    $region47: #{_lambda_.1} parent=1 // pred_check_branch
      %69 = sbr.rel (0) target = $region49
    $region48: #{_lambda_.1} parent=1 // pred_region
      _
    $region49: #{_lambda_.1} parent=1 // pred_fallthru
      _
    // Predicated region
    $region50: #{_lambda_.1} parent=1 // pred_check
      _
    $region51: #{_lambda_.1} parent=1 // pred_check_branch
      %71 = sbr.rel (0) target = $region53
    $region52: #{_lambda_.1} parent=1 // pred_region
      _
    $region53: #{_lambda_.1} parent=1 // pred_fallthru
      _
    // Predicated region
    $region54: #{_lambda_.1} parent=1 // pred_check
      _
    $region55: #{_lambda_.1} parent=1 // pred_check_branch
      %73 = sbr.rel (0) target = $region57
    $region56: #{_lambda_.1} parent=1 // pred_region
      _
    $region57: #{_lambda_.1} parent=1 // pred_fallthru
      _
    // Predicated region
    $region58: #{_lambda_.1} parent=1 // pred_check
      _
    $region59: #{_lambda_.1} parent=1 // pred_check_branch
      %75 = sbr.rel (0) target = $region61
    $region60: #{_lambda_.1} parent=1 // pred_region
      _
    $region61: #{_lambda_.1} parent=1 // pred_fallthru
      _
    // Predicated region
    $region62: #{_lambda_.1} parent=1 // pred_check
      _
    $region63: #{_lambda_.1} parent=1 // pred_check_branch
      %77 = sbr.rel (0) target = $region65
    $region64: #{_lambda_.1} parent=1 // pred_region
      _
    $region65: #{_lambda_.1} parent=1 // pred_fallthru
      _
    // Predicated region
    $region66: #{_lambda_.1} parent=1 // pred_check
      _
    $region67: #{_lambda_.1} parent=1 // pred_check_branch
      %79 = sbr.rel (0) target = $region69
    $region68: #{_lambda_.1} parent=1 // pred_region
      _
    $region69: #{_lambda_.1} parent=1 // pred_fallthru
      _
    // Predicated region
    $region70: #{_lambda_.1} parent=1 // pred_check
      _
    $region71: #{_lambda_.1} parent=1 // pred_check_branch
      %81 = sbr.rel (0) target = $region73
    $region72: #{_lambda_.1} parent=1 // pred_region
      %s83 = ssub.s32 6144, 6144
      %84 = vsyncadd [#allocation5], %s83
      %s85 = sshll.u32 [#allocation6], 4
      %s86 = int_to_ptr.vmem [resolvable:$true] %s85
      %91 = dma.hbm_to_vmem [thread:$0]  %s17, 6144, %s86, [#allocation5], 768, 768, 48
    $region73: #{_lambda_.1} parent=1 // pred_fallthru
      _
    // Predicated region
    $region74: #{_lambda_.1} parent=1 // pred_check
      _
    $region75: #{_lambda_.1} parent=1 // pred_check_branch
      %93 = sbr.rel (0) target = $region77
    $region76: #{_lambda_.1} parent=1 // pred_region
      _
    $region77: #{_lambda_.1} parent=1 // pred_fallthru
      _
    // Predicated region
    $region78: #{_lambda_.1} parent=1 // pred_check
      _
    $region79: #{_lambda_.1} parent=1 // pred_check_branch
      %95 = sbr.rel (0) target = $region81
    $region80: #{_lambda_.1} parent=1 // pred_region
      %96 = dma.done [#allocation3], 1152
    $region81: #{_lambda_.1} parent=1 // pred_fallthru
      _
    // Predicated region
    $region82: #{_lambda_.1} parent=1 // pred_check
      _
    $region83: #{_lambda_.1} parent=1 // pred_check_branch
      %98 = sbr.rel (0) target = $region85
    $region84: #{_lambda_.1} parent=1 // pred_region
      %99 = dma.done [#allocation5], 9216
    $region85: #{_lambda_.1} parent=1 // pred_fallthru
      _
    // Predicated region
    $region86: #{_lambda_.1} parent=1 // pred_check
      _
    $region87: #{_lambda_.1} parent=1 // pred_check_branch
      %101 = sbr.rel (0) target = $region89
    $region88: #{_lambda_.1} parent=1 // pred_region
      %102 = dma.done [#allocation5], 6144
    $region89: #{_lambda_.1} parent=1 // pred_fallthru
      _
    %v103 = vld [vmem:[%s0] sm:$0xff]
    %v104 = vld [vmem:[%s0 + $0x8] sm:$0xff]
    %v105 = vld [vmem:[%s0 + $0x10] sm:$0xff]
    %v106 = vld [vmem:[%s0 + $0x18] sm:$0xff]
    %v107 = vld [vmem:[%s0 + $0x20] sm:$0xff]
    %v108 = vld [vmem:[%s0 + $0x28] sm:$0xff]
    %v109 = vld [vmem:[%s0 + $0x30] sm:$0xff]
    %v110 = vld [vmem:[%s0 + $0x38] sm:$0xff]
    %v111 = vld [vmem:[%s0 + $0x40] sm:$0xff]
    %v112 = vld [vmem:[%s0 + $0x48] sm:$0xff]
    %v113 = vld [vmem:[%s0 + $0x50] sm:$0xff]
    %v114 = vld [vmem:[%s0 + $0x58] sm:$0xff]
    %v115 = vld [vmem:[%s0 + $0x60] sm:$0xff]
    %v116 = vld [vmem:[%s0 + $0x68] sm:$0xff]
    %v117 = vld [vmem:[%s0 + $0x70] sm:$0xff]
    %v118 = vld [vmem:[%s0 + $0x78] sm:$0xff]
    %v119 = vld [vmem:[%s0 + $0x80] sm:$0xff]
    %v120 = vld [vmem:[%s0 + $0x88] sm:$0xff]
    %v121 = vld [vmem:[%s0 + $0x90] sm:$0xff]
    %v122 = vld [vmem:[%s0 + $0x98] sm:$0xff]
    %v123 = vld [vmem:[%s0 + $0xa0] sm:$0xff]
    %v124 = vld [vmem:[%s0 + $0xa8] sm:$0xff]
    %v125 = vld [vmem:[%s0 + $0xb0] sm:$0xff]
    %v126 = vld [vmem:[%s0 + $0xb8] sm:$0xff]
    %v127 = vld [vmem:[%s0 + $0xc0] sm:$0xff]
    %v128 = vld [vmem:[%s0 + $0xc8] sm:$0xff]
    %v129 = vld [vmem:[%s0 + $0xd0] sm:$0xff]
    %v130 = vld [vmem:[%s0 + $0xd8] sm:$0xff]
    %v131 = vld [vmem:[%s0 + $0xe0] sm:$0xff]
    %v132 = vld [vmem:[%s0 + $0xe8] sm:$0xff]
    %v133 = vld [vmem:[%s0 + $0xf0] sm:$0xff]
    %v134 = vld [vmem:[%s0 + $0xf8] sm:$0xff]
    %v135 = vld [vmem:[#allocation2] sm:$0xff]
    %v136 = vld [vmem:[#allocation2 + $0x8] sm:$0xff]
    %v137 = vld [vmem:[#allocation2 + $0x10] sm:$0xff]
    %v138 = vld [vmem:[#allocation2 + $0x18] sm:$0xff]
    %v139 = vld [vmem:[#allocation2 + $0x20] sm:$0xff]
    %v140 = vld [vmem:[#allocation2 + $0x28] sm:$0xff]
    %v141 = vld [vmem:[#allocation2 + $0x30] sm:$0xff]
    %v142 = vld [vmem:[#allocation2 + $0x38] sm:$0xff]
    %v143 = vld [vmem:[#allocation2 + $0x40] sm:$0xff]
    %v144 = vld [vmem:[%s2] sm:$0x1]
    %v145 = vld [vmem:[%s3] sm:$0x1]
    %v146 = vld [vmem:[%s4] sm:$0x1]
    %vm180 = vcmask 1040384
    %v181 = vrot.slane 0.0, 7
    %v182 = vsel %vm180, %v181, %v181
    %v183 = vrot.slane %v103, 7
    %v184 = vrot.slane %v104, 7
    %v185 = vsel %vm180, %v183, %v184
    %v186 = vrot.slane %v105, 7
    %v187 = vrot.slane %v106, 7
    %v188 = vsel %vm180, %v186, %v187
    %v189 = vrot.slane %v107, 7
    %v190 = vrot.slane %v108, 7
    %v191 = vsel %vm180, %v189, %v190
    %v192 = vrot.slane %v109, 7
    %v193 = vrot.slane %v110, 7
    %v194 = vsel %vm180, %v192, %v193
    %v195 = vrot.slane %v111, 7
    %v196 = vrot.slane %v112, 7
    %v197 = vsel %vm180, %v195, %v196
    %v198 = vrot.slane %v113, 7
    %v199 = vrot.slane %v114, 7
    %v200 = vsel %vm180, %v198, %v199
    %v201 = vrot.slane %v115, 7
    %v202 = vrot.slane %v116, 7
    %v203 = vsel %vm180, %v201, %v202
    %v204 = vrot.slane %v117, 7
    %v205 = vrot.slane %v118, 7
    %v206 = vsel %vm180, %v204, %v205
    %v207 = vrot.slane %v119, 7
    %v208 = vrot.slane %v120, 7
    %v209 = vsel %vm180, %v207, %v208
    %v210 = vrot.slane %v121, 7
    %v211 = vrot.slane %v122, 7
    %v212 = vsel %vm180, %v210, %v211
    %v213 = vrot.slane %v123, 7
    %v214 = vrot.slane %v124, 7
    %v215 = vsel %vm180, %v213, %v214
    %v216 = vrot.slane %v125, 7
    %v217 = vrot.slane %v126, 7
    %v218 = vsel %vm180, %v216, %v217
    %v219 = vrot.slane %v127, 7
    %v220 = vrot.slane %v128, 7
    %v221 = vsel %vm180, %v219, %v220
    %v222 = vrot.slane %v129, 7
    %v223 = vrot.slane %v130, 7
    %v224 = vsel %vm180, %v222, %v223
    %v225 = vrot.slane %v131, 7
    %v226 = vrot.slane %v132, 7
    %v227 = vsel %vm180, %v225, %v226
    %v228 = vrot.slane %v133, 7
    %v229 = vrot.slane %v134, 7
    %v230 = vsel %vm180, %v228, %v229
    %v280 = vsel %vm180, 0.0, %v181
    %v281 = vsel %vm180, 0.0, %v183
    %v282 = vsel %vm180, 0.0, %v186
    %v283 = vsel %vm180, 0.0, %v189
    %v284 = vsel %vm180, 0.0, %v192
    %v285 = vsel %vm180, 0.0, %v195
    %v286 = vsel %vm180, 0.0, %v198
    %v287 = vsel %vm180, 0.0, %v201
    %v288 = vsel %vm180, 0.0, %v204
    %v289 = vsel %vm180, 0.0, %v207
    %v290 = vsel %vm180, 0.0, %v210
    %v291 = vsel %vm180, 0.0, %v213
    %v292 = vsel %vm180, 0.0, %v216
    %v293 = vsel %vm180, 0.0, %v219
    %v294 = vsel %vm180, 0.0, %v222
    %v295 = vsel %vm180, 0.0, %v225
    %v296 = vsel %vm180, 0.0, %v228
    %v297 = vsel %vm180, %v181, 0.0
    %v298 = vsel %vm180, %v184, 0.0
    %v299 = vsel %vm180, %v187, 0.0
    %v300 = vsel %vm180, %v190, 0.0
    %v301 = vsel %vm180, %v193, 0.0
    %v302 = vsel %vm180, %v196, 0.0
    %v303 = vsel %vm180, %v199, 0.0
    %v304 = vsel %vm180, %v202, 0.0
    %v305 = vsel %vm180, %v205, 0.0
    %v306 = vsel %vm180, %v208, 0.0
    %v307 = vsel %vm180, %v211, 0.0
    %v308 = vsel %vm180, %v214, 0.0
    %v309 = vsel %vm180, %v217, 0.0
    %v310 = vsel %vm180, %v220, 0.0
    %v311 = vsel %vm180, %v223, 0.0
    %v312 = vsel %vm180, %v226, 0.0
    %v313 = vsel %vm180, %v229, 0.0
    %vm346 = vcmask 1046528
    %v347 = vrot.slane %v280, 1
    %v348 = vrot.slane %v182, 1
    %v349 = vsel %vm346, %v347, %v348
    %v350 = vrot.slane %v297, 1
    %v351 = vsel %vm346, %v348, %v350
    %v352 = vrot.slane %v281, 1
    %v353 = vrot.slane %v185, 1
    %v354 = vsel %vm346, %v352, %v353
    %v355 = vrot.slane %v298, 1
    %v356 = vsel %vm346, %v353, %v355
    %v357 = vrot.slane %v282, 1
    %v358 = vrot.slane %v188, 1
    %v359 = vsel %vm346, %v357, %v358
    %v360 = vrot.slane %v299, 1
    %v361 = vsel %vm346, %v358, %v360
    %v362 = vrot.slane %v283, 1
    %v363 = vrot.slane %v191, 1
    %v364 = vsel %vm346, %v362, %v363
    %v365 = vrot.slane %v300, 1
    %v366 = vsel %vm346, %v363, %v365
    %v367 = vrot.slane %v284, 1
    %v368 = vrot.slane %v194, 1
    %v369 = vsel %vm346, %v367, %v368
    %v370 = vrot.slane %v301, 1
    %v371 = vsel %vm346, %v368, %v370
    %v372 = vrot.slane %v285, 1
    %v373 = vrot.slane %v197, 1
    %v374 = vsel %vm346, %v372, %v373
    %v375 = vrot.slane %v302, 1
    %v376 = vsel %vm346, %v373, %v375
    %v377 = vrot.slane %v286, 1
    %v378 = vrot.slane %v200, 1
    %v379 = vsel %vm346, %v377, %v378
    %v380 = vrot.slane %v303, 1
    %v381 = vsel %vm346, %v378, %v380
    %v382 = vrot.slane %v287, 1
    %v383 = vrot.slane %v203, 1
    %v384 = vsel %vm346, %v382, %v383
    %v385 = vrot.slane %v304, 1
    %v386 = vsel %vm346, %v383, %v385
    %v387 = vrot.slane %v288, 1
    %v388 = vrot.slane %v206, 1
    %v389 = vsel %vm346, %v387, %v388
    %v390 = vrot.slane %v305, 1
    %v391 = vsel %vm346, %v388, %v390
    %v392 = vrot.slane %v289, 1
    %v393 = vrot.slane %v209, 1
    %v394 = vsel %vm346, %v392, %v393
    %v395 = vrot.slane %v306, 1
    %v396 = vsel %vm346, %v393, %v395
    %v397 = vrot.slane %v290, 1
    %v398 = vrot.slane %v212, 1
    %v399 = vsel %vm346, %v397, %v398
    %v400 = vrot.slane %v307, 1
    %v401 = vsel %vm346, %v398, %v400
    %v402 = vrot.slane %v291, 1
    %v403 = vrot.slane %v215, 1
    %v404 = vsel %vm346, %v402, %v403
    %v405 = vrot.slane %v308, 1
    %v406 = vsel %vm346, %v403, %v405
    %v407 = vrot.slane %v292, 1
    %v408 = vrot.slane %v218, 1
    %v409 = vsel %vm346, %v407, %v408
    %v410 = vrot.slane %v309, 1
    %v411 = vsel %vm346, %v408, %v410
    %v412 = vrot.slane %v293, 1
    %v413 = vrot.slane %v221, 1
    %v414 = vsel %vm346, %v412, %v413
    %v415 = vrot.slane %v310, 1
    %v416 = vsel %vm346, %v413, %v415
    %v417 = vrot.slane %v294, 1
    %v418 = vrot.slane %v224, 1
    %v419 = vsel %vm346, %v417, %v418
    %v420 = vrot.slane %v311, 1
    %v421 = vsel %vm346, %v418, %v420
    %v422 = vrot.slane %v295, 1
    %v423 = vrot.slane %v227, 1
    %v424 = vsel %vm346, %v422, %v423
    %v425 = vrot.slane %v312, 1
    %v426 = vsel %vm346, %v423, %v425
    %427 = vrot.lane.b32.xlu0 %v349, 8
    %v428 = vpop.permute.xlu0 %427
    %429 = vrot.lane.b32.xlu0 %v351, 8
    %v430 = vpop.permute.xlu0 %429
    %431 = vrot.lane.b32.xlu0 %v354, 8
    %v432 = vpop.permute.xlu0 %431
    %433 = vrot.lane.b32.xlu0 %v356, 8
    %v434 = vpop.permute.xlu0 %433
    %435 = vrot.lane.b32.xlu0 %v359, 8
    %v436 = vpop.permute.xlu0 %435
    %437 = vrot.lane.b32.xlu0 %v361, 8
    %v438 = vpop.permute.xlu0 %437
    %439 = vrot.lane.b32.xlu0 %v364, 8
    %v440 = vpop.permute.xlu0 %439
    %441 = vrot.lane.b32.xlu0 %v366, 8
    %v442 = vpop.permute.xlu0 %441
    %443 = vrot.lane.b32.xlu0 %v369, 8
    %v444 = vpop.permute.xlu0 %443
    %445 = vrot.lane.b32.xlu0 %v371, 8
    %v446 = vpop.permute.xlu0 %445
    %447 = vrot.lane.b32.xlu0 %v374, 8
    %v448 = vpop.permute.xlu0 %447
    %449 = vrot.lane.b32.xlu0 %v376, 8
    %v450 = vpop.permute.xlu0 %449
    %451 = vrot.lane.b32.xlu0 %v379, 8
    %v452 = vpop.permute.xlu0 %451
    %453 = vrot.lane.b32.xlu0 %v381, 8
    %v454 = vpop.permute.xlu0 %453
    %455 = vrot.lane.b32.xlu0 %v384, 8
    %v456 = vpop.permute.xlu0 %455
    %457 = vrot.lane.b32.xlu0 %v386, 8
    %v458 = vpop.permute.xlu0 %457
    %459 = vrot.lane.b32.xlu0 %v389, 8
    %v460 = vpop.permute.xlu0 %459
    %461 = vrot.lane.b32.xlu0 %v391, 8
    %v462 = vpop.permute.xlu0 %461
    %463 = vrot.lane.b32.xlu0 %v394, 8
    %v464 = vpop.permute.xlu0 %463
    %465 = vrot.lane.b32.xlu0 %v396, 8
    %v466 = vpop.permute.xlu0 %465
    %467 = vrot.lane.b32.xlu0 %v399, 8
    %v468 = vpop.permute.xlu0 %467
    %469 = vrot.lane.b32.xlu0 %v401, 8
    %v470 = vpop.permute.xlu0 %469
    %471 = vrot.lane.b32.xlu0 %v404, 8
    %v472 = vpop.permute.xlu0 %471
    %473 = vrot.lane.b32.xlu0 %v406, 8
    %v474 = vpop.permute.xlu0 %473
    %475 = vrot.lane.b32.xlu0 %v409, 8
    %v476 = vpop.permute.xlu0 %475
    %477 = vrot.lane.b32.xlu0 %v411, 8
    %v478 = vpop.permute.xlu0 %477
    %479 = vrot.lane.b32.xlu0 %v414, 8
    %v480 = vpop.permute.xlu0 %479
    %481 = vrot.lane.b32.xlu0 %v416, 8
    %v482 = vpop.permute.xlu0 %481
    %483 = vrot.lane.b32.xlu0 %v419, 8
    %v484 = vpop.permute.xlu0 %483
    %485 = vrot.lane.b32.xlu0 %v421, 8
    %v486 = vpop.permute.xlu0 %485
    %487 = vrot.lane.b32.xlu0 %v424, 8
    %v488 = vpop.permute.xlu0 %487
    %489 = vrot.lane.b32.xlu0 %v426, 8
    %v490 = vpop.permute.xlu0 %489
    %vm523 = vcmask 1045504
    %v524 = vrot.slane %v280, 2
    %v525 = vrot.slane %v182, 2
    %v526 = vsel %vm523, %v524, %v525
    %v527 = vrot.slane %v297, 2
    %v528 = vsel %vm523, %v525, %v527
    %v529 = vrot.slane %v281, 2
    %v530 = vrot.slane %v185, 2
    %v531 = vsel %vm523, %v529, %v530
    %v532 = vrot.slane %v298, 2
    %v533 = vsel %vm523, %v530, %v532
    %v534 = vrot.slane %v282, 2
    %v535 = vrot.slane %v188, 2
    %v536 = vsel %vm523, %v534, %v535
    %v537 = vrot.slane %v299, 2
    %v538 = vsel %vm523, %v535, %v537
    %v539 = vrot.slane %v283, 2
    %v540 = vrot.slane %v191, 2
    %v541 = vsel %vm523, %v539, %v540
    %v542 = vrot.slane %v300, 2
    %v543 = vsel %vm523, %v540, %v542
    %v544 = vrot.slane %v284, 2
    %v545 = vrot.slane %v194, 2
    %v546 = vsel %vm523, %v544, %v545
    %v547 = vrot.slane %v301, 2
    %v548 = vsel %vm523, %v545, %v547
    %v549 = vrot.slane %v285, 2
    %v550 = vrot.slane %v197, 2
    %v551 = vsel %vm523, %v549, %v550
    %v552 = vrot.slane %v302, 2
    %v553 = vsel %vm523, %v550, %v552
    %v554 = vrot.slane %v286, 2
    %v555 = vrot.slane %v200, 2
    %v556 = vsel %vm523, %v554, %v555
    %v557 = vrot.slane %v303, 2
    %v558 = vsel %vm523, %v555, %v557
    %v559 = vrot.slane %v287, 2
    %v560 = vrot.slane %v203, 2
    %v561 = vsel %vm523, %v559, %v560
    %v562 = vrot.slane %v304, 2
    %v563 = vsel %vm523, %v560, %v562
    %v564 = vrot.slane %v288, 2
    %v565 = vrot.slane %v206, 2
    %v566 = vsel %vm523, %v564, %v565
    %v567 = vrot.slane %v305, 2
    %v568 = vsel %vm523, %v565, %v567
    %v569 = vrot.slane %v289, 2
    %v570 = vrot.slane %v209, 2
    %v571 = vsel %vm523, %v569, %v570
    %v572 = vrot.slane %v306, 2
    %v573 = vsel %vm523, %v570, %v572
    %v574 = vrot.slane %v290, 2
    %v575 = vrot.slane %v212, 2
    %v576 = vsel %vm523, %v574, %v575
    %v577 = vrot.slane %v307, 2
    %v578 = vsel %vm523, %v575, %v577
    %v579 = vrot.slane %v291, 2
    %v580 = vrot.slane %v215, 2
    %v581 = vsel %vm523, %v579, %v580
    %v582 = vrot.slane %v308, 2
    %v583 = vsel %vm523, %v580, %v582
    %v584 = vrot.slane %v292, 2
    %v585 = vrot.slane %v218, 2
    %v586 = vsel %vm523, %v584, %v585
    %v587 = vrot.slane %v309, 2
    %v588 = vsel %vm523, %v585, %v587
    %v589 = vrot.slane %v293, 2
    %v590 = vrot.slane %v221, 2
    %v591 = vsel %vm523, %v589, %v590
    %v592 = vrot.slane %v310, 2
    %v593 = vsel %vm523, %v590, %v592
    %v594 = vrot.slane %v294, 2
    %v595 = vrot.slane %v224, 2
    %v596 = vsel %vm523, %v594, %v595
    %v597 = vrot.slane %v311, 2
    %v598 = vsel %vm523, %v595, %v597
    %v599 = vrot.slane %v295, 2
    %v600 = vrot.slane %v227, 2
    %v601 = vsel %vm523, %v599, %v600
    %v602 = vrot.slane %v312, 2
    %v603 = vsel %vm523, %v600, %v602
    %604 = vrot.lane.b32.xlu0 %v526, 16
    %v605 = vpop.permute.xlu0 %604
    %606 = vrot.lane.b32.xlu0 %v528, 16
    %v607 = vpop.permute.xlu0 %606
    %608 = vrot.lane.b32.xlu0 %v531, 16
    %v609 = vpop.permute.xlu0 %608
    %610 = vrot.lane.b32.xlu0 %v533, 16
    %v611 = vpop.permute.xlu0 %610
    %612 = vrot.lane.b32.xlu0 %v536, 16
    %v613 = vpop.permute.xlu0 %612
    %614 = vrot.lane.b32.xlu0 %v538, 16
    %v615 = vpop.permute.xlu0 %614
    %616 = vrot.lane.b32.xlu0 %v541, 16
    %v617 = vpop.permute.xlu0 %616
    %618 = vrot.lane.b32.xlu0 %v543, 16
    %v619 = vpop.permute.xlu0 %618
    %620 = vrot.lane.b32.xlu0 %v546, 16
    %v621 = vpop.permute.xlu0 %620
    %622 = vrot.lane.b32.xlu0 %v548, 16
    %v623 = vpop.permute.xlu0 %622
    %624 = vrot.lane.b32.xlu0 %v551, 16
    %v625 = vpop.permute.xlu0 %624
    %626 = vrot.lane.b32.xlu0 %v553, 16
    %v627 = vpop.permute.xlu0 %626
    %628 = vrot.lane.b32.xlu0 %v556, 16
    %v629 = vpop.permute.xlu0 %628
    %630 = vrot.lane.b32.xlu0 %v558, 16
    %v631 = vpop.permute.xlu0 %630
    %632 = vrot.lane.b32.xlu0 %v561, 16
    %v633 = vpop.permute.xlu0 %632
    %634 = vrot.lane.b32.xlu0 %v563, 16
    %v635 = vpop.permute.xlu0 %634
    %636 = vrot.lane.b32.xlu0 %v566, 16
    %v637 = vpop.permute.xlu0 %636
    %638 = vrot.lane.b32.xlu0 %v568, 16
    %v639 = vpop.permute.xlu0 %638
    %640 = vrot.lane.b32.xlu0 %v571, 16
    %v641 = vpop.permute.xlu0 %640
    %642 = vrot.lane.b32.xlu0 %v573, 16
    %v643 = vpop.permute.xlu0 %642
    %644 = vrot.lane.b32.xlu0 %v576, 16
    %v645 = vpop.permute.xlu0 %644
    %646 = vrot.lane.b32.xlu0 %v578, 16
    %v647 = vpop.permute.xlu0 %646
    %648 = vrot.lane.b32.xlu0 %v581, 16
    %v649 = vpop.permute.xlu0 %648
    %650 = vrot.lane.b32.xlu0 %v583, 16
    %v651 = vpop.permute.xlu0 %650
    %652 = vrot.lane.b32.xlu0 %v586, 16
    %v653 = vpop.permute.xlu0 %652
    %654 = vrot.lane.b32.xlu0 %v588, 16
    %v655 = vpop.permute.xlu0 %654
    %656 = vrot.lane.b32.xlu0 %v591, 16
    %v657 = vpop.permute.xlu0 %656
    %658 = vrot.lane.b32.xlu0 %v593, 16
    %v659 = vpop.permute.xlu0 %658
    %660 = vrot.lane.b32.xlu0 %v596, 16
    %v661 = vpop.permute.xlu0 %660
    %662 = vrot.lane.b32.xlu0 %v598, 16
    %v663 = vpop.permute.xlu0 %662
    %664 = vrot.lane.b32.xlu0 %v601, 16
    %v665 = vpop.permute.xlu0 %664
    %666 = vrot.lane.b32.xlu0 %v603, 16
    %v667 = vpop.permute.xlu0 %666
    %701 = vrot.lane.b32.xlu0 %v281, 24
    %v702 = vpop.permute.xlu0 %701
    %703 = vrot.lane.b32.xlu0 %v185, 24
    %v704 = vpop.permute.xlu0 %703
    %705 = vrot.lane.b32.xlu0 %v282, 24
    %v706 = vpop.permute.xlu0 %705
    %707 = vrot.lane.b32.xlu0 %v188, 24
    %v708 = vpop.permute.xlu0 %707
    %709 = vrot.lane.b32.xlu0 %v283, 24
    %v710 = vpop.permute.xlu0 %709
    %711 = vrot.lane.b32.xlu0 %v191, 24
    %v712 = vpop.permute.xlu0 %711
    %713 = vrot.lane.b32.xlu0 %v284, 24
    %v714 = vpop.permute.xlu0 %713
    %715 = vrot.lane.b32.xlu0 %v194, 24
    %v716 = vpop.permute.xlu0 %715
    %717 = vrot.lane.b32.xlu0 %v285, 24
    %v718 = vpop.permute.xlu0 %717
    %719 = vrot.lane.b32.xlu0 %v197, 24
    %v720 = vpop.permute.xlu0 %719
    %721 = vrot.lane.b32.xlu0 %v286, 24
    %v722 = vpop.permute.xlu0 %721
    %723 = vrot.lane.b32.xlu0 %v200, 24
    %v724 = vpop.permute.xlu0 %723
    %725 = vrot.lane.b32.xlu0 %v287, 24
    %v726 = vpop.permute.xlu0 %725
    %727 = vrot.lane.b32.xlu0 %v203, 24
    %v728 = vpop.permute.xlu0 %727
    %729 = vrot.lane.b32.xlu0 %v288, 24
    %v730 = vpop.permute.xlu0 %729
    %731 = vrot.lane.b32.xlu0 %v206, 24
    %v732 = vpop.permute.xlu0 %731
    %733 = vrot.lane.b32.xlu0 %v289, 24
    %v734 = vpop.permute.xlu0 %733
    %735 = vrot.lane.b32.xlu0 %v209, 24
    %v736 = vpop.permute.xlu0 %735
    %737 = vrot.lane.b32.xlu0 %v290, 24
    %v738 = vpop.permute.xlu0 %737
    %739 = vrot.lane.b32.xlu0 %v212, 24
    %v740 = vpop.permute.xlu0 %739
    %741 = vrot.lane.b32.xlu0 %v291, 24
    %v742 = vpop.permute.xlu0 %741
    %743 = vrot.lane.b32.xlu0 %v215, 24
    %v744 = vpop.permute.xlu0 %743
    %745 = vrot.lane.b32.xlu0 %v292, 24
    %v746 = vpop.permute.xlu0 %745
    %747 = vrot.lane.b32.xlu0 %v218, 24
    %v748 = vpop.permute.xlu0 %747
    %749 = vrot.lane.b32.xlu0 %v293, 24
    %v750 = vpop.permute.xlu0 %749
    %751 = vrot.lane.b32.xlu0 %v221, 24
    %v752 = vpop.permute.xlu0 %751
    %753 = vrot.lane.b32.xlu0 %v294, 24
    %v754 = vpop.permute.xlu0 %753
    %755 = vrot.lane.b32.xlu0 %v224, 24
    %v756 = vpop.permute.xlu0 %755
    %757 = vrot.lane.b32.xlu0 %v295, 24
    %v758 = vpop.permute.xlu0 %757
    %759 = vrot.lane.b32.xlu0 %v227, 24
    %v760 = vpop.permute.xlu0 %759
    %761 = vrot.lane.b32.xlu0 %v296, 24
    %v762 = vpop.permute.xlu0 %761
    %763 = vrot.lane.b32.xlu0 %v230, 24
    %v764 = vpop.permute.xlu0 %763
    %v798 = vrot.slane %v296, 1
    %v799 = vrot.slane %v230, 1
    %v800 = vsel %vm346, %v798, %v799
    %v801 = vrot.slane %v313, 1
    %v802 = vsel %vm346, %v799, %v801
    %803 = vrot.lane.b32.xlu0 %v354, 32
    %v804 = vpop.permute.xlu0 %803
    %805 = vrot.lane.b32.xlu0 %v356, 32
    %v806 = vpop.permute.xlu0 %805
    %807 = vrot.lane.b32.xlu0 %v359, 32
    %v808 = vpop.permute.xlu0 %807
    %809 = vrot.lane.b32.xlu0 %v361, 32
    %v810 = vpop.permute.xlu0 %809
    %811 = vrot.lane.b32.xlu0 %v364, 32
    %v812 = vpop.permute.xlu0 %811
    %813 = vrot.lane.b32.xlu0 %v366, 32
    %v814 = vpop.permute.xlu0 %813
    %815 = vrot.lane.b32.xlu0 %v369, 32
    %v816 = vpop.permute.xlu0 %815
    %817 = vrot.lane.b32.xlu0 %v371, 32
    %v818 = vpop.permute.xlu0 %817
    %819 = vrot.lane.b32.xlu0 %v374, 32
    %v820 = vpop.permute.xlu0 %819
    %821 = vrot.lane.b32.xlu0 %v376, 32
    %v822 = vpop.permute.xlu0 %821
    %823 = vrot.lane.b32.xlu0 %v379, 32
    %v824 = vpop.permute.xlu0 %823
    %825 = vrot.lane.b32.xlu0 %v381, 32
    %v826 = vpop.permute.xlu0 %825
    %827 = vrot.lane.b32.xlu0 %v384, 32
    %v828 = vpop.permute.xlu0 %827
    %829 = vrot.lane.b32.xlu0 %v386, 32
    %v830 = vpop.permute.xlu0 %829
    %831 = vrot.lane.b32.xlu0 %v389, 32
    %v832 = vpop.permute.xlu0 %831
    %833 = vrot.lane.b32.xlu0 %v391, 32
    %v834 = vpop.permute.xlu0 %833
    %835 = vrot.lane.b32.xlu0 %v394, 32
    %v836 = vpop.permute.xlu0 %835
    %837 = vrot.lane.b32.xlu0 %v396, 32
    %v838 = vpop.permute.xlu0 %837
    %839 = vrot.lane.b32.xlu0 %v399, 32
    %v840 = vpop.permute.xlu0 %839
    %841 = vrot.lane.b32.xlu0 %v401, 32
    %v842 = vpop.permute.xlu0 %841
    %843 = vrot.lane.b32.xlu0 %v404, 32
    %v844 = vpop.permute.xlu0 %843
    %845 = vrot.lane.b32.xlu0 %v406, 32
    %v846 = vpop.permute.xlu0 %845
    %847 = vrot.lane.b32.xlu0 %v409, 32
    %v848 = vpop.permute.xlu0 %847
    %849 = vrot.lane.b32.xlu0 %v411, 32
    %v850 = vpop.permute.xlu0 %849
    %851 = vrot.lane.b32.xlu0 %v414, 32
    %v852 = vpop.permute.xlu0 %851
    %853 = vrot.lane.b32.xlu0 %v416, 32
    %v854 = vpop.permute.xlu0 %853
    %855 = vrot.lane.b32.xlu0 %v419, 32
    %v856 = vpop.permute.xlu0 %855
    %857 = vrot.lane.b32.xlu0 %v421, 32
    %v858 = vpop.permute.xlu0 %857
    %859 = vrot.lane.b32.xlu0 %v424, 32
    %v860 = vpop.permute.xlu0 %859
    %861 = vrot.lane.b32.xlu0 %v426, 32
    %v862 = vpop.permute.xlu0 %861
    %863 = vrot.lane.b32.xlu0 %v800, 32
    %v864 = vpop.permute.xlu0 %863
    %865 = vrot.lane.b32.xlu0 %v802, 32
    %v866 = vpop.permute.xlu0 %865
    %v899 = vrot.slane %v296, 2
    %v900 = vrot.slane %v230, 2
    %v901 = vsel %vm523, %v899, %v900
    %v902 = vrot.slane %v313, 2
    %v903 = vsel %vm523, %v900, %v902
    %904 = vrot.lane.b32.xlu0 %v531, 40
    %v905 = vpop.permute.xlu0 %904
    %906 = vrot.lane.b32.xlu0 %v533, 40
    %v907 = vpop.permute.xlu0 %906
    %908 = vrot.lane.b32.xlu0 %v536, 40
    %v909 = vpop.permute.xlu0 %908
    %910 = vrot.lane.b32.xlu0 %v538, 40
    %v911 = vpop.permute.xlu0 %910
    %912 = vrot.lane.b32.xlu0 %v541, 40
    %v913 = vpop.permute.xlu0 %912
    %914 = vrot.lane.b32.xlu0 %v543, 40
    %v915 = vpop.permute.xlu0 %914
    %916 = vrot.lane.b32.xlu0 %v546, 40
    %v917 = vpop.permute.xlu0 %916
    %918 = vrot.lane.b32.xlu0 %v548, 40
    %v919 = vpop.permute.xlu0 %918
    %920 = vrot.lane.b32.xlu0 %v551, 40
    %v921 = vpop.permute.xlu0 %920
    %922 = vrot.lane.b32.xlu0 %v553, 40
    %v923 = vpop.permute.xlu0 %922
    %924 = vrot.lane.b32.xlu0 %v556, 40
    %v925 = vpop.permute.xlu0 %924
    %926 = vrot.lane.b32.xlu0 %v558, 40
    %v927 = vpop.permute.xlu0 %926
    %928 = vrot.lane.b32.xlu0 %v561, 40
    %v929 = vpop.permute.xlu0 %928
    %930 = vrot.lane.b32.xlu0 %v563, 40
    %v931 = vpop.permute.xlu0 %930
    %932 = vrot.lane.b32.xlu0 %v566, 40
    %v933 = vpop.permute.xlu0 %932
    %934 = vrot.lane.b32.xlu0 %v568, 40
    %v935 = vpop.permute.xlu0 %934
    %936 = vrot.lane.b32.xlu0 %v571, 40
    %v937 = vpop.permute.xlu0 %936
    %938 = vrot.lane.b32.xlu0 %v573, 40
    %v939 = vpop.permute.xlu0 %938
    %940 = vrot.lane.b32.xlu0 %v576, 40
    %v941 = vpop.permute.xlu0 %940
    %942 = vrot.lane.b32.xlu0 %v578, 40
    %v943 = vpop.permute.xlu0 %942
    %944 = vrot.lane.b32.xlu0 %v581, 40
    %v945 = vpop.permute.xlu0 %944
    %946 = vrot.lane.b32.xlu0 %v583, 40
    %v947 = vpop.permute.xlu0 %946
    %948 = vrot.lane.b32.xlu0 %v586, 40
    %v949 = vpop.permute.xlu0 %948
    %950 = vrot.lane.b32.xlu0 %v588, 40
    %v951 = vpop.permute.xlu0 %950
    %952 = vrot.lane.b32.xlu0 %v591, 40
    %v953 = vpop.permute.xlu0 %952
    %954 = vrot.lane.b32.xlu0 %v593, 40
    %v955 = vpop.permute.xlu0 %954
    %956 = vrot.lane.b32.xlu0 %v596, 40
    %v957 = vpop.permute.xlu0 %956
    %958 = vrot.lane.b32.xlu0 %v598, 40
    %v959 = vpop.permute.xlu0 %958
    %960 = vrot.lane.b32.xlu0 %v601, 40
    %v961 = vpop.permute.xlu0 %960
    %962 = vrot.lane.b32.xlu0 %v603, 40
    %v963 = vpop.permute.xlu0 %962
    %964 = vrot.lane.b32.xlu0 %v901, 40
    %v965 = vpop.permute.xlu0 %964
    %966 = vrot.lane.b32.xlu0 %v903, 40
    %v967 = vpop.permute.xlu0 %966
    %1000 = vrot.lane.b32.xlu0 %v282, 48
    %v1001 = vpop.permute.xlu0 %1000
    %1002 = vrot.lane.b32.xlu0 %v188, 48
    %v1003 = vpop.permute.xlu0 %1002
    %1004 = vrot.lane.b32.xlu0 %v283, 48
    %v1005 = vpop.permute.xlu0 %1004
    %1006 = vrot.lane.b32.xlu0 %v191, 48
    %v1007 = vpop.permute.xlu0 %1006
    %1008 = vrot.lane.b32.xlu0 %v284, 48
    %v1009 = vpop.permute.xlu0 %1008
    %1010 = vrot.lane.b32.xlu0 %v194, 48
    %v1011 = vpop.permute.xlu0 %1010
    %1012 = vrot.lane.b32.xlu0 %v285, 48
    %v1013 = vpop.permute.xlu0 %1012
    %1014 = vrot.lane.b32.xlu0 %v197, 48
    %v1015 = vpop.permute.xlu0 %1014
    %1016 = vrot.lane.b32.xlu0 %v286, 48
    %v1017 = vpop.permute.xlu0 %1016
    %1018 = vrot.lane.b32.xlu0 %v200, 48
    %v1019 = vpop.permute.xlu0 %1018
    %1020 = vrot.lane.b32.xlu0 %v287, 48
    %v1021 = vpop.permute.xlu0 %1020
    %1022 = vrot.lane.b32.xlu0 %v203, 48
    %v1023 = vpop.permute.xlu0 %1022
    %1024 = vrot.lane.b32.xlu0 %v288, 48
    %v1025 = vpop.permute.xlu0 %1024
    %1026 = vrot.lane.b32.xlu0 %v206, 48
    %v1027 = vpop.permute.xlu0 %1026
    %1028 = vrot.lane.b32.xlu0 %v289, 48
    %v1029 = vpop.permute.xlu0 %1028
    %1030 = vrot.lane.b32.xlu0 %v209, 48
    %v1031 = vpop.permute.xlu0 %1030
    %1032 = vrot.lane.b32.xlu0 %v290, 48
    %v1033 = vpop.permute.xlu0 %1032
    %1034 = vrot.lane.b32.xlu0 %v212, 48
    %v1035 = vpop.permute.xlu0 %1034
    %1036 = vrot.lane.b32.xlu0 %v291, 48
    %v1037 = vpop.permute.xlu0 %1036
    %1038 = vrot.lane.b32.xlu0 %v215, 48
    %v1039 = vpop.permute.xlu0 %1038
    %1040 = vrot.lane.b32.xlu0 %v292, 48
    %v1041 = vpop.permute.xlu0 %1040
    %1042 = vrot.lane.b32.xlu0 %v218, 48
    %v1043 = vpop.permute.xlu0 %1042
    %1044 = vrot.lane.b32.xlu0 %v293, 48
    %v1045 = vpop.permute.xlu0 %1044
    %1046 = vrot.lane.b32.xlu0 %v221, 48
    %v1047 = vpop.permute.xlu0 %1046
    %1048 = vrot.lane.b32.xlu0 %v294, 48
    %v1049 = vpop.permute.xlu0 %1048
    %1050 = vrot.lane.b32.xlu0 %v224, 48
    %v1051 = vpop.permute.xlu0 %1050
    %1052 = vrot.lane.b32.xlu0 %v295, 48
    %v1053 = vpop.permute.xlu0 %1052
    %1054 = vrot.lane.b32.xlu0 %v227, 48
    %v1055 = vpop.permute.xlu0 %1054
    %1056 = vrot.lane.b32.xlu0 %v296, 48
    %v1057 = vpop.permute.xlu0 %1056
    %1058 = vrot.lane.b32.xlu0 %v230, 48
    %v1059 = vpop.permute.xlu0 %1058
    %1060 = vrot.lane.b32.xlu0 %v280, 48
    %v1061 = vpop.permute.xlu0 %1060
    %1062 = vrot.lane.b32.xlu0 %v182, 48
    %v1063 = vpop.permute.xlu0 %1062
    %1096 = vrot.lane.b32.xlu0 %v359, 56
    %v1097 = vpop.permute.xlu0 %1096
    %1098 = vrot.lane.b32.xlu0 %v361, 56
    %v1099 = vpop.permute.xlu0 %1098
    %1100 = vrot.lane.b32.xlu0 %v364, 56
    %v1101 = vpop.permute.xlu0 %1100
    %1102 = vrot.lane.b32.xlu0 %v366, 56
    %v1103 = vpop.permute.xlu0 %1102
    %1104 = vrot.lane.b32.xlu0 %v369, 56
    %v1105 = vpop.permute.xlu0 %1104
    %1106 = vrot.lane.b32.xlu0 %v371, 56
    %v1107 = vpop.permute.xlu0 %1106
    %1108 = vrot.lane.b32.xlu0 %v374, 56
    %v1109 = vpop.permute.xlu0 %1108
    %1110 = vrot.lane.b32.xlu0 %v376, 56
    %v1111 = vpop.permute.xlu0 %1110
    %1112 = vrot.lane.b32.xlu0 %v379, 56
    %v1113 = vpop.permute.xlu0 %1112
    %1114 = vrot.lane.b32.xlu0 %v381, 56
    %v1115 = vpop.permute.xlu0 %1114
    %1116 = vrot.lane.b32.xlu0 %v384, 56
    %v1117 = vpop.permute.xlu0 %1116
    %1118 = vrot.lane.b32.xlu0 %v386, 56
    %v1119 = vpop.permute.xlu0 %1118
    %1120 = vrot.lane.b32.xlu0 %v389, 56
    %v1121 = vpop.permute.xlu0 %1120
    %1122 = vrot.lane.b32.xlu0 %v391, 56
    %v1123 = vpop.permute.xlu0 %1122
    %1124 = vrot.lane.b32.xlu0 %v394, 56
    %v1125 = vpop.permute.xlu0 %1124
    %1126 = vrot.lane.b32.xlu0 %v396, 56
    %v1127 = vpop.permute.xlu0 %1126
    %1128 = vrot.lane.b32.xlu0 %v399, 56
    %v1129 = vpop.permute.xlu0 %1128
    %1130 = vrot.lane.b32.xlu0 %v401, 56
    %v1131 = vpop.permute.xlu0 %1130
    %1132 = vrot.lane.b32.xlu0 %v404, 56
    %v1133 = vpop.permute.xlu0 %1132
    %1134 = vrot.lane.b32.xlu0 %v406, 56
    %v1135 = vpop.permute.xlu0 %1134
    %1136 = vrot.lane.b32.xlu0 %v409, 56
    %v1137 = vpop.permute.xlu0 %1136
    %1138 = vrot.lane.b32.xlu0 %v411, 56
    %v1139 = vpop.permute.xlu0 %1138
    %1140 = vrot.lane.b32.xlu0 %v414, 56
    %v1141 = vpop.permute.xlu0 %1140
    %1142 = vrot.lane.b32.xlu0 %v416, 56
    %v1143 = vpop.permute.xlu0 %1142
    %1144 = vrot.lane.b32.xlu0 %v419, 56
    %v1145 = vpop.permute.xlu0 %1144
    %1146 = vrot.lane.b32.xlu0 %v421, 56
    %v1147 = vpop.permute.xlu0 %1146
    %1148 = vrot.lane.b32.xlu0 %v424, 56
    %v1149 = vpop.permute.xlu0 %1148
    %1150 = vrot.lane.b32.xlu0 %v426, 56
    %v1151 = vpop.permute.xlu0 %1150
    %1152 = vrot.lane.b32.xlu0 %v800, 56
    %v1153 = vpop.permute.xlu0 %1152
    %1154 = vrot.lane.b32.xlu0 %v802, 56
    %v1155 = vpop.permute.xlu0 %1154
    %1156 = vrot.lane.b32.xlu0 %v349, 56
    %v1157 = vpop.permute.xlu0 %1156
    %1158 = vrot.lane.b32.xlu0 %v351, 56
    %v1159 = vpop.permute.xlu0 %1158
    %1192 = vrot.lane.b32.xlu0 %v536, 64
    %v1193 = vpop.permute.xlu0 %1192
    %1194 = vrot.lane.b32.xlu0 %v538, 64
    %v1195 = vpop.permute.xlu0 %1194
    %1196 = vrot.lane.b32.xlu0 %v541, 64
    %v1197 = vpop.permute.xlu0 %1196
    %1198 = vrot.lane.b32.xlu0 %v543, 64
    %v1199 = vpop.permute.xlu0 %1198
    %1200 = vrot.lane.b32.xlu0 %v546, 64
    %v1201 = vpop.permute.xlu0 %1200
    %1202 = vrot.lane.b32.xlu0 %v548, 64
    %v1203 = vpop.permute.xlu0 %1202
    %1204 = vrot.lane.b32.xlu0 %v551, 64
    %v1205 = vpop.permute.xlu0 %1204
    %1206 = vrot.lane.b32.xlu0 %v553, 64
    %v1207 = vpop.permute.xlu0 %1206
    %1208 = vrot.lane.b32.xlu0 %v556, 64
    %v1209 = vpop.permute.xlu0 %1208
    %1210 = vrot.lane.b32.xlu0 %v558, 64
    %v1211 = vpop.permute.xlu0 %1210
    %1212 = vrot.lane.b32.xlu0 %v561, 64
    %v1213 = vpop.permute.xlu0 %1212
    %1214 = vrot.lane.b32.xlu0 %v563, 64
    %v1215 = vpop.permute.xlu0 %1214
    %1216 = vrot.lane.b32.xlu0 %v566, 64
    %v1217 = vpop.permute.xlu0 %1216
    %1218 = vrot.lane.b32.xlu0 %v568, 64
    %v1219 = vpop.permute.xlu0 %1218
    %1220 = vrot.lane.b32.xlu0 %v571, 64
    %v1221 = vpop.permute.xlu0 %1220
    %1222 = vrot.lane.b32.xlu0 %v573, 64
    %v1223 = vpop.permute.xlu0 %1222
    %1224 = vrot.lane.b32.xlu0 %v576, 64
    %v1225 = vpop.permute.xlu0 %1224
    %1226 = vrot.lane.b32.xlu0 %v578, 64
    %v1227 = vpop.permute.xlu0 %1226
    %1228 = vrot.lane.b32.xlu0 %v581, 64
    %v1229 = vpop.permute.xlu0 %1228
    %1230 = vrot.lane.b32.xlu0 %v583, 64
    %v1231 = vpop.permute.xlu0 %1230
    %1232 = vrot.lane.b32.xlu0 %v586, 64
    %v1233 = vpop.permute.xlu0 %1232
    %1234 = vrot.lane.b32.xlu0 %v588, 64
    %v1235 = vpop.permute.xlu0 %1234
    %1236 = vrot.lane.b32.xlu0 %v591, 64
    %v1237 = vpop.permute.xlu0 %1236
    %1238 = vrot.lane.b32.xlu0 %v593, 64
    %v1239 = vpop.permute.xlu0 %1238
    %1240 = vrot.lane.b32.xlu0 %v596, 64
    %v1241 = vpop.permute.xlu0 %1240
    %1242 = vrot.lane.b32.xlu0 %v598, 64
    %v1243 = vpop.permute.xlu0 %1242
    %1244 = vrot.lane.b32.xlu0 %v601, 64
    %v1245 = vpop.permute.xlu0 %1244
    %1246 = vrot.lane.b32.xlu0 %v603, 64
    %v1247 = vpop.permute.xlu0 %1246
    %1248 = vrot.lane.b32.xlu0 %v901, 64
    %v1249 = vpop.permute.xlu0 %1248
    %1250 = vrot.lane.b32.xlu0 %v903, 64
    %v1251 = vpop.permute.xlu0 %1250
    %1252 = vrot.lane.b32.xlu0 %v526, 64
    %v1253 = vpop.permute.xlu0 %1252
    %1254 = vrot.lane.b32.xlu0 %v528, 64
    %v1255 = vpop.permute.xlu0 %1254
    %vm1288 = vcmask 64512
    %v1289 = vsel %vm1288, %v280, %v428
    %v1290 = vsel %vm1288, %v182, %v430
    %v1291 = vsel %vm1288, %v281, %v432
    %v1292 = vsel %vm1288, %v185, %v434
    %v1293 = vsel %vm1288, %v282, %v436
    %v1294 = vsel %vm1288, %v188, %v438
    %v1295 = vsel %vm1288, %v283, %v440
    %v1296 = vsel %vm1288, %v191, %v442
    %v1297 = vsel %vm1288, %v284, %v444
    %v1298 = vsel %vm1288, %v194, %v446
    %v1299 = vsel %vm1288, %v285, %v448
    %v1300 = vsel %vm1288, %v197, %v450
    %v1301 = vsel %vm1288, %v286, %v452
    %v1302 = vsel %vm1288, %v200, %v454
    %v1303 = vsel %vm1288, %v287, %v456
    %v1304 = vsel %vm1288, %v203, %v458
    %v1305 = vsel %vm1288, %v288, %v460
    %v1306 = vsel %vm1288, %v206, %v462
    %v1307 = vsel %vm1288, %v289, %v464
    %v1308 = vsel %vm1288, %v209, %v466
    %v1309 = vsel %vm1288, %v290, %v468
    %v1310 = vsel %vm1288, %v212, %v470
    %v1311 = vsel %vm1288, %v291, %v472
    %v1312 = vsel %vm1288, %v215, %v474
    %v1313 = vsel %vm1288, %v292, %v476
    %v1314 = vsel %vm1288, %v218, %v478
    %v1315 = vsel %vm1288, %v293, %v480
    %v1316 = vsel %vm1288, %v221, %v482
    %v1317 = vsel %vm1288, %v294, %v484
    %v1318 = vsel %vm1288, %v224, %v486
    %v1319 = vsel %vm1288, %v295, %v488
    %v1320 = vsel %vm1288, %v227, %v490
    %vm1321 = vcmask 130048
    %v1322 = vsel %vm1321, %v1289, %v605
    %v1323 = vsel %vm1321, %v1290, %v607
    %v1324 = vsel %vm1321, %v1291, %v609
    %v1325 = vsel %vm1321, %v1292, %v611
    %v1326 = vsel %vm1321, %v1293, %v613
    %v1327 = vsel %vm1321, %v1294, %v615
    %v1328 = vsel %vm1321, %v1295, %v617
    %v1329 = vsel %vm1321, %v1296, %v619
    %v1330 = vsel %vm1321, %v1297, %v621
    %v1331 = vsel %vm1321, %v1298, %v623
    %v1332 = vsel %vm1321, %v1299, %v625
    %v1333 = vsel %vm1321, %v1300, %v627
    %v1334 = vsel %vm1321, %v1301, %v629
    %v1335 = vsel %vm1321, %v1302, %v631
    %v1336 = vsel %vm1321, %v1303, %v633
    %v1337 = vsel %vm1321, %v1304, %v635
    %v1338 = vsel %vm1321, %v1305, %v637
    %v1339 = vsel %vm1321, %v1306, %v639
    %v1340 = vsel %vm1321, %v1307, %v641
    %v1341 = vsel %vm1321, %v1308, %v643
    %v1342 = vsel %vm1321, %v1309, %v645
    %v1343 = vsel %vm1321, %v1310, %v647
    %v1344 = vsel %vm1321, %v1311, %v649
    %v1345 = vsel %vm1321, %v1312, %v651
    %v1346 = vsel %vm1321, %v1313, %v653
    %v1347 = vsel %vm1321, %v1314, %v655
    %v1348 = vsel %vm1321, %v1315, %v657
    %v1349 = vsel %vm1321, %v1316, %v659
    %v1350 = vsel %vm1321, %v1317, %v661
    %v1351 = vsel %vm1321, %v1318, %v663
    %v1352 = vsel %vm1321, %v1319, %v665
    %v1353 = vsel %vm1321, %v1320, %v667
    %vm1354 = vcmask 195584
    %v1355 = vsel %vm1354, %v1322, %v702
    %v1356 = vsel %vm1354, %v1323, %v704
    %v1357 = vsel %vm1354, %v1324, %v706
    %v1358 = vsel %vm1354, %v1325, %v708
    %v1359 = vsel %vm1354, %v1326, %v710
    %v1360 = vsel %vm1354, %v1327, %v712
    %v1361 = vsel %vm1354, %v1328, %v714
    %v1362 = vsel %vm1354, %v1329, %v716
    %v1363 = vsel %vm1354, %v1330, %v718
    %v1364 = vsel %vm1354, %v1331, %v720
    %v1365 = vsel %vm1354, %v1332, %v722
    %v1366 = vsel %vm1354, %v1333, %v724
    %v1367 = vsel %vm1354, %v1334, %v726
    %v1368 = vsel %vm1354, %v1335, %v728
    %v1369 = vsel %vm1354, %v1336, %v730
    %v1370 = vsel %vm1354, %v1337, %v732
    %v1371 = vsel %vm1354, %v1338, %v734
    %v1372 = vsel %vm1354, %v1339, %v736
    %v1373 = vsel %vm1354, %v1340, %v738
    %v1374 = vsel %vm1354, %v1341, %v740
    %v1375 = vsel %vm1354, %v1342, %v742
    %v1376 = vsel %vm1354, %v1343, %v744
    %v1377 = vsel %vm1354, %v1344, %v746
    %v1378 = vsel %vm1354, %v1345, %v748
    %v1379 = vsel %vm1354, %v1346, %v750
    %v1380 = vsel %vm1354, %v1347, %v752
    %v1381 = vsel %vm1354, %v1348, %v754
    %v1382 = vsel %vm1354, %v1349, %v756
    %v1383 = vsel %vm1354, %v1350, %v758
    %v1384 = vsel %vm1354, %v1351, %v760
    %v1385 = vsel %vm1354, %v1352, %v762
    %v1386 = vsel %vm1354, %v1353, %v764
    %vm1387 = vcmask 261120
    %v1388 = vsel %vm1387, %v1355, %v804
    %v1389 = vsel %vm1387, %v1356, %v806
    %v1390 = vsel %vm1387, %v1357, %v808
    %v1391 = vsel %vm1387, %v1358, %v810
    %v1392 = vsel %vm1387, %v1359, %v812
    %v1393 = vsel %vm1387, %v1360, %v814
    %v1394 = vsel %vm1387, %v1361, %v816
    %v1395 = vsel %vm1387, %v1362, %v818
    %v1396 = vsel %vm1387, %v1363, %v820
    %v1397 = vsel %vm1387, %v1364, %v822
    %v1398 = vsel %vm1387, %v1365, %v824
    %v1399 = vsel %vm1387, %v1366, %v826
    %v1400 = vsel %vm1387, %v1367, %v828
    %v1401 = vsel %vm1387, %v1368, %v830
    %v1402 = vsel %vm1387, %v1369, %v832
    %v1403 = vsel %vm1387, %v1370, %v834
    %v1404 = vsel %vm1387, %v1371, %v836
    %v1405 = vsel %vm1387, %v1372, %v838
    %v1406 = vsel %vm1387, %v1373, %v840
    %v1407 = vsel %vm1387, %v1374, %v842
    %v1408 = vsel %vm1387, %v1375, %v844
    %v1409 = vsel %vm1387, %v1376, %v846
    %v1410 = vsel %vm1387, %v1377, %v848
    %v1411 = vsel %vm1387, %v1378, %v850
    %v1412 = vsel %vm1387, %v1379, %v852
    %v1413 = vsel %vm1387, %v1380, %v854
    %v1414 = vsel %vm1387, %v1381, %v856
    %v1415 = vsel %vm1387, %v1382, %v858
    %v1416 = vsel %vm1387, %v1383, %v860
    %v1417 = vsel %vm1387, %v1384, %v862
    %v1418 = vsel %vm1387, %v1385, %v864
    %v1419 = vsel %vm1387, %v1386, %v866
    %vm1420 = vcmask 326656
    %v1421 = vsel %vm1420, %v1388, %v905
    %v1422 = vsel %vm1420, %v1389, %v907
    %v1423 = vsel %vm1420, %v1390, %v909
    %v1424 = vsel %vm1420, %v1391, %v911
    %v1425 = vsel %vm1420, %v1392, %v913
    %v1426 = vsel %vm1420, %v1393, %v915
    %v1427 = vsel %vm1420, %v1394, %v917
    %v1428 = vsel %vm1420, %v1395, %v919
    %v1429 = vsel %vm1420, %v1396, %v921
    %v1430 = vsel %vm1420, %v1397, %v923
    %v1431 = vsel %vm1420, %v1398, %v925
    %v1432 = vsel %vm1420, %v1399, %v927
    %v1433 = vsel %vm1420, %v1400, %v929
    %v1434 = vsel %vm1420, %v1401, %v931
    %v1435 = vsel %vm1420, %v1402, %v933
    %v1436 = vsel %vm1420, %v1403, %v935
    %v1437 = vsel %vm1420, %v1404, %v937
    %v1438 = vsel %vm1420, %v1405, %v939
    %v1439 = vsel %vm1420, %v1406, %v941
    %v1440 = vsel %vm1420, %v1407, %v943
    %v1441 = vsel %vm1420, %v1408, %v945
    %v1442 = vsel %vm1420, %v1409, %v947
    %v1443 = vsel %vm1420, %v1410, %v949
    %v1444 = vsel %vm1420, %v1411, %v951
    %v1445 = vsel %vm1420, %v1412, %v953
    %v1446 = vsel %vm1420, %v1413, %v955
    %v1447 = vsel %vm1420, %v1414, %v957
    %v1448 = vsel %vm1420, %v1415, %v959
    %v1449 = vsel %vm1420, %v1416, %v961
    %v1450 = vsel %vm1420, %v1417, %v963
    %v1451 = vsel %vm1420, %v1418, %v965
    %v1452 = vsel %vm1420, %v1419, %v967
    %vm1453 = vcmask 392192
    %v1454 = vsel %vm1453, %v1421, %v1001
    %v1455 = vsel %vm1453, %v1422, %v1003
    %v1456 = vsel %vm1453, %v1423, %v1005
    %v1457 = vsel %vm1453, %v1424, %v1007
    %v1458 = vsel %vm1453, %v1425, %v1009
    %v1459 = vsel %vm1453, %v1426, %v1011
    %v1460 = vsel %vm1453, %v1427, %v1013
    %v1461 = vsel %vm1453, %v1428, %v1015
    %v1462 = vsel %vm1453, %v1429, %v1017
    %v1463 = vsel %vm1453, %v1430, %v1019
    %v1464 = vsel %vm1453, %v1431, %v1021
    %v1465 = vsel %vm1453, %v1432, %v1023
    %v1466 = vsel %vm1453, %v1433, %v1025
    %v1467 = vsel %vm1453, %v1434, %v1027
    %v1468 = vsel %vm1453, %v1435, %v1029
    %v1469 = vsel %vm1453, %v1436, %v1031
    %v1470 = vsel %vm1453, %v1437, %v1033
    %v1471 = vsel %vm1453, %v1438, %v1035
    %v1472 = vsel %vm1453, %v1439, %v1037
    %v1473 = vsel %vm1453, %v1440, %v1039
    %v1474 = vsel %vm1453, %v1441, %v1041
    %v1475 = vsel %vm1453, %v1442, %v1043
    %v1476 = vsel %vm1453, %v1443, %v1045
    %v1477 = vsel %vm1453, %v1444, %v1047
    %v1478 = vsel %vm1453, %v1445, %v1049
    %v1479 = vsel %vm1453, %v1446, %v1051
    %v1480 = vsel %vm1453, %v1447, %v1053
    %v1481 = vsel %vm1453, %v1448, %v1055
    %v1482 = vsel %vm1453, %v1449, %v1057
    %v1483 = vsel %vm1453, %v1450, %v1059
    %v1484 = vsel %vm1453, %v1451, %v1061
    %v1485 = vsel %vm1453, %v1452, %v1063
    %vm1486 = vcmask 457728
    %v1487 = vsel %vm1486, %v1454, %v1097
    %v1488 = vsel %vm1486, %v1455, %v1099
    %v1489 = vsel %vm1486, %v1456, %v1101
    %v1490 = vsel %vm1486, %v1457, %v1103
    %v1491 = vsel %vm1486, %v1458, %v1105
    %v1492 = vsel %vm1486, %v1459, %v1107
    %v1493 = vsel %vm1486, %v1460, %v1109
    %v1494 = vsel %vm1486, %v1461, %v1111
    %v1495 = vsel %vm1486, %v1462, %v1113
    %v1496 = vsel %vm1486, %v1463, %v1115
    %v1497 = vsel %vm1486, %v1464, %v1117
    %v1498 = vsel %vm1486, %v1465, %v1119
    %v1499 = vsel %vm1486, %v1466, %v1121
    %v1500 = vsel %vm1486, %v1467, %v1123
    %v1501 = vsel %vm1486, %v1468, %v1125
    %v1502 = vsel %vm1486, %v1469, %v1127
    %v1503 = vsel %vm1486, %v1470, %v1129
    %v1504 = vsel %vm1486, %v1471, %v1131
    %v1505 = vsel %vm1486, %v1472, %v1133
    %v1506 = vsel %vm1486, %v1473, %v1135
    %v1507 = vsel %vm1486, %v1474, %v1137
    %v1508 = vsel %vm1486, %v1475, %v1139
    %v1509 = vsel %vm1486, %v1476, %v1141
    %v1510 = vsel %vm1486, %v1477, %v1143
    %v1511 = vsel %vm1486, %v1478, %v1145
    %v1512 = vsel %vm1486, %v1479, %v1147
    %v1513 = vsel %vm1486, %v1480, %v1149
    %v1514 = vsel %vm1486, %v1481, %v1151
    %v1515 = vsel %vm1486, %v1482, %v1153
    %v1516 = vsel %vm1486, %v1483, %v1155
    %v1517 = vsel %vm1486, %v1484, %v1157
    %v1518 = vsel %vm1486, %v1485, %v1159
    %vm1519 = vcmask 523264
    %v1520 = vsel %vm1519, %v1487, %v1193
    %v1521 = vsel %vm1519, %v1488, %v1195
    %v1522 = vsel %vm1519, %v1489, %v1197
    %v1523 = vsel %vm1519, %v1490, %v1199
    %v1524 = vsel %vm1519, %v1491, %v1201
    %v1525 = vsel %vm1519, %v1492, %v1203
    %v1526 = vsel %vm1519, %v1493, %v1205
    %v1527 = vsel %vm1519, %v1494, %v1207
    %v1528 = vsel %vm1519, %v1495, %v1209
    %v1529 = vsel %vm1519, %v1496, %v1211
    %v1530 = vsel %vm1519, %v1497, %v1213
    %v1531 = vsel %vm1519, %v1498, %v1215
    %v1532 = vsel %vm1519, %v1499, %v1217
    %v1533 = vsel %vm1519, %v1500, %v1219
    %v1534 = vsel %vm1519, %v1501, %v1221
    %v1535 = vsel %vm1519, %v1502, %v1223
    %v1536 = vsel %vm1519, %v1503, %v1225
    %v1537 = vsel %vm1519, %v1504, %v1227
    %v1538 = vsel %vm1519, %v1505, %v1229
    %v1539 = vsel %vm1519, %v1506, %v1231
    %v1540 = vsel %vm1519, %v1507, %v1233
    %v1541 = vsel %vm1519, %v1508, %v1235
    %v1542 = vsel %vm1519, %v1509, %v1237
    %v1543 = vsel %vm1519, %v1510, %v1239
    %v1544 = vsel %vm1519, %v1511, %v1241
    %v1545 = vsel %vm1519, %v1512, %v1243
    %v1546 = vsel %vm1519, %v1513, %v1245
    %v1547 = vsel %vm1519, %v1514, %v1247
    %v1548 = vsel %vm1519, %v1515, %v1249
    %v1549 = vsel %vm1519, %v1516, %v1251
    %v1550 = vsel %vm1519, %v1517, %v1253
    %v1551 = vsel %vm1519, %v1518, %v1255
    %v1553 = vlaneseq
    %v1554 = vshrl.u32 %v1553, 7
    %v1555 = vsub.s32 0, %v1554
    %v1556 = vrot.slane %v144, %v1555
    %vm1558 = vcmask 588800
    %v1560 = vsel %vm1558, %v1520, 0
    %v1563 = vsel %vm1558, %v1521, 0
    %v1566 = vsel %vm1558, %v1522, 0
    %v1569 = vsel %vm1558, %v1523, 0
    %v1572 = vsel %vm1558, %v1524, 0
    %v1575 = vsel %vm1558, %v1525, 0
    %v1578 = vsel %vm1558, %v1526, 0
    %v1581 = vsel %vm1558, %v1527, 0
    %v1584 = vsel %vm1558, %v1528, 0
    %v1587 = vsel %vm1558, %v1529, 0
    %v1590 = vsel %vm1558, %v1530, 0
    %v1593 = vsel %vm1558, %v1531, 0
    %v1596 = vsel %vm1558, %v1532, 0
    %v1599 = vsel %vm1558, %v1533, 0
    %v1602 = vsel %vm1558, %v1534, 0
    %v1605 = vsel %vm1558, %v1535, 0
    %v1608 = vsel %vm1558, %v1536, 0
    %v1611 = vsel %vm1558, %v1537, 0
    %v1614 = vsel %vm1558, %v1538, 0
    %v1617 = vsel %vm1558, %v1539, 0
    %v1620 = vsel %vm1558, %v1540, 0
    %v1623 = vsel %vm1558, %v1541, 0
    %v1626 = vsel %vm1558, %v1542, 0
    %v1629 = vsel %vm1558, %v1543, 0
    %v1632 = vsel %vm1558, %v1544, 0
    %v1635 = vsel %vm1558, %v1545, 0
    %v1638 = vsel %vm1558, %v1546, 0
    %v1641 = vsel %vm1558, %v1547, 0
    %v1644 = vsel %vm1558, %v1548, 0
    %v1647 = vsel %vm1558, %v1549, 0
    %v1650 = vsel %vm1558, %v1550, 0
    %v1653 = vsel %vm1558, %v1551, 0
    %1655 = vmatprep.subr.mxu0 0.0
    %1656 = vmatpush1.msra.mxu0 %v135
    %1657 = vmatprep.subr.mxu0 0.0
    %1658 = vmatpush1.msra.mxu0 %v136
    %1659 = vmatprep.subr.mxu0 0.0
    %1660 = vmatpush1.msra.mxu0 %v137
    %1661 = vmatprep.subr.mxu0 0.0
    %1662 = vmatpush1.msra.mxu0 %v138
    %1663 = vmatprep.subr.mxu0 0.0
    %1664 = vmatpush1.msra.mxu0 %v139
    %1665 = vmatprep.subr.mxu0 0.0
    %1666 = vmatpush1.msra.mxu0 %v140
    %1667 = vmatprep.subr.mxu0 0.0
    %1668 = vmatpush1.msra.mxu0 %v141
    %1669 = vmatprep.subr.mxu0 0.0
    %1670 = vmatpush1.msra.mxu0 %v142
    %1671 = vmatprep.subr.mxu0 0.0
    %1672 = vmatpush1.msra.mxu0 %v143
    %1673 = vmatprep.subr.mxu0 0.0
    %1674 = vmatpush1.msra.mxu0 0.0
    %1675 = vmatprep.subr.mxu0 0.0
    %1676 = vmatpush1.msra.mxu0 0.0
    %1677 = vmatprep.subr.mxu0 0.0
    %1678 = vmatpush1.msra.mxu0 0.0
    %1679 = vmatprep.subr.mxu0 0.0
    %1680 = vmatpush1.msra.mxu0 0.0
    %1681 = vmatprep.subr.mxu0 0.0
    %1682 = vmatpush1.msra.mxu0 0.0
    %1683 = vmatprep.subr.mxu0 0.0
    %1684 = vmatpush1.msra.mxu0 0.0
    %1685 = vmatprep.subr.mxu0 0.0
    %1686 = vmatpush1.msra.mxu0 0.0
    %1687 = vmatprep.subr.mxu0 0.0
    %1688 = vmatpush1.msra.mxu0 0.0
    %1689 = vmatprep.subr.mxu0 0.0
    %1690 = vmatpush1.msra.mxu0 0.0
    %1691 = vmatprep.subr.mxu0 0.0
    %1692 = vmatpush1.msra.mxu0 0.0
    %1693 = vmatprep.subr.mxu0 0.0
    %1694 = vmatpush1.msra.mxu0 0.0
    %1695 = vmatprep.subr.mxu0 0.0
    %1696 = vmatpush1.msra.mxu0 0.0
    %1697 = vmatprep.subr.mxu0 0.0
    %1698 = vmatpush1.msra.mxu0 0.0
    %1699 = vmatprep.subr.mxu0 0.0
    %1700 = vmatpush1.msra.mxu0 0.0
    %1701 = vmatprep.subr.mxu0 0.0
    %1702 = vmatpush1.msra.mxu0 0.0
    %1703 = vmatprep.subr.mxu0 0.0
    %1704 = vmatpush1.msra.mxu0 0.0
    %1705 = vmatprep.subr.mxu0 0.0
    %1706 = vmatpush1.msra.mxu0 0.0
    %1707 = vmatprep.subr.mxu0 0.0
    %1708 = vmatpush1.msra.mxu0 0.0
    %1709 = vmatprep.subr.mxu0 0.0
    %1710 = vmatpush1.msra.mxu0 0.0
    %1711 = vmatprep.subr.mxu0 0.0
    %1712 = vmatpush1.msra.mxu0 0.0
    %1713 = vmatprep.subr.mxu0 0.0
    %1714 = vmatpush1.msra.mxu0 0.0
    %1715 = vmatprep.subr.mxu0 0.0
    %1716 = vmatpush1.msra.mxu0 0.0
    %1717 = vmatprep.subr.mxu0 0.0
    %1718 = vmatpush1.msra.mxu0 0.0
    %1719 = vmatprep.mubr.f32.mxu0 0.0
    %1720 = vmatmul.mubr.f32.gmra.mrb[0].mxu0 %v1560
    %v1721 = vpop.f32.mrb[0].mxu0
    %v1722 = vadd.f32 %v1556, %v1721
    %v1723 = vpop.f32.mrb[0].mxu0
    %1724 = vmatprep.mubr.f32.mxu0 0.0
    %1725 = vmatmul.mubr.f32.gmra.mrb[0].mxu0 %v1563
    %v1726 = vpop.f32.mrb[0].mxu0
    %v1727 = vadd.f32 %v1556, %v1726
    %v1728 = vpop.f32.mrb[0].mxu0
    %1729 = vmatprep.mubr.f32.mxu0 0.0
    %1730 = vmatmul.mubr.f32.gmra.mrb[0].mxu0 %v1566
    %v1731 = vpop.f32.mrb[0].mxu0
    %v1732 = vadd.f32 %v1556, %v1731
    %v1733 = vpop.f32.mrb[0].mxu0
    %1734 = vmatprep.mubr.f32.mxu0 0.0
    %1735 = vmatmul.mubr.f32.gmra.mrb[0].mxu0 %v1569
    %v1736 = vpop.f32.mrb[0].mxu0
    %v1737 = vadd.f32 %v1556, %v1736
    %v1738 = vpop.f32.mrb[0].mxu0
    %1739 = vmatprep.mubr.f32.mxu0 0.0
    %1740 = vmatmul.mubr.f32.gmra.mrb[0].mxu0 %v1572
    %v1741 = vpop.f32.mrb[0].mxu0
    %v1742 = vadd.f32 %v1556, %v1741
    %v1743 = vpop.f32.mrb[0].mxu0
    %1744 = vmatprep.mubr.f32.mxu0 0.0
    %1745 = vmatmul.mubr.f32.gmra.mrb[0].mxu0 %v1575
    %v1746 = vpop.f32.mrb[0].mxu0
    %v1747 = vadd.f32 %v1556, %v1746
    %v1748 = vpop.f32.mrb[0].mxu0
    %1749 = vmatprep.mubr.f32.mxu0 0.0
    %1750 = vmatmul.mubr.f32.gmra.mrb[0].mxu0 %v1578
    %v1751 = vpop.f32.mrb[0].mxu0
    %v1752 = vadd.f32 %v1556, %v1751
    %v1753 = vpop.f32.mrb[0].mxu0
    %1754 = vmatprep.mubr.f32.mxu0 0.0
    %1755 = vmatmul.mubr.f32.gmra.mrb[0].mxu0 %v1581
    %v1756 = vpop.f32.mrb[0].mxu0
    %v1757 = vadd.f32 %v1556, %v1756
    %v1758 = vpop.f32.mrb[0].mxu0
    %1759 = vmatprep.mubr.f32.mxu0 0.0
    %1760 = vmatmul.mubr.f32.gmra.mrb[0].mxu0 %v1584
    %v1761 = vpop.f32.mrb[0].mxu0
    %v1762 = vadd.f32 %v1556, %v1761
    %v1763 = vpop.f32.mrb[0].mxu0
    %1764 = vmatprep.mubr.f32.mxu0 0.0
    %1765 = vmatmul.mubr.f32.gmra.mrb[0].mxu0 %v1587
    %v1766 = vpop.f32.mrb[0].mxu0
    %v1767 = vadd.f32 %v1556, %v1766
    %v1768 = vpop.f32.mrb[0].mxu0
    %1769 = vmatprep.mubr.f32.mxu0 0.0
    %1770 = vmatmul.mubr.f32.gmra.mrb[0].mxu0 %v1590
    %v1771 = vpop.f32.mrb[0].mxu0
    %v1772 = vadd.f32 %v1556, %v1771
    %v1773 = vpop.f32.mrb[0].mxu0
    %1774 = vmatprep.mubr.f32.mxu0 0.0
    %1775 = vmatmul.mubr.f32.gmra.mrb[0].mxu0 %v1593
    %v1776 = vpop.f32.mrb[0].mxu0
    %v1777 = vadd.f32 %v1556, %v1776
    %v1778 = vpop.f32.mrb[0].mxu0
    %1779 = vmatprep.mubr.f32.mxu0 0.0
    %1780 = vmatmul.mubr.f32.gmra.mrb[0].mxu0 %v1596
    %v1781 = vpop.f32.mrb[0].mxu0
    %v1782 = vadd.f32 %v1556, %v1781
    %v1783 = vpop.f32.mrb[0].mxu0
    %1784 = vmatprep.mubr.f32.mxu0 0.0
    %1785 = vmatmul.mubr.f32.gmra.mrb[0].mxu0 %v1599
    %v1786 = vpop.f32.mrb[0].mxu0
    %v1787 = vadd.f32 %v1556, %v1786
    %v1788 = vpop.f32.mrb[0].mxu0
    %1789 = vmatprep.mubr.f32.mxu0 0.0
    %1790 = vmatmul.mubr.f32.gmra.mrb[0].mxu0 %v1602
    %v1791 = vpop.f32.mrb[0].mxu0
    %v1792 = vadd.f32 %v1556, %v1791
    %v1793 = vpop.f32.mrb[0].mxu0
    %1794 = vmatprep.mubr.f32.mxu0 0.0
    %1795 = vmatmul.mubr.f32.gmra.mrb[0].mxu0 %v1605
    %v1796 = vpop.f32.mrb[0].mxu0
    %v1797 = vadd.f32 %v1556, %v1796
    %v1798 = vpop.f32.mrb[0].mxu0
    %1799 = vmatprep.mubr.f32.mxu0 0.0
    %1800 = vmatmul.mubr.f32.gmra.mrb[0].mxu0 %v1608
    %v1801 = vpop.f32.mrb[0].mxu0
    %v1802 = vadd.f32 %v1556, %v1801
    %v1803 = vpop.f32.mrb[0].mxu0
    %1804 = vmatprep.mubr.f32.mxu0 0.0
    %1805 = vmatmul.mubr.f32.gmra.mrb[0].mxu0 %v1611
    %v1806 = vpop.f32.mrb[0].mxu0
    %v1807 = vadd.f32 %v1556, %v1806
    %v1808 = vpop.f32.mrb[0].mxu0
    %1809 = vmatprep.mubr.f32.mxu0 0.0
    %1810 = vmatmul.mubr.f32.gmra.mrb[0].mxu0 %v1614
    %v1811 = vpop.f32.mrb[0].mxu0
    %v1812 = vadd.f32 %v1556, %v1811
    %v1813 = vpop.f32.mrb[0].mxu0
    %1814 = vmatprep.mubr.f32.mxu0 0.0
    %1815 = vmatmul.mubr.f32.gmra.mrb[0].mxu0 %v1617
    %v1816 = vpop.f32.mrb[0].mxu0
    %v1817 = vadd.f32 %v1556, %v1816
    %v1818 = vpop.f32.mrb[0].mxu0
    %1819 = vmatprep.mubr.f32.mxu0 0.0
    %1820 = vmatmul.mubr.f32.gmra.mrb[0].mxu0 %v1620
    %v1821 = vpop.f32.mrb[0].mxu0
    %v1822 = vadd.f32 %v1556, %v1821
    %v1823 = vpop.f32.mrb[0].mxu0
    %1824 = vmatprep.mubr.f32.mxu0 0.0
    %1825 = vmatmul.mubr.f32.gmra.mrb[0].mxu0 %v1623
    %v1826 = vpop.f32.mrb[0].mxu0
    %v1827 = vadd.f32 %v1556, %v1826
    %v1828 = vpop.f32.mrb[0].mxu0
    %1829 = vmatprep.mubr.f32.mxu0 0.0
    %1830 = vmatmul.mubr.f32.gmra.mrb[0].mxu0 %v1626
    %v1831 = vpop.f32.mrb[0].mxu0
    %v1832 = vadd.f32 %v1556, %v1831
    %v1833 = vpop.f32.mrb[0].mxu0
    %1834 = vmatprep.mubr.f32.mxu0 0.0
    %1835 = vmatmul.mubr.f32.gmra.mrb[0].mxu0 %v1629
    %v1836 = vpop.f32.mrb[0].mxu0
    %v1837 = vadd.f32 %v1556, %v1836
    %v1838 = vpop.f32.mrb[0].mxu0
    %1839 = vmatprep.mubr.f32.mxu0 0.0
    %1840 = vmatmul.mubr.f32.gmra.mrb[0].mxu0 %v1632
    %v1841 = vpop.f32.mrb[0].mxu0
    %v1842 = vadd.f32 %v1556, %v1841
    %v1843 = vpop.f32.mrb[0].mxu0
    %1844 = vmatprep.mubr.f32.mxu0 0.0
    %1845 = vmatmul.mubr.f32.gmra.mrb[0].mxu0 %v1635
    %v1846 = vpop.f32.mrb[0].mxu0
    %v1847 = vadd.f32 %v1556, %v1846
    %v1848 = vpop.f32.mrb[0].mxu0
    %1849 = vmatprep.mubr.f32.mxu0 0.0
    %1850 = vmatmul.mubr.f32.gmra.mrb[0].mxu0 %v1638
    %v1851 = vpop.f32.mrb[0].mxu0
    %v1852 = vadd.f32 %v1556, %v1851
    %v1853 = vpop.f32.mrb[0].mxu0
    %1854 = vmatprep.mubr.f32.mxu0 0.0
    %1855 = vmatmul.mubr.f32.gmra.mrb[0].mxu0 %v1641
    %v1856 = vpop.f32.mrb[0].mxu0
    %v1857 = vadd.f32 %v1556, %v1856
    %v1858 = vpop.f32.mrb[0].mxu0
    %1859 = vmatprep.mubr.f32.mxu0 0.0
    %1860 = vmatmul.mubr.f32.gmra.mrb[0].mxu0 %v1644
    %v1861 = vpop.f32.mrb[0].mxu0
    %v1862 = vadd.f32 %v1556, %v1861
    %v1863 = vpop.f32.mrb[0].mxu0
    %1864 = vmatprep.mubr.f32.mxu0 0.0
    %1865 = vmatmul.mubr.f32.gmra.mrb[0].mxu0 %v1647
    %v1866 = vpop.f32.mrb[0].mxu0
    %v1867 = vadd.f32 %v1556, %v1866
    %v1868 = vpop.f32.mrb[0].mxu0
    %1869 = vmatprep.mubr.f32.mxu0 0.0
    %1870 = vmatmul.mubr.f32.gmra.mrb[0].mxu0 %v1650
    %v1871 = vpop.f32.mrb[0].mxu0
    %v1872 = vadd.f32 %v1556, %v1871
    %v1873 = vpop.f32.mrb[0].mxu0
    %1874 = vmatprep.mubr.f32.mxu0 0.0
    %1875 = vmatmul.mubr.f32.gmra.mrb[0].mxu0 %v1653
    %v1876 = vpop.f32.mrb[0].mxu0
    %v1877 = vadd.f32 %v1556, %v1876
    %v1878 = vpop.f32.mrb[0].mxu0
    %1879 = vdwg.mxu0
    %v1880 = vsel %vm1519, %v1722, 0.0
    %v1881 = vsel %vm1519, %v1727, 0.0
    %v1882 = vadd.f32 %v1880, %v1881
    %v1883 = vsel %vm1519, %v1732, 0.0
    %v1884 = vadd.f32 %v1882, %v1883
    %v1885 = vsel %vm1519, %v1737, 0.0
    %v1886 = vadd.f32 %v1884, %v1885
    %v1887 = vsel %vm1519, %v1742, 0.0
    %v1888 = vadd.f32 %v1886, %v1887
    %v1889 = vsel %vm1519, %v1747, 0.0
    %v1890 = vadd.f32 %v1888, %v1889
    %v1891 = vsel %vm1519, %v1752, 0.0
    %v1892 = vadd.f32 %v1890, %v1891
    %v1893 = vsel %vm1519, %v1757, 0.0
    %v1894 = vadd.f32 %v1892, %v1893
    %v1895 = vsel %vm1519, %v1762, 0.0
    %v1896 = vadd.f32 %v1894, %v1895
    %v1897 = vsel %vm1519, %v1767, 0.0
    %v1898 = vadd.f32 %v1896, %v1897
    %v1899 = vsel %vm1519, %v1772, 0.0
    %v1900 = vadd.f32 %v1898, %v1899
    %v1901 = vsel %vm1519, %v1777, 0.0
    %v1902 = vadd.f32 %v1900, %v1901
    %v1903 = vsel %vm1519, %v1782, 0.0
    %v1904 = vadd.f32 %v1902, %v1903
    %v1905 = vsel %vm1519, %v1787, 0.0
    %v1906 = vadd.f32 %v1904, %v1905
    %v1907 = vsel %vm1519, %v1792, 0.0
    %v1908 = vadd.f32 %v1906, %v1907
    %v1909 = vsel %vm1519, %v1797, 0.0
    %v1910 = vadd.f32 %v1908, %v1909
    %v1911 = vsel %vm1519, %v1802, 0.0
    %v1912 = vadd.f32 %v1910, %v1911
    %v1913 = vsel %vm1519, %v1807, 0.0
    %v1914 = vadd.f32 %v1912, %v1913
    %v1915 = vsel %vm1519, %v1812, 0.0
    %v1916 = vadd.f32 %v1914, %v1915
    %v1917 = vsel %vm1519, %v1817, 0.0
    %v1918 = vadd.f32 %v1916, %v1917
    %v1919 = vsel %vm1519, %v1822, 0.0
    %v1920 = vadd.f32 %v1918, %v1919
    %v1921 = vsel %vm1519, %v1827, 0.0
    %v1922 = vadd.f32 %v1920, %v1921
    %v1923 = vsel %vm1519, %v1832, 0.0
    %v1924 = vadd.f32 %v1922, %v1923
    %v1925 = vsel %vm1519, %v1837, 0.0
    %v1926 = vadd.f32 %v1924, %v1925
    %v1927 = vsel %vm1519, %v1842, 0.0
    %v1928 = vadd.f32 %v1926, %v1927
    %v1929 = vsel %vm1519, %v1847, 0.0
    %v1930 = vadd.f32 %v1928, %v1929
    %v1931 = vsel %vm1519, %v1852, 0.0
    %v1932 = vadd.f32 %v1930, %v1931
    %v1933 = vsel %vm1519, %v1857, 0.0
    %v1934 = vadd.f32 %v1932, %v1933
    %v1935 = vsel %vm1519, %v1862, 0.0
    %v1936 = vadd.f32 %v1934, %v1935
    %v1937 = vsel %vm1519, %v1867, 0.0
    %v1938 = vadd.f32 %v1936, %v1937
    %v1939 = vsel %vm1519, %v1872, 0.0
    %v1940 = vadd.f32 %v1938, %v1939
    %v1941 = vsel %vm1519, %v1877, 0.0
    %v1942 = vadd.f32 %v1940, %v1941
    %v1943 = vrot.slane %v1942, 4
    %v1944 = vadd.f32 %v1942, %v1943
    %v1945 = vrot.slane %v1944, 2
    %v1946 = vadd.f32 %v1944, %v1945
    %v1947 = vrot.slane %v1946, 1
    %v1948 = vadd.f32 %v1946, %v1947
    %v1949 = vmul.f32 %v1722, %v1722
    %v1950 = vmul.f32 %v1727, %v1727
    %v1951 = vmul.f32 %v1732, %v1732
    %v1952 = vmul.f32 %v1737, %v1737
    %v1953 = vmul.f32 %v1742, %v1742
    %v1954 = vmul.f32 %v1747, %v1747
    %v1955 = vmul.f32 %v1752, %v1752
    %v1956 = vmul.f32 %v1757, %v1757
    %v1957 = vmul.f32 %v1762, %v1762
    %v1958 = vmul.f32 %v1767, %v1767
    %v1959 = vmul.f32 %v1772, %v1772
    %v1960 = vmul.f32 %v1777, %v1777
    %v1961 = vmul.f32 %v1782, %v1782
    %v1962 = vmul.f32 %v1787, %v1787
    %v1963 = vmul.f32 %v1792, %v1792
    %v1964 = vmul.f32 %v1797, %v1797
    %v1965 = vmul.f32 %v1802, %v1802
    %v1966 = vmul.f32 %v1807, %v1807
    %v1967 = vmul.f32 %v1812, %v1812
    %v1968 = vmul.f32 %v1817, %v1817
    %v1969 = vmul.f32 %v1822, %v1822
    %v1970 = vmul.f32 %v1827, %v1827
    %v1971 = vmul.f32 %v1832, %v1832
    %v1972 = vmul.f32 %v1837, %v1837
    %v1973 = vmul.f32 %v1842, %v1842
    %v1974 = vmul.f32 %v1847, %v1847
    %v1975 = vmul.f32 %v1852, %v1852
    %v1976 = vmul.f32 %v1857, %v1857
    %v1977 = vmul.f32 %v1862, %v1862
    %v1978 = vmul.f32 %v1867, %v1867
    %v1979 = vmul.f32 %v1872, %v1872
    %v1980 = vmul.f32 %v1877, %v1877
    %v1981 = vsel %vm1519, %v1949, 0.0
    %v1982 = vsel %vm1519, %v1950, 0.0
    %v1983 = vadd.f32 %v1981, %v1982
    %v1984 = vsel %vm1519, %v1951, 0.0
    %v1985 = vadd.f32 %v1983, %v1984
    %v1986 = vsel %vm1519, %v1952, 0.0
    %v1987 = vadd.f32 %v1985, %v1986
    %v1988 = vsel %vm1519, %v1953, 0.0
    %v1989 = vadd.f32 %v1987, %v1988
    %v1990 = vsel %vm1519, %v1954, 0.0
    %v1991 = vadd.f32 %v1989, %v1990
    %v1992 = vsel %vm1519, %v1955, 0.0
    %v1993 = vadd.f32 %v1991, %v1992
    %v1994 = vsel %vm1519, %v1956, 0.0
    %v1995 = vadd.f32 %v1993, %v1994
    %v1996 = vsel %vm1519, %v1957, 0.0
    %v1997 = vadd.f32 %v1995, %v1996
    %v1998 = vsel %vm1519, %v1958, 0.0
    %v1999 = vadd.f32 %v1997, %v1998
    %v2000 = vsel %vm1519, %v1959, 0.0
    %v2001 = vadd.f32 %v1999, %v2000
    %v2002 = vsel %vm1519, %v1960, 0.0
    %v2003 = vadd.f32 %v2001, %v2002
    %v2004 = vsel %vm1519, %v1961, 0.0
    %v2005 = vadd.f32 %v2003, %v2004
    %v2006 = vsel %vm1519, %v1962, 0.0
    %v2007 = vadd.f32 %v2005, %v2006
    %v2008 = vsel %vm1519, %v1963, 0.0
    %v2009 = vadd.f32 %v2007, %v2008
    %v2010 = vsel %vm1519, %v1964, 0.0
    %v2011 = vadd.f32 %v2009, %v2010
    %v2012 = vsel %vm1519, %v1965, 0.0
    %v2013 = vadd.f32 %v2011, %v2012
    %v2014 = vsel %vm1519, %v1966, 0.0
    %v2015 = vadd.f32 %v2013, %v2014
    %v2016 = vsel %vm1519, %v1967, 0.0
    %v2017 = vadd.f32 %v2015, %v2016
    %v2018 = vsel %vm1519, %v1968, 0.0
    %v2019 = vadd.f32 %v2017, %v2018
    %v2020 = vsel %vm1519, %v1969, 0.0
    %v2021 = vadd.f32 %v2019, %v2020
    %v2022 = vsel %vm1519, %v1970, 0.0
    %v2023 = vadd.f32 %v2021, %v2022
    %v2024 = vsel %vm1519, %v1971, 0.0
    %v2025 = vadd.f32 %v2023, %v2024
    %v2026 = vsel %vm1519, %v1972, 0.0
    %v2027 = vadd.f32 %v2025, %v2026
    %v2028 = vsel %vm1519, %v1973, 0.0
    %v2029 = vadd.f32 %v2027, %v2028
    %v2030 = vsel %vm1519, %v1974, 0.0
    %v2031 = vadd.f32 %v2029, %v2030
    %v2032 = vsel %vm1519, %v1975, 0.0
    %v2033 = vadd.f32 %v2031, %v2032
    %v2034 = vsel %vm1519, %v1976, 0.0
    %v2035 = vadd.f32 %v2033, %v2034
    %v2036 = vsel %vm1519, %v1977, 0.0
    %v2037 = vadd.f32 %v2035, %v2036
    %v2038 = vsel %vm1519, %v1978, 0.0
    %v2039 = vadd.f32 %v2037, %v2038
    %v2040 = vsel %vm1519, %v1979, 0.0
    %v2041 = vadd.f32 %v2039, %v2040
    %v2042 = vsel %vm1519, %v1980, 0.0
    %v2043 = vadd.f32 %v2041, %v2042
    %v2044 = vrot.slane %v2043, 4
    %v2045 = vadd.f32 %v2043, %v2044
    %v2046 = vrot.slane %v2045, 2
    %v2047 = vadd.f32 %v2045, %v2046
    %v2048 = vrot.slane %v2047, 1
    %v2049 = vadd.f32 %v2047, %v2048
    %v2050 = vmul.f32 %v1948, 0.00390625
    %v2051 = vmul.f32 %v2049, 0.00390625
    %v2052 = vmul.f32 %v2050, %v2050
    %v2053 = vsub.f32 %v2051, %v2052
    %v2054 = vmax.f32 %v2053, 0.0
    %v2055 = vsub.f32 %v1722, %v2050
    %v2056 = vsub.f32 %v1727, %v2050
    %v2057 = vsub.f32 %v1732, %v2050
    %v2058 = vsub.f32 %v1737, %v2050
    %v2059 = vsub.f32 %v1742, %v2050
    %v2060 = vsub.f32 %v1747, %v2050
    %v2061 = vsub.f32 %v1752, %v2050
    %v2062 = vsub.f32 %v1757, %v2050
    %v2063 = vsub.f32 %v1762, %v2050
    %v2064 = vsub.f32 %v1767, %v2050
    %v2065 = vsub.f32 %v1772, %v2050
    %v2066 = vsub.f32 %v1777, %v2050
    %v2067 = vsub.f32 %v1782, %v2050
    %v2068 = vsub.f32 %v1787, %v2050
    %v2069 = vsub.f32 %v1792, %v2050
    %v2070 = vsub.f32 %v1797, %v2050
    %v2071 = vsub.f32 %v1802, %v2050
    %v2072 = vsub.f32 %v1807, %v2050
    %v2073 = vsub.f32 %v1812, %v2050
    %v2074 = vsub.f32 %v1817, %v2050
    %v2075 = vsub.f32 %v1822, %v2050
    %v2076 = vsub.f32 %v1827, %v2050
    %v2077 = vsub.f32 %v1832, %v2050
    %v2078 = vsub.f32 %v1837, %v2050
    %v2079 = vsub.f32 %v1842, %v2050
    %v2080 = vsub.f32 %v1847, %v2050
    %v2081 = vsub.f32 %v1852, %v2050
    %v2082 = vsub.f32 %v1857, %v2050
    %v2083 = vsub.f32 %v1862, %v2050
    %v2084 = vsub.f32 %v1867, %v2050
    %v2085 = vsub.f32 %v1872, %v2050
    %v2086 = vsub.f32 %v1877, %v2050
    %v2087 = vadd.f32 %v2054, 1e-05
    %v2088 = vrsqrt.pop %v2087
    %v2089 = vmul.f32 %v2055, %v2088
    %v2090 = vmul.f32 %v2056, %v2088
    %v2091 = vmul.f32 %v2057, %v2088
    %v2092 = vmul.f32 %v2058, %v2088
    %v2093 = vmul.f32 %v2059, %v2088
    %v2094 = vmul.f32 %v2060, %v2088
    %v2095 = vmul.f32 %v2061, %v2088
    %v2096 = vmul.f32 %v2062, %v2088
    %v2097 = vmul.f32 %v2063, %v2088
    %v2098 = vmul.f32 %v2064, %v2088
    %v2099 = vmul.f32 %v2065, %v2088
    %v2100 = vmul.f32 %v2066, %v2088
    %v2101 = vmul.f32 %v2067, %v2088
    %v2102 = vmul.f32 %v2068, %v2088
    %v2103 = vmul.f32 %v2069, %v2088
    %v2104 = vmul.f32 %v2070, %v2088
    %v2105 = vmul.f32 %v2071, %v2088
    %v2106 = vmul.f32 %v2072, %v2088
    %v2107 = vmul.f32 %v2073, %v2088
    %v2108 = vmul.f32 %v2074, %v2088
    %v2109 = vmul.f32 %v2075, %v2088
    %v2110 = vmul.f32 %v2076, %v2088
    %v2111 = vmul.f32 %v2077, %v2088
    %v2112 = vmul.f32 %v2078, %v2088
    %v2113 = vmul.f32 %v2079, %v2088
    %v2114 = vmul.f32 %v2080, %v2088
    %v2115 = vmul.f32 %v2081, %v2088
    %v2116 = vmul.f32 %v2082, %v2088
    %v2117 = vmul.f32 %v2083, %v2088
    %v2118 = vmul.f32 %v2084, %v2088
    %v2119 = vmul.f32 %v2085, %v2088
    %v2120 = vmul.f32 %v2086, %v2088
    %v2122 = vlaneseq
    %v2123 = vshrl.u32 %v2122, 7
    %v2124 = vsub.s32 0, %v2123
    %v2125 = vrot.slane %v145, %v2124
    %v2127 = vmul.f32 %v2089, %v2125
    %v2128 = vmul.f32 %v2090, %v2125
    %v2129 = vmul.f32 %v2091, %v2125
    %v2130 = vmul.f32 %v2092, %v2125
    %v2131 = vmul.f32 %v2093, %v2125
    %v2132 = vmul.f32 %v2094, %v2125
    %v2133 = vmul.f32 %v2095, %v2125
    %v2134 = vmul.f32 %v2096, %v2125
    %v2135 = vmul.f32 %v2097, %v2125
    %v2136 = vmul.f32 %v2098, %v2125
    %v2137 = vmul.f32 %v2099, %v2125
    %v2138 = vmul.f32 %v2100, %v2125
    %v2139 = vmul.f32 %v2101, %v2125
    %v2140 = vmul.f32 %v2102, %v2125
    %v2141 = vmul.f32 %v2103, %v2125
    %v2142 = vmul.f32 %v2104, %v2125
    %v2143 = vmul.f32 %v2105, %v2125
    %v2144 = vmul.f32 %v2106, %v2125
    %v2145 = vmul.f32 %v2107, %v2125
    %v2146 = vmul.f32 %v2108, %v2125
    %v2147 = vmul.f32 %v2109, %v2125
    %v2148 = vmul.f32 %v2110, %v2125
    %v2149 = vmul.f32 %v2111, %v2125
    %v2150 = vmul.f32 %v2112, %v2125
    %v2151 = vmul.f32 %v2113, %v2125
    %v2152 = vmul.f32 %v2114, %v2125
    %v2153 = vmul.f32 %v2115, %v2125
    %v2154 = vmul.f32 %v2116, %v2125
    %v2155 = vmul.f32 %v2117, %v2125
    %v2156 = vmul.f32 %v2118, %v2125
    %v2157 = vmul.f32 %v2119, %v2125
    %v2158 = vmul.f32 %v2120, %v2125
    %v2160 = vlaneseq
    %v2161 = vshrl.u32 %v2160, 7
    %v2162 = vsub.s32 0, %v2161
    %v2163 = vrot.slane %v146, %v2162
    %v2165 = vadd.f32 %v2127, %v2163
    %v2166 = vadd.f32 %v2128, %v2163
    %v2167 = vadd.f32 %v2129, %v2163
    %v2168 = vadd.f32 %v2130, %v2163
    %v2169 = vadd.f32 %v2131, %v2163
    %v2170 = vadd.f32 %v2132, %v2163
    %v2171 = vadd.f32 %v2133, %v2163
    %v2172 = vadd.f32 %v2134, %v2163
    %v2173 = vadd.f32 %v2135, %v2163
    %v2174 = vadd.f32 %v2136, %v2163
    %v2175 = vadd.f32 %v2137, %v2163
    %v2176 = vadd.f32 %v2138, %v2163
    %v2177 = vadd.f32 %v2139, %v2163
    %v2178 = vadd.f32 %v2140, %v2163
    %v2179 = vadd.f32 %v2141, %v2163
    %v2180 = vadd.f32 %v2142, %v2163
    %v2181 = vadd.f32 %v2143, %v2163
    %v2182 = vadd.f32 %v2144, %v2163
    %v2183 = vadd.f32 %v2145, %v2163
    %v2184 = vadd.f32 %v2146, %v2163
    %v2185 = vadd.f32 %v2147, %v2163
    %v2186 = vadd.f32 %v2148, %v2163
    %v2187 = vadd.f32 %v2149, %v2163
    %v2188 = vadd.f32 %v2150, %v2163
    %v2189 = vadd.f32 %v2151, %v2163
    %v2190 = vadd.f32 %v2152, %v2163
    %v2191 = vadd.f32 %v2153, %v2163
    %v2192 = vadd.f32 %v2154, %v2163
    %v2193 = vadd.f32 %v2155, %v2163
    %v2194 = vadd.f32 %v2156, %v2163
    %v2195 = vadd.f32 %v2157, %v2163
    %v2196 = vadd.f32 %v2158, %v2163
    %v2197 = vmax.f32 %v2165, 0.0
    %v2198 = vmax.f32 %v2166, 0.0
    %v2199 = vmax.f32 %v2167, 0.0
    %v2200 = vmax.f32 %v2168, 0.0
    %v2201 = vmax.f32 %v2169, 0.0
    %v2202 = vmax.f32 %v2170, 0.0
    %v2203 = vmax.f32 %v2171, 0.0
    %v2204 = vmax.f32 %v2172, 0.0
    %v2205 = vmax.f32 %v2173, 0.0
    %v2206 = vmax.f32 %v2174, 0.0
    %v2207 = vmax.f32 %v2175, 0.0
    %v2208 = vmax.f32 %v2176, 0.0
    %v2209 = vmax.f32 %v2177, 0.0
    %v2210 = vmax.f32 %v2178, 0.0
    %v2211 = vmax.f32 %v2179, 0.0
    %v2212 = vmax.f32 %v2180, 0.0
    %v2213 = vmax.f32 %v2181, 0.0
    %v2214 = vmax.f32 %v2182, 0.0
    %v2215 = vmax.f32 %v2183, 0.0
    %v2216 = vmax.f32 %v2184, 0.0
    %v2217 = vmax.f32 %v2185, 0.0
    %v2218 = vmax.f32 %v2186, 0.0
    %v2219 = vmax.f32 %v2187, 0.0
    %v2220 = vmax.f32 %v2188, 0.0
    %v2221 = vmax.f32 %v2189, 0.0
    %v2222 = vmax.f32 %v2190, 0.0
    %v2223 = vmax.f32 %v2191, 0.0
    %v2224 = vmax.f32 %v2192, 0.0
    %v2225 = vmax.f32 %v2193, 0.0
    %v2226 = vmax.f32 %v2194, 0.0
    %v2227 = vmax.f32 %v2195, 0.0
    %v2228 = vmax.f32 %v2196, 0.0
    %v2261 = vcombine.high %v2197, %v2197
    %v2263 = vunpack.c.l.s4 1983009808
    %v2264 = vunpack.c.0.s8 %v2263
    %v2265 = vlaneseq
    %v2266 = vshrl.u32 %v2265, 7
    %v2267 = vsub.s32 %v2264, %v2266
    %v2268 = vrot.slane %v2197, %v2267
    %v2270 = vunpack.c.l.s4 1983009808
    %v2271 = vunpack.c.0.s8 %v2270
    %v2272 = vlaneseq
    %v2273 = vshrl.u32 %v2272, 7
    %v2274 = vsub.s32 %v2271, %v2273
    %v2275 = vrot.slane %v2261, %v2274
    %v2276 = vcombine.high %v2268, %v2268
    %v2277 = vcombine.high %v2275, %v2275
    %v2278 = vcombine.high %v2198, %v2198
    %v2280 = vunpack.c.l.s4 1983009808
    %v2281 = vunpack.c.0.s8 %v2280
    %v2282 = vlaneseq
    %v2283 = vshrl.u32 %v2282, 7
    %v2284 = vsub.s32 %v2281, %v2283
    %v2285 = vrot.slane %v2198, %v2284
    %v2287 = vunpack.c.l.s4 1983009808
    %v2288 = vunpack.c.0.s8 %v2287
    %v2289 = vlaneseq
    %v2290 = vshrl.u32 %v2289, 7
    %v2291 = vsub.s32 %v2288, %v2290
    %v2292 = vrot.slane %v2278, %v2291
    %v2293 = vcombine.high %v2285, %v2285
    %v2294 = vcombine.high %v2292, %v2292
    %v2295 = vcombine.high %v2199, %v2199
    %v2297 = vunpack.c.l.s4 1983009808
    %v2298 = vunpack.c.0.s8 %v2297
    %v2299 = vlaneseq
    %v2300 = vshrl.u32 %v2299, 7
    %v2301 = vsub.s32 %v2298, %v2300
    %v2302 = vrot.slane %v2199, %v2301
    %v2304 = vunpack.c.l.s4 1983009808
    %v2305 = vunpack.c.0.s8 %v2304
    %v2306 = vlaneseq
    %v2307 = vshrl.u32 %v2306, 7
    %v2308 = vsub.s32 %v2305, %v2307
    %v2309 = vrot.slane %v2295, %v2308
    %v2310 = vcombine.high %v2302, %v2302
    %v2311 = vcombine.high %v2309, %v2309
    %v2312 = vcombine.high %v2200, %v2200
    %v2314 = vunpack.c.l.s4 1983009808
    %v2315 = vunpack.c.0.s8 %v2314
    %v2316 = vlaneseq
    %v2317 = vshrl.u32 %v2316, 7
    %v2318 = vsub.s32 %v2315, %v2317
    %v2319 = vrot.slane %v2200, %v2318
    %v2321 = vunpack.c.l.s4 1983009808
    %v2322 = vunpack.c.0.s8 %v2321
    %v2323 = vlaneseq
    %v2324 = vshrl.u32 %v2323, 7
    %v2325 = vsub.s32 %v2322, %v2324
    %v2326 = vrot.slane %v2312, %v2325
    %v2327 = vcombine.high %v2319, %v2319
    %v2328 = vcombine.high %v2326, %v2326
    %v2329 = vcombine.high %v2201, %v2201
    %v2331 = vunpack.c.l.s4 1983009808
    %v2332 = vunpack.c.0.s8 %v2331
    %v2333 = vlaneseq
    %v2334 = vshrl.u32 %v2333, 7
    %v2335 = vsub.s32 %v2332, %v2334
    %v2336 = vrot.slane %v2201, %v2335
    %v2338 = vunpack.c.l.s4 1983009808
    %v2339 = vunpack.c.0.s8 %v2338
    %v2340 = vlaneseq
    %v2341 = vshrl.u32 %v2340, 7
    %v2342 = vsub.s32 %v2339, %v2341
    %v2343 = vrot.slane %v2329, %v2342
    %v2344 = vcombine.high %v2336, %v2336
    %v2345 = vcombine.high %v2343, %v2343
    %v2346 = vcombine.high %v2202, %v2202
    %v2348 = vunpack.c.l.s4 1983009808
    %v2349 = vunpack.c.0.s8 %v2348
    %v2350 = vlaneseq
    %v2351 = vshrl.u32 %v2350, 7
    %v2352 = vsub.s32 %v2349, %v2351
    %v2353 = vrot.slane %v2202, %v2352
    %v2355 = vunpack.c.l.s4 1983009808
    %v2356 = vunpack.c.0.s8 %v2355
    %v2357 = vlaneseq
    %v2358 = vshrl.u32 %v2357, 7
    %v2359 = vsub.s32 %v2356, %v2358
    %v2360 = vrot.slane %v2346, %v2359
    %v2361 = vcombine.high %v2353, %v2353
    %v2362 = vcombine.high %v2360, %v2360
    %v2363 = vcombine.high %v2203, %v2203
    %v2365 = vunpack.c.l.s4 1983009808
    %v2366 = vunpack.c.0.s8 %v2365
    %v2367 = vlaneseq
    %v2368 = vshrl.u32 %v2367, 7
    %v2369 = vsub.s32 %v2366, %v2368
    %v2370 = vrot.slane %v2203, %v2369
    %v2372 = vunpack.c.l.s4 1983009808
    %v2373 = vunpack.c.0.s8 %v2372
    %v2374 = vlaneseq
    %v2375 = vshrl.u32 %v2374, 7
    %v2376 = vsub.s32 %v2373, %v2375
    %v2377 = vrot.slane %v2363, %v2376
    %v2378 = vcombine.high %v2370, %v2370
    %v2379 = vcombine.high %v2377, %v2377
    %v2380 = vcombine.high %v2204, %v2204
    %v2382 = vunpack.c.l.s4 1983009808
    %v2383 = vunpack.c.0.s8 %v2382
    %v2384 = vlaneseq
    %v2385 = vshrl.u32 %v2384, 7
    %v2386 = vsub.s32 %v2383, %v2385
    %v2387 = vrot.slane %v2204, %v2386
    %v2389 = vunpack.c.l.s4 1983009808
    %v2390 = vunpack.c.0.s8 %v2389
    %v2391 = vlaneseq
    %v2392 = vshrl.u32 %v2391, 7
    %v2393 = vsub.s32 %v2390, %v2392
    %v2394 = vrot.slane %v2380, %v2393
    %v2395 = vcombine.high %v2387, %v2387
    %v2396 = vcombine.high %v2394, %v2394
    %v2397 = vcombine.high %v2205, %v2205
    %v2399 = vunpack.c.l.s4 1983009808
    %v2400 = vunpack.c.0.s8 %v2399
    %v2401 = vlaneseq
    %v2402 = vshrl.u32 %v2401, 7
    %v2403 = vsub.s32 %v2400, %v2402
    %v2404 = vrot.slane %v2205, %v2403
    %v2406 = vunpack.c.l.s4 1983009808
    %v2407 = vunpack.c.0.s8 %v2406
    %v2408 = vlaneseq
    %v2409 = vshrl.u32 %v2408, 7
    %v2410 = vsub.s32 %v2407, %v2409
    %v2411 = vrot.slane %v2397, %v2410
    %v2412 = vcombine.high %v2404, %v2404
    %v2413 = vcombine.high %v2411, %v2411
    %v2414 = vcombine.high %v2206, %v2206
    %v2416 = vunpack.c.l.s4 1983009808
    %v2417 = vunpack.c.0.s8 %v2416
    %v2418 = vlaneseq
    %v2419 = vshrl.u32 %v2418, 7
    %v2420 = vsub.s32 %v2417, %v2419
    %v2421 = vrot.slane %v2206, %v2420
    %v2423 = vunpack.c.l.s4 1983009808
    %v2424 = vunpack.c.0.s8 %v2423
    %v2425 = vlaneseq
    %v2426 = vshrl.u32 %v2425, 7
    %v2427 = vsub.s32 %v2424, %v2426
    %v2428 = vrot.slane %v2414, %v2427
    %v2429 = vcombine.high %v2421, %v2421
    %v2430 = vcombine.high %v2428, %v2428
    %v2431 = vcombine.high %v2207, %v2207
    %v2433 = vunpack.c.l.s4 1983009808
    %v2434 = vunpack.c.0.s8 %v2433
    %v2435 = vlaneseq
    %v2436 = vshrl.u32 %v2435, 7
    %v2437 = vsub.s32 %v2434, %v2436
    %v2438 = vrot.slane %v2207, %v2437
    %v2440 = vunpack.c.l.s4 1983009808
    %v2441 = vunpack.c.0.s8 %v2440
    %v2442 = vlaneseq
    %v2443 = vshrl.u32 %v2442, 7
    %v2444 = vsub.s32 %v2441, %v2443
    %v2445 = vrot.slane %v2431, %v2444
    %v2446 = vcombine.high %v2438, %v2438
    %v2447 = vcombine.high %v2445, %v2445
    %v2448 = vcombine.high %v2208, %v2208
    %v2450 = vunpack.c.l.s4 1983009808
    %v2451 = vunpack.c.0.s8 %v2450
    %v2452 = vlaneseq
    %v2453 = vshrl.u32 %v2452, 7
    %v2454 = vsub.s32 %v2451, %v2453
    %v2455 = vrot.slane %v2208, %v2454
    %v2457 = vunpack.c.l.s4 1983009808
    %v2458 = vunpack.c.0.s8 %v2457
    %v2459 = vlaneseq
    %v2460 = vshrl.u32 %v2459, 7
    %v2461 = vsub.s32 %v2458, %v2460
    %v2462 = vrot.slane %v2448, %v2461
    %v2463 = vcombine.high %v2455, %v2455
    %v2464 = vcombine.high %v2462, %v2462
    %v2465 = vcombine.high %v2209, %v2209
    %v2467 = vunpack.c.l.s4 1983009808
    %v2468 = vunpack.c.0.s8 %v2467
    %v2469 = vlaneseq
    %v2470 = vshrl.u32 %v2469, 7
    %v2471 = vsub.s32 %v2468, %v2470
    %v2472 = vrot.slane %v2209, %v2471
    %v2474 = vunpack.c.l.s4 1983009808
    %v2475 = vunpack.c.0.s8 %v2474
    %v2476 = vlaneseq
    %v2477 = vshrl.u32 %v2476, 7
    %v2478 = vsub.s32 %v2475, %v2477
    %v2479 = vrot.slane %v2465, %v2478
    %v2480 = vcombine.high %v2472, %v2472
    %v2481 = vcombine.high %v2479, %v2479
    %v2482 = vcombine.high %v2210, %v2210
    %v2484 = vunpack.c.l.s4 1983009808
    %v2485 = vunpack.c.0.s8 %v2484
    %v2486 = vlaneseq
    %v2487 = vshrl.u32 %v2486, 7
    %v2488 = vsub.s32 %v2485, %v2487
    %v2489 = vrot.slane %v2210, %v2488
    %v2491 = vunpack.c.l.s4 1983009808
    %v2492 = vunpack.c.0.s8 %v2491
    %v2493 = vlaneseq
    %v2494 = vshrl.u32 %v2493, 7
    %v2495 = vsub.s32 %v2492, %v2494
    %v2496 = vrot.slane %v2482, %v2495
    %v2497 = vcombine.high %v2489, %v2489
    %v2498 = vcombine.high %v2496, %v2496
    %v2499 = vcombine.high %v2211, %v2211
    %v2501 = vunpack.c.l.s4 1983009808
    %v2502 = vunpack.c.0.s8 %v2501
    %v2503 = vlaneseq
    %v2504 = vshrl.u32 %v2503, 7
    %v2505 = vsub.s32 %v2502, %v2504
    %v2506 = vrot.slane %v2211, %v2505
    %v2508 = vunpack.c.l.s4 1983009808
    %v2509 = vunpack.c.0.s8 %v2508
    %v2510 = vlaneseq
    %v2511 = vshrl.u32 %v2510, 7
    %v2512 = vsub.s32 %v2509, %v2511
    %v2513 = vrot.slane %v2499, %v2512
    %v2514 = vcombine.high %v2506, %v2506
    %v2515 = vcombine.high %v2513, %v2513
    %v2516 = vcombine.high %v2212, %v2212
    %v2518 = vunpack.c.l.s4 1983009808
    %v2519 = vunpack.c.0.s8 %v2518
    %v2520 = vlaneseq
    %v2521 = vshrl.u32 %v2520, 7
    %v2522 = vsub.s32 %v2519, %v2521
    %v2523 = vrot.slane %v2212, %v2522
    %v2525 = vunpack.c.l.s4 1983009808
    %v2526 = vunpack.c.0.s8 %v2525
    %v2527 = vlaneseq
    %v2528 = vshrl.u32 %v2527, 7
    %v2529 = vsub.s32 %v2526, %v2528
    %v2530 = vrot.slane %v2516, %v2529
    %v2531 = vcombine.high %v2523, %v2523
    %v2532 = vcombine.high %v2530, %v2530
    %v2533 = vcombine.high %v2213, %v2213
    %v2535 = vunpack.c.l.s4 1983009808
    %v2536 = vunpack.c.0.s8 %v2535
    %v2537 = vlaneseq
    %v2538 = vshrl.u32 %v2537, 7
    %v2539 = vsub.s32 %v2536, %v2538
    %v2540 = vrot.slane %v2213, %v2539
    %v2542 = vunpack.c.l.s4 1983009808
    %v2543 = vunpack.c.0.s8 %v2542
    %v2544 = vlaneseq
    %v2545 = vshrl.u32 %v2544, 7
    %v2546 = vsub.s32 %v2543, %v2545
    %v2547 = vrot.slane %v2533, %v2546
    %v2548 = vcombine.high %v2540, %v2540
    %v2549 = vcombine.high %v2547, %v2547
    %v2550 = vcombine.high %v2214, %v2214
    %v2552 = vunpack.c.l.s4 1983009808
    %v2553 = vunpack.c.0.s8 %v2552
    %v2554 = vlaneseq
    %v2555 = vshrl.u32 %v2554, 7
    %v2556 = vsub.s32 %v2553, %v2555
    %v2557 = vrot.slane %v2214, %v2556
    %v2559 = vunpack.c.l.s4 1983009808
    %v2560 = vunpack.c.0.s8 %v2559
    %v2561 = vlaneseq
    %v2562 = vshrl.u32 %v2561, 7
    %v2563 = vsub.s32 %v2560, %v2562
    %v2564 = vrot.slane %v2550, %v2563
    %v2565 = vcombine.high %v2557, %v2557
    %v2566 = vcombine.high %v2564, %v2564
    %v2567 = vcombine.high %v2215, %v2215
    %v2569 = vunpack.c.l.s4 1983009808
    %v2570 = vunpack.c.0.s8 %v2569
    %v2571 = vlaneseq
    %v2572 = vshrl.u32 %v2571, 7
    %v2573 = vsub.s32 %v2570, %v2572
    %v2574 = vrot.slane %v2215, %v2573
    %v2576 = vunpack.c.l.s4 1983009808
    %v2577 = vunpack.c.0.s8 %v2576
    %v2578 = vlaneseq
    %v2579 = vshrl.u32 %v2578, 7
    %v2580 = vsub.s32 %v2577, %v2579
    %v2581 = vrot.slane %v2567, %v2580
    %v2582 = vcombine.high %v2574, %v2574
    %v2583 = vcombine.high %v2581, %v2581
    %v2584 = vcombine.high %v2216, %v2216
    %v2586 = vunpack.c.l.s4 1983009808
    %v2587 = vunpack.c.0.s8 %v2586
    %v2588 = vlaneseq
    %v2589 = vshrl.u32 %v2588, 7
    %v2590 = vsub.s32 %v2587, %v2589
    %v2591 = vrot.slane %v2216, %v2590
    %v2593 = vunpack.c.l.s4 1983009808
    %v2594 = vunpack.c.0.s8 %v2593
    %v2595 = vlaneseq
    %v2596 = vshrl.u32 %v2595, 7
    %v2597 = vsub.s32 %v2594, %v2596
    %v2598 = vrot.slane %v2584, %v2597
    %v2599 = vcombine.high %v2591, %v2591
    %v2600 = vcombine.high %v2598, %v2598
    %v2601 = vcombine.high %v2217, %v2217
    %v2603 = vunpack.c.l.s4 1983009808
    %v2604 = vunpack.c.0.s8 %v2603
    %v2605 = vlaneseq
    %v2606 = vshrl.u32 %v2605, 7
    %v2607 = vsub.s32 %v2604, %v2606
    %v2608 = vrot.slane %v2217, %v2607
    %v2610 = vunpack.c.l.s4 1983009808
    %v2611 = vunpack.c.0.s8 %v2610
    %v2612 = vlaneseq
    %v2613 = vshrl.u32 %v2612, 7
    %v2614 = vsub.s32 %v2611, %v2613
    %v2615 = vrot.slane %v2601, %v2614
    %v2616 = vcombine.high %v2608, %v2608
    %v2617 = vcombine.high %v2615, %v2615
    %v2618 = vcombine.high %v2218, %v2218
    %v2620 = vunpack.c.l.s4 1983009808
    %v2621 = vunpack.c.0.s8 %v2620
    %v2622 = vlaneseq
    %v2623 = vshrl.u32 %v2622, 7
    %v2624 = vsub.s32 %v2621, %v2623
    %v2625 = vrot.slane %v2218, %v2624
    %v2627 = vunpack.c.l.s4 1983009808
    %v2628 = vunpack.c.0.s8 %v2627
    %v2629 = vlaneseq
    %v2630 = vshrl.u32 %v2629, 7
    %v2631 = vsub.s32 %v2628, %v2630
    %v2632 = vrot.slane %v2618, %v2631
    %v2633 = vcombine.high %v2625, %v2625
    %v2634 = vcombine.high %v2632, %v2632
    %v2635 = vcombine.high %v2219, %v2219
    %v2637 = vunpack.c.l.s4 1983009808
    %v2638 = vunpack.c.0.s8 %v2637
    %v2639 = vlaneseq
    %v2640 = vshrl.u32 %v2639, 7
    %v2641 = vsub.s32 %v2638, %v2640
    %v2642 = vrot.slane %v2219, %v2641
    %v2644 = vunpack.c.l.s4 1983009808
    %v2645 = vunpack.c.0.s8 %v2644
    %v2646 = vlaneseq
    %v2647 = vshrl.u32 %v2646, 7
    %v2648 = vsub.s32 %v2645, %v2647
    %v2649 = vrot.slane %v2635, %v2648
    %v2650 = vcombine.high %v2642, %v2642
    %v2651 = vcombine.high %v2649, %v2649
    %v2652 = vcombine.high %v2220, %v2220
    %v2654 = vunpack.c.l.s4 1983009808
    %v2655 = vunpack.c.0.s8 %v2654
    %v2656 = vlaneseq
    %v2657 = vshrl.u32 %v2656, 7
    %v2658 = vsub.s32 %v2655, %v2657
    %v2659 = vrot.slane %v2220, %v2658
    %v2661 = vunpack.c.l.s4 1983009808
    %v2662 = vunpack.c.0.s8 %v2661
    %v2663 = vlaneseq
    %v2664 = vshrl.u32 %v2663, 7
    %v2665 = vsub.s32 %v2662, %v2664
    %v2666 = vrot.slane %v2652, %v2665
    %v2667 = vcombine.high %v2659, %v2659
    %v2668 = vcombine.high %v2666, %v2666
    %v2669 = vcombine.high %v2221, %v2221
    %v2671 = vunpack.c.l.s4 1983009808
    %v2672 = vunpack.c.0.s8 %v2671
    %v2673 = vlaneseq
    %v2674 = vshrl.u32 %v2673, 7
    %v2675 = vsub.s32 %v2672, %v2674
    %v2676 = vrot.slane %v2221, %v2675
    %v2678 = vunpack.c.l.s4 1983009808
    %v2679 = vunpack.c.0.s8 %v2678
    %v2680 = vlaneseq
    %v2681 = vshrl.u32 %v2680, 7
    %v2682 = vsub.s32 %v2679, %v2681
    %v2683 = vrot.slane %v2669, %v2682
    %v2684 = vcombine.high %v2676, %v2676
    %v2685 = vcombine.high %v2683, %v2683
    %v2686 = vcombine.high %v2222, %v2222
    %v2688 = vunpack.c.l.s4 1983009808
    %v2689 = vunpack.c.0.s8 %v2688
    %v2690 = vlaneseq
    %v2691 = vshrl.u32 %v2690, 7
    %v2692 = vsub.s32 %v2689, %v2691
    %v2693 = vrot.slane %v2222, %v2692
    %v2695 = vunpack.c.l.s4 1983009808
    %v2696 = vunpack.c.0.s8 %v2695
    %v2697 = vlaneseq
    %v2698 = vshrl.u32 %v2697, 7
    %v2699 = vsub.s32 %v2696, %v2698
    %v2700 = vrot.slane %v2686, %v2699
    %v2701 = vcombine.high %v2693, %v2693
    %v2702 = vcombine.high %v2700, %v2700
    %v2703 = vcombine.high %v2223, %v2223
    %v2705 = vunpack.c.l.s4 1983009808
    %v2706 = vunpack.c.0.s8 %v2705
    %v2707 = vlaneseq
    %v2708 = vshrl.u32 %v2707, 7
    %v2709 = vsub.s32 %v2706, %v2708
    %v2710 = vrot.slane %v2223, %v2709
    %v2712 = vunpack.c.l.s4 1983009808
    %v2713 = vunpack.c.0.s8 %v2712
    %v2714 = vlaneseq
    %v2715 = vshrl.u32 %v2714, 7
    %v2716 = vsub.s32 %v2713, %v2715
    %v2717 = vrot.slane %v2703, %v2716
    %v2718 = vcombine.high %v2710, %v2710
    %v2719 = vcombine.high %v2717, %v2717
    %v2720 = vcombine.high %v2224, %v2224
    %v2722 = vunpack.c.l.s4 1983009808
    %v2723 = vunpack.c.0.s8 %v2722
    %v2724 = vlaneseq
    %v2725 = vshrl.u32 %v2724, 7
    %v2726 = vsub.s32 %v2723, %v2725
    %v2727 = vrot.slane %v2224, %v2726
    %v2729 = vunpack.c.l.s4 1983009808
    %v2730 = vunpack.c.0.s8 %v2729
    %v2731 = vlaneseq
    %v2732 = vshrl.u32 %v2731, 7
    %v2733 = vsub.s32 %v2730, %v2732
    %v2734 = vrot.slane %v2720, %v2733
    %v2735 = vcombine.high %v2727, %v2727
    %v2736 = vcombine.high %v2734, %v2734
    %v2737 = vcombine.high %v2225, %v2225
    %v2739 = vunpack.c.l.s4 1983009808
    %v2740 = vunpack.c.0.s8 %v2739
    %v2741 = vlaneseq
    %v2742 = vshrl.u32 %v2741, 7
    %v2743 = vsub.s32 %v2740, %v2742
    %v2744 = vrot.slane %v2225, %v2743
    %v2746 = vunpack.c.l.s4 1983009808
    %v2747 = vunpack.c.0.s8 %v2746
    %v2748 = vlaneseq
    %v2749 = vshrl.u32 %v2748, 7
    %v2750 = vsub.s32 %v2747, %v2749
    %v2751 = vrot.slane %v2737, %v2750
    %v2752 = vcombine.high %v2744, %v2744
    %v2753 = vcombine.high %v2751, %v2751
    %v2754 = vcombine.high %v2226, %v2226
    %v2756 = vunpack.c.l.s4 1983009808
    %v2757 = vunpack.c.0.s8 %v2756
    %v2758 = vlaneseq
    %v2759 = vshrl.u32 %v2758, 7
    %v2760 = vsub.s32 %v2757, %v2759
    %v2761 = vrot.slane %v2226, %v2760
    %v2763 = vunpack.c.l.s4 1983009808
    %v2764 = vunpack.c.0.s8 %v2763
    %v2765 = vlaneseq
    %v2766 = vshrl.u32 %v2765, 7
    %v2767 = vsub.s32 %v2764, %v2766
    %v2768 = vrot.slane %v2754, %v2767
    %v2769 = vcombine.high %v2761, %v2761
    %v2770 = vcombine.high %v2768, %v2768
    %v2771 = vcombine.high %v2227, %v2227
    %v2773 = vunpack.c.l.s4 1983009808
    %v2774 = vunpack.c.0.s8 %v2773
    %v2775 = vlaneseq
    %v2776 = vshrl.u32 %v2775, 7
    %v2777 = vsub.s32 %v2774, %v2776
    %v2778 = vrot.slane %v2227, %v2777
    %v2780 = vunpack.c.l.s4 1983009808
    %v2781 = vunpack.c.0.s8 %v2780
    %v2782 = vlaneseq
    %v2783 = vshrl.u32 %v2782, 7
    %v2784 = vsub.s32 %v2781, %v2783
    %v2785 = vrot.slane %v2771, %v2784
    %v2786 = vcombine.high %v2778, %v2778
    %v2787 = vcombine.high %v2785, %v2785
    %v2788 = vcombine.high %v2228, %v2228
    %v2790 = vunpack.c.l.s4 1983009808
    %v2791 = vunpack.c.0.s8 %v2790
    %v2792 = vlaneseq
    %v2793 = vshrl.u32 %v2792, 7
    %v2794 = vsub.s32 %v2791, %v2793
    %v2795 = vrot.slane %v2228, %v2794
    %v2797 = vunpack.c.l.s4 1983009808
    %v2798 = vunpack.c.0.s8 %v2797
    %v2799 = vlaneseq
    %v2800 = vshrl.u32 %v2799, 7
    %v2801 = vsub.s32 %v2798, %v2800
    %v2802 = vrot.slane %v2788, %v2801
    %v2803 = vcombine.high %v2795, %v2795
    %v2804 = vcombine.high %v2802, %v2802
    %v2933 = vmax.f32 %v2268, %v2302
    %v2934 = vmax.f32 %v2276, %v2310
    %v2935 = vmax.f32 %v2275, %v2309
    %v2936 = vmax.f32 %v2277, %v2311
    %v2937 = vmax.f32 %v2285, %v2319
    %v2938 = vmax.f32 %v2293, %v2327
    %v2939 = vmax.f32 %v2292, %v2326
    %v2940 = vmax.f32 %v2294, %v2328
    %v2941 = vmax.f32 %v2336, %v2370
    %v2942 = vmax.f32 %v2344, %v2378
    %v2943 = vmax.f32 %v2343, %v2377
    %v2944 = vmax.f32 %v2345, %v2379
    %v2945 = vmax.f32 %v2353, %v2387
    %v2946 = vmax.f32 %v2361, %v2395
    %v2947 = vmax.f32 %v2360, %v2394
    %v2948 = vmax.f32 %v2362, %v2396
    %v2949 = vmax.f32 %v2404, %v2438
    %v2950 = vmax.f32 %v2412, %v2446
    %v2951 = vmax.f32 %v2411, %v2445
    %v2952 = vmax.f32 %v2413, %v2447
    %v2953 = vmax.f32 %v2421, %v2455
    %v2954 = vmax.f32 %v2429, %v2463
    %v2955 = vmax.f32 %v2428, %v2462
    %v2956 = vmax.f32 %v2430, %v2464
    %v2957 = vmax.f32 %v2472, %v2506
    %v2958 = vmax.f32 %v2480, %v2514
    %v2959 = vmax.f32 %v2479, %v2513
    %v2960 = vmax.f32 %v2481, %v2515
    %v2961 = vmax.f32 %v2489, %v2523
    %v2962 = vmax.f32 %v2497, %v2531
    %v2963 = vmax.f32 %v2496, %v2530
    %v2964 = vmax.f32 %v2498, %v2532
    %v2965 = vmax.f32 %v2540, %v2574
    %v2966 = vmax.f32 %v2548, %v2582
    %v2967 = vmax.f32 %v2547, %v2581
    %v2968 = vmax.f32 %v2549, %v2583
    %v2969 = vmax.f32 %v2557, %v2591
    %v2970 = vmax.f32 %v2565, %v2599
    %v2971 = vmax.f32 %v2564, %v2598
    %v2972 = vmax.f32 %v2566, %v2600
    %v2973 = vmax.f32 %v2608, %v2642
    %v2974 = vmax.f32 %v2616, %v2650
    %v2975 = vmax.f32 %v2615, %v2649
    %v2976 = vmax.f32 %v2617, %v2651
    %v2977 = vmax.f32 %v2625, %v2659
    %v2978 = vmax.f32 %v2633, %v2667
    %v2979 = vmax.f32 %v2632, %v2666
    %v2980 = vmax.f32 %v2634, %v2668
    %v2981 = vmax.f32 %v2676, %v2710
    %v2982 = vmax.f32 %v2684, %v2718
    %v2983 = vmax.f32 %v2683, %v2717
    %v2984 = vmax.f32 %v2685, %v2719
    %v2985 = vmax.f32 %v2693, %v2727
    %v2986 = vmax.f32 %v2701, %v2735
    %v2987 = vmax.f32 %v2700, %v2734
    %v2988 = vmax.f32 %v2702, %v2736
    %v2989 = vmax.f32 %v2744, %v2778
    %v2990 = vmax.f32 %v2752, %v2786
    %v2991 = vmax.f32 %v2751, %v2785
    %v2992 = vmax.f32 %v2753, %v2787
    %v2993 = vmax.f32 %v2761, %v2795
    %v2994 = vmax.f32 %v2769, %v2803
    %v2995 = vmax.f32 %v2768, %v2802
    %v2996 = vmax.f32 %v2770, %v2804
    %v3061 = vrot.slane %v2933, 7
    %v3062 = vrot.slane %v3061, 2
    %v3063 = vrot.slane %v2934, 7
    %v3064 = vrot.slane %v3063, 2
    %v3065 = vrot.slane %v2935, 7
    %v3066 = vrot.slane %v3065, 2
    %v3067 = vrot.slane %v2936, 7
    %v3068 = vrot.slane %v3067, 2
    %v3069 = vrot.slane %v2937, 7
    %v3070 = vrot.slane %v3069, 2
    %v3071 = vrot.slane %v2938, 7
    %v3072 = vrot.slane %v3071, 2
    %v3073 = vrot.slane %v2939, 7
    %v3074 = vrot.slane %v3073, 2
    %v3075 = vrot.slane %v2940, 7
    %v3076 = vrot.slane %v3075, 2
    %v3077 = vrot.slane %v2941, 7
    %v3078 = vrot.slane %v3077, 2
    %v3079 = vrot.slane %v2942, 7
    %v3080 = vrot.slane %v3079, 2
    %v3081 = vrot.slane %v2943, 7
    %v3082 = vrot.slane %v3081, 2
    %v3083 = vrot.slane %v2944, 7
    %v3084 = vrot.slane %v3083, 2
    %v3085 = vrot.slane %v2945, 7
    %v3086 = vrot.slane %v3085, 2
    %v3087 = vrot.slane %v2946, 7
    %v3088 = vrot.slane %v3087, 2
    %v3089 = vrot.slane %v2947, 7
    %v3090 = vrot.slane %v3089, 2
    %v3091 = vrot.slane %v2948, 7
    %v3092 = vrot.slane %v3091, 2
    %v3093 = vrot.slane %v2949, 7
    %v3094 = vrot.slane %v3093, 2
    %v3095 = vrot.slane %v2950, 7
    %v3096 = vrot.slane %v3095, 2
    %v3097 = vrot.slane %v2951, 7
    %v3098 = vrot.slane %v3097, 2
    %v3099 = vrot.slane %v2952, 7
    %v3100 = vrot.slane %v3099, 2
    %v3101 = vrot.slane %v2953, 7
    %v3102 = vrot.slane %v3101, 2
    %v3103 = vrot.slane %v2954, 7
    %v3104 = vrot.slane %v3103, 2
    %v3105 = vrot.slane %v2955, 7
    %v3106 = vrot.slane %v3105, 2
    %v3107 = vrot.slane %v2956, 7
    %v3108 = vrot.slane %v3107, 2
    %v3109 = vrot.slane %v2957, 7
    %v3110 = vrot.slane %v3109, 2
    %v3111 = vrot.slane %v2958, 7
    %v3112 = vrot.slane %v3111, 2
    %v3113 = vrot.slane %v2959, 7
    %v3114 = vrot.slane %v3113, 2
    %v3115 = vrot.slane %v2960, 7
    %v3116 = vrot.slane %v3115, 2
    %v3117 = vrot.slane %v2961, 7
    %v3118 = vrot.slane %v3117, 2
    %v3119 = vrot.slane %v2962, 7
    %v3120 = vrot.slane %v3119, 2
    %v3121 = vrot.slane %v2963, 7
    %v3122 = vrot.slane %v3121, 2
    %v3123 = vrot.slane %v2964, 7
    %v3124 = vrot.slane %v3123, 2
    %v3125 = vrot.slane %v2965, 7
    %v3126 = vrot.slane %v3125, 2
    %v3127 = vrot.slane %v2966, 7
    %v3128 = vrot.slane %v3127, 2
    %v3129 = vrot.slane %v2967, 7
    %v3130 = vrot.slane %v3129, 2
    %v3131 = vrot.slane %v2968, 7
    %v3132 = vrot.slane %v3131, 2
    %v3133 = vrot.slane %v2969, 7
    %v3134 = vrot.slane %v3133, 2
    %v3135 = vrot.slane %v2970, 7
    %v3136 = vrot.slane %v3135, 2
    %v3137 = vrot.slane %v2971, 7
    %v3138 = vrot.slane %v3137, 2
    %v3139 = vrot.slane %v2972, 7
    %v3140 = vrot.slane %v3139, 2
    %v3141 = vrot.slane %v2973, 7
    %v3142 = vrot.slane %v3141, 2
    %v3143 = vrot.slane %v2974, 7
    %v3144 = vrot.slane %v3143, 2
    %v3145 = vrot.slane %v2975, 7
    %v3146 = vrot.slane %v3145, 2
    %v3147 = vrot.slane %v2976, 7
    %v3148 = vrot.slane %v3147, 2
    %v3149 = vrot.slane %v2977, 7
    %v3150 = vrot.slane %v3149, 2
    %v3151 = vrot.slane %v2978, 7
    %v3152 = vrot.slane %v3151, 2
    %v3153 = vrot.slane %v2979, 7
    %v3154 = vrot.slane %v3153, 2
    %v3155 = vrot.slane %v2980, 7
    %v3156 = vrot.slane %v3155, 2
    %v3157 = vrot.slane %v2981, 7
    %v3158 = vrot.slane %v3157, 2
    %v3159 = vrot.slane %v2982, 7
    %v3160 = vrot.slane %v3159, 2
    %v3161 = vrot.slane %v2983, 7
    %v3162 = vrot.slane %v3161, 2
    %v3163 = vrot.slane %v2984, 7
    %v3164 = vrot.slane %v3163, 2
    %v3165 = vrot.slane %v2985, 7
    %v3166 = vrot.slane %v3165, 2
    %v3167 = vrot.slane %v2986, 7
    %v3168 = vrot.slane %v3167, 2
    %v3169 = vrot.slane %v2987, 7
    %v3170 = vrot.slane %v3169, 2
    %v3171 = vrot.slane %v2988, 7
    %v3172 = vrot.slane %v3171, 2
    %v3173 = vrot.slane %v2989, 7
    %v3174 = vrot.slane %v3173, 2
    %v3175 = vrot.slane %v2990, 7
    %v3176 = vrot.slane %v3175, 2
    %v3177 = vrot.slane %v2991, 7
    %v3178 = vrot.slane %v3177, 2
    %v3179 = vrot.slane %v2992, 7
    %v3180 = vrot.slane %v3179, 2
    %v3181 = vrot.slane %v2993, 7
    %v3182 = vrot.slane %v3181, 2
    %v3183 = vrot.slane %v2994, 7
    %v3184 = vrot.slane %v3183, 2
    %v3185 = vrot.slane %v2995, 7
    %v3186 = vrot.slane %v3185, 2
    %v3187 = vrot.slane %v2996, 7
    %v3188 = vrot.slane %v3187, 2
    %v3253 = vmax.f32 %v2933, %v3062
    %v3254 = vmax.f32 %v2934, %v3064
    %v3255 = vmax.f32 %v2935, %v3066
    %v3256 = vmax.f32 %v2936, %v3068
    %v3257 = vmax.f32 %v2937, %v3070
    %v3258 = vmax.f32 %v2938, %v3072
    %v3259 = vmax.f32 %v2939, %v3074
    %v3260 = vmax.f32 %v2940, %v3076
    %v3261 = vmax.f32 %v2941, %v3078
    %v3262 = vmax.f32 %v2942, %v3080
    %v3263 = vmax.f32 %v2943, %v3082
    %v3264 = vmax.f32 %v2944, %v3084
    %v3265 = vmax.f32 %v2945, %v3086
    %v3266 = vmax.f32 %v2946, %v3088
    %v3267 = vmax.f32 %v2947, %v3090
    %v3268 = vmax.f32 %v2948, %v3092
    %v3269 = vmax.f32 %v2949, %v3094
    %v3270 = vmax.f32 %v2950, %v3096
    %v3271 = vmax.f32 %v2951, %v3098
    %v3272 = vmax.f32 %v2952, %v3100
    %v3273 = vmax.f32 %v2953, %v3102
    %v3274 = vmax.f32 %v2954, %v3104
    %v3275 = vmax.f32 %v2955, %v3106
    %v3276 = vmax.f32 %v2956, %v3108
    %v3277 = vmax.f32 %v2957, %v3110
    %v3278 = vmax.f32 %v2958, %v3112
    %v3279 = vmax.f32 %v2959, %v3114
    %v3280 = vmax.f32 %v2960, %v3116
    %v3281 = vmax.f32 %v2961, %v3118
    %v3282 = vmax.f32 %v2962, %v3120
    %v3283 = vmax.f32 %v2963, %v3122
    %v3284 = vmax.f32 %v2964, %v3124
    %v3285 = vmax.f32 %v2965, %v3126
    %v3286 = vmax.f32 %v2966, %v3128
    %v3287 = vmax.f32 %v2967, %v3130
    %v3288 = vmax.f32 %v2968, %v3132
    %v3289 = vmax.f32 %v2969, %v3134
    %v3290 = vmax.f32 %v2970, %v3136
    %v3291 = vmax.f32 %v2971, %v3138
    %v3292 = vmax.f32 %v2972, %v3140
    %v3293 = vmax.f32 %v2973, %v3142
    %v3294 = vmax.f32 %v2974, %v3144
    %v3295 = vmax.f32 %v2975, %v3146
    %v3296 = vmax.f32 %v2976, %v3148
    %v3297 = vmax.f32 %v2977, %v3150
    %v3298 = vmax.f32 %v2978, %v3152
    %v3299 = vmax.f32 %v2979, %v3154
    %v3300 = vmax.f32 %v2980, %v3156
    %v3301 = vmax.f32 %v2981, %v3158
    %v3302 = vmax.f32 %v2982, %v3160
    %v3303 = vmax.f32 %v2983, %v3162
    %v3304 = vmax.f32 %v2984, %v3164
    %v3305 = vmax.f32 %v2985, %v3166
    %v3306 = vmax.f32 %v2986, %v3168
    %v3307 = vmax.f32 %v2987, %v3170
    %v3308 = vmax.f32 %v2988, %v3172
    %v3309 = vmax.f32 %v2989, %v3174
    %v3310 = vmax.f32 %v2990, %v3176
    %v3311 = vmax.f32 %v2991, %v3178
    %v3312 = vmax.f32 %v2992, %v3180
    %v3313 = vmax.f32 %v2993, %v3182
    %v3314 = vmax.f32 %v2994, %v3184
    %v3315 = vmax.f32 %v2995, %v3186
    %v3316 = vmax.f32 %v2996, %v3188
    %v3317 = vld [vmem:[#allocation4] sm:$0xff]
    %v3318 = vld [vmem:[#allocation4 + $0x8] sm:$0xff]
    %v3319 = vld [vmem:[#allocation4 + $0x10] sm:$0xff]
    %v3320 = vld [vmem:[#allocation4 + $0x18] sm:$0xff]
    %v3321 = vld [vmem:[#allocation4 + $0x20] sm:$0xff]
    %v3322 = vld [vmem:[#allocation4 + $0x28] sm:$0xff]
    %v3323 = vld [vmem:[#allocation4 + $0x30] sm:$0xff]
    %v3324 = vld [vmem:[#allocation4 + $0x38] sm:$0xff]
    %v3325 = vld [vmem:[#allocation4 + $0x40] sm:$0xff]
    %v3326 = vld [vmem:[#allocation4 + $0x48] sm:$0xff]
    %v3327 = vld [vmem:[#allocation4 + $0x50] sm:$0xff]
    %v3328 = vld [vmem:[#allocation4 + $0x58] sm:$0xff]
    %v3329 = vld [vmem:[#allocation4 + $0x60] sm:$0xff]
    %v3330 = vld [vmem:[#allocation4 + $0x68] sm:$0xff]
    %v3331 = vld [vmem:[#allocation4 + $0x70] sm:$0xff]
    %v3332 = vld [vmem:[#allocation4 + $0x78] sm:$0xff]
    %v3333 = vld [vmem:[#allocation4 + $0x80] sm:$0xff]
    %v3334 = vld [vmem:[#allocation4 + $0x88] sm:$0xff]
    %v3335 = vld [vmem:[#allocation4 + $0x90] sm:$0xff]
    %v3336 = vld [vmem:[#allocation4 + $0x98] sm:$0xff]
    %v3337 = vld [vmem:[#allocation4 + $0xa0] sm:$0xff]
    %v3338 = vld [vmem:[#allocation4 + $0xa8] sm:$0xff]
    %v3339 = vld [vmem:[#allocation4 + $0xb0] sm:$0xff]
    %v3340 = vld [vmem:[#allocation4 + $0xb8] sm:$0xff]
    %v3341 = vld [vmem:[#allocation4 + $0xc0] sm:$0xff]
    %v3342 = vld [vmem:[#allocation4 + $0xc8] sm:$0xff]
    %v3343 = vld [vmem:[#allocation4 + $0xd0] sm:$0xff]
    %v3344 = vld [vmem:[#allocation4 + $0xd8] sm:$0xff]
    %v3345 = vld [vmem:[#allocation4 + $0xe0] sm:$0xff]
    %v3346 = vld [vmem:[#allocation4 + $0xe8] sm:$0xff]
    %v3347 = vld [vmem:[#allocation4 + $0xf0] sm:$0xff]
    %v3348 = vld [vmem:[#allocation4 + $0xf8] sm:$0xff]
    %v3349 = vld [vmem:[#allocation4 + $0x100] sm:$0xff]
    %v3350 = vld [vmem:[#allocation4 + $0x108] sm:$0xff]
    %v3351 = vld [vmem:[#allocation4 + $0x110] sm:$0xff]
    %v3352 = vld [vmem:[#allocation4 + $0x118] sm:$0xff]
    %v3353 = vld [vmem:[#allocation4 + $0x120] sm:$0xff]
    %v3354 = vld [vmem:[#allocation4 + $0x128] sm:$0xff]
    %v3355 = vld [vmem:[#allocation4 + $0x130] sm:$0xff]
    %v3356 = vld [vmem:[#allocation4 + $0x138] sm:$0xff]
    %v3357 = vld [vmem:[#allocation4 + $0x140] sm:$0xff]
    %v3358 = vld [vmem:[#allocation4 + $0x148] sm:$0xff]
    %v3359 = vld [vmem:[#allocation4 + $0x150] sm:$0xff]
    %v3360 = vld [vmem:[#allocation4 + $0x158] sm:$0xff]
    %v3361 = vld [vmem:[#allocation4 + $0x160] sm:$0xff]
    %v3362 = vld [vmem:[#allocation4 + $0x168] sm:$0xff]
    %v3363 = vld [vmem:[#allocation4 + $0x170] sm:$0xff]
    %v3364 = vld [vmem:[#allocation4 + $0x178] sm:$0xff]
    %v3365 = vld [vmem:[#allocation4 + $0x180] sm:$0xff]
    %v3366 = vld [vmem:[#allocation4 + $0x188] sm:$0xff]
    %v3367 = vld [vmem:[#allocation4 + $0x190] sm:$0xff]
    %v3368 = vld [vmem:[#allocation4 + $0x198] sm:$0xff]
    %v3369 = vld [vmem:[#allocation4 + $0x1a0] sm:$0xff]
    %v3370 = vld [vmem:[#allocation4 + $0x1a8] sm:$0xff]
    %v3371 = vld [vmem:[#allocation4 + $0x1b0] sm:$0xff]
    %v3372 = vld [vmem:[#allocation4 + $0x1b8] sm:$0xff]
    %v3373 = vld [vmem:[#allocation4 + $0x1c0] sm:$0xff]
    %v3374 = vld [vmem:[#allocation4 + $0x1c8] sm:$0xff]
    %v3375 = vld [vmem:[#allocation4 + $0x1d0] sm:$0xff]
    %v3376 = vld [vmem:[#allocation4 + $0x1d8] sm:$0xff]
    %v3377 = vld [vmem:[#allocation4 + $0x1e0] sm:$0xff]
    %v3378 = vld [vmem:[#allocation4 + $0x1e8] sm:$0xff]
    %v3379 = vld [vmem:[#allocation4 + $0x1f0] sm:$0xff]
    %v3380 = vld [vmem:[#allocation4 + $0x1f8] sm:$0xff]
    %v3381 = vld [vmem:[#allocation4 + $0x200] sm:$0xff]
    %v3382 = vld [vmem:[#allocation4 + $0x208] sm:$0xff]
    %v3383 = vld [vmem:[#allocation4 + $0x210] sm:$0xff]
    %v3384 = vld [vmem:[#allocation4 + $0x218] sm:$0xff]
    %v3385 = vld [vmem:[#allocation4 + $0x220] sm:$0xff]
    %v3386 = vld [vmem:[#allocation4 + $0x228] sm:$0xff]
    %v3387 = vld [vmem:[#allocation4 + $0x230] sm:$0xff]
    %v3388 = vld [vmem:[#allocation4 + $0x238] sm:$0xff]
    %v3389 = vld [vmem:[%s6] sm:$0x1]
    %v3390 = vld [vmem:[%s7] sm:$0x1]
    %v3391 = vld [vmem:[%s8] sm:$0x1]
    %v3456 = vlaneseq
    %v3457 = vshrl.u32 %v3456, 7
    %v3458 = vsub.s32 0, %v3457
    %v3459 = vrot.slane %v3253, %v3458
    %v3460 = vlaneseq
    %v3461 = vshrl.u32 %v3460, 7
    %v3462 = vsub.s32 0, %v3461
    %v3463 = vrot.slane %v3254, %v3462
    %v3464 = vlaneseq
    %v3465 = vshrl.u32 %v3464, 7
    %v3466 = vsub.s32 0, %v3465
    %v3467 = vrot.slane %v3255, %v3466
    %v3468 = vlaneseq
    %v3469 = vshrl.u32 %v3468, 7
    %v3470 = vsub.s32 0, %v3469
    %v3471 = vrot.slane %v3256, %v3470
    %v3472 = vlaneseq
    %v3473 = vshrl.u32 %v3472, 7
    %v3474 = vsub.s32 0, %v3473
    %v3475 = vrot.slane %v3257, %v3474
    %v3476 = vlaneseq
    %v3477 = vshrl.u32 %v3476, 7
    %v3478 = vsub.s32 0, %v3477
    %v3479 = vrot.slane %v3258, %v3478
    %v3480 = vlaneseq
    %v3481 = vshrl.u32 %v3480, 7
    %v3482 = vsub.s32 0, %v3481
    %v3483 = vrot.slane %v3259, %v3482
    %v3484 = vlaneseq
    %v3485 = vshrl.u32 %v3484, 7
    %v3486 = vsub.s32 0, %v3485
    %v3487 = vrot.slane %v3260, %v3486
    %v3488 = vlaneseq
    %v3489 = vshrl.u32 %v3488, 7
    %v3490 = vsub.s32 0, %v3489
    %v3491 = vrot.slane %v3261, %v3490
    %v3492 = vlaneseq
    %v3493 = vshrl.u32 %v3492, 7
    %v3494 = vsub.s32 0, %v3493
    %v3495 = vrot.slane %v3262, %v3494
    %v3496 = vlaneseq
    %v3497 = vshrl.u32 %v3496, 7
    %v3498 = vsub.s32 0, %v3497
    %v3499 = vrot.slane %v3263, %v3498
    %v3500 = vlaneseq
    %v3501 = vshrl.u32 %v3500, 7
    %v3502 = vsub.s32 0, %v3501
    %v3503 = vrot.slane %v3264, %v3502
    %v3504 = vlaneseq
    %v3505 = vshrl.u32 %v3504, 7
    %v3506 = vsub.s32 0, %v3505
    %v3507 = vrot.slane %v3265, %v3506
    %v3508 = vlaneseq
    %v3509 = vshrl.u32 %v3508, 7
    %v3510 = vsub.s32 0, %v3509
    %v3511 = vrot.slane %v3266, %v3510
    %v3512 = vlaneseq
    %v3513 = vshrl.u32 %v3512, 7
    %v3514 = vsub.s32 0, %v3513
    %v3515 = vrot.slane %v3267, %v3514
    %v3516 = vlaneseq
    %v3517 = vshrl.u32 %v3516, 7
    %v3518 = vsub.s32 0, %v3517
    %v3519 = vrot.slane %v3268, %v3518
    %v3520 = vlaneseq
    %v3521 = vshrl.u32 %v3520, 7
    %v3522 = vsub.s32 0, %v3521
    %v3523 = vrot.slane %v3269, %v3522
    %v3524 = vlaneseq
    %v3525 = vshrl.u32 %v3524, 7
    %v3526 = vsub.s32 0, %v3525
    %v3527 = vrot.slane %v3270, %v3526
    %v3528 = vlaneseq
    %v3529 = vshrl.u32 %v3528, 7
    %v3530 = vsub.s32 0, %v3529
    %v3531 = vrot.slane %v3271, %v3530
    %v3532 = vlaneseq
    %v3533 = vshrl.u32 %v3532, 7
    %v3534 = vsub.s32 0, %v3533
    %v3535 = vrot.slane %v3272, %v3534
    %v3536 = vlaneseq
    %v3537 = vshrl.u32 %v3536, 7
    %v3538 = vsub.s32 0, %v3537
    %v3539 = vrot.slane %v3273, %v3538
    %v3540 = vlaneseq
    %v3541 = vshrl.u32 %v3540, 7
    %v3542 = vsub.s32 0, %v3541
    %v3543 = vrot.slane %v3274, %v3542
    %v3544 = vlaneseq
    %v3545 = vshrl.u32 %v3544, 7
    %v3546 = vsub.s32 0, %v3545
    %v3547 = vrot.slane %v3275, %v3546
    %v3548 = vlaneseq
    %v3549 = vshrl.u32 %v3548, 7
    %v3550 = vsub.s32 0, %v3549
    %v3551 = vrot.slane %v3276, %v3550
    %v3552 = vlaneseq
    %v3553 = vshrl.u32 %v3552, 7
    %v3554 = vsub.s32 0, %v3553
    %v3555 = vrot.slane %v3277, %v3554
    %v3556 = vlaneseq
    %v3557 = vshrl.u32 %v3556, 7
    %v3558 = vsub.s32 0, %v3557
    %v3559 = vrot.slane %v3278, %v3558
    %v3560 = vlaneseq
    %v3561 = vshrl.u32 %v3560, 7
    %v3562 = vsub.s32 0, %v3561
    %v3563 = vrot.slane %v3279, %v3562
    %v3564 = vlaneseq
    %v3565 = vshrl.u32 %v3564, 7
    %v3566 = vsub.s32 0, %v3565
    %v3567 = vrot.slane %v3280, %v3566
    %v3568 = vlaneseq
    %v3569 = vshrl.u32 %v3568, 7
    %v3570 = vsub.s32 0, %v3569
    %v3571 = vrot.slane %v3281, %v3570
    %v3572 = vlaneseq
    %v3573 = vshrl.u32 %v3572, 7
    %v3574 = vsub.s32 0, %v3573
    %v3575 = vrot.slane %v3282, %v3574
    %v3576 = vlaneseq
    %v3577 = vshrl.u32 %v3576, 7
    %v3578 = vsub.s32 0, %v3577
    %v3579 = vrot.slane %v3283, %v3578
    %v3580 = vlaneseq
    %v3581 = vshrl.u32 %v3580, 7
    %v3582 = vsub.s32 0, %v3581
    %v3583 = vrot.slane %v3284, %v3582
    %v3584 = vlaneseq
    %v3585 = vshrl.u32 %v3584, 7
    %v3586 = vsub.s32 0, %v3585
    %v3587 = vrot.slane %v3285, %v3586
    %v3588 = vlaneseq
    %v3589 = vshrl.u32 %v3588, 7
    %v3590 = vsub.s32 0, %v3589
    %v3591 = vrot.slane %v3286, %v3590
    %v3592 = vlaneseq
    %v3593 = vshrl.u32 %v3592, 7
    %v3594 = vsub.s32 0, %v3593
    %v3595 = vrot.slane %v3287, %v3594
    %v3596 = vlaneseq
    %v3597 = vshrl.u32 %v3596, 7
    %v3598 = vsub.s32 0, %v3597
    %v3599 = vrot.slane %v3288, %v3598
    %v3600 = vlaneseq
    %v3601 = vshrl.u32 %v3600, 7
    %v3602 = vsub.s32 0, %v3601
    %v3603 = vrot.slane %v3289, %v3602
    %v3604 = vlaneseq
    %v3605 = vshrl.u32 %v3604, 7
    %v3606 = vsub.s32 0, %v3605
    %v3607 = vrot.slane %v3290, %v3606
    %v3608 = vlaneseq
    %v3609 = vshrl.u32 %v3608, 7
    %v3610 = vsub.s32 0, %v3609
    %v3611 = vrot.slane %v3291, %v3610
    %v3612 = vlaneseq
    %v3613 = vshrl.u32 %v3612, 7
    %v3614 = vsub.s32 0, %v3613
    %v3615 = vrot.slane %v3292, %v3614
    %v3616 = vlaneseq
    %v3617 = vshrl.u32 %v3616, 7
    %v3618 = vsub.s32 0, %v3617
    %v3619 = vrot.slane %v3293, %v3618
    %v3620 = vlaneseq
    %v3621 = vshrl.u32 %v3620, 7
    %v3622 = vsub.s32 0, %v3621
    %v3623 = vrot.slane %v3294, %v3622
    %v3624 = vlaneseq
    %v3625 = vshrl.u32 %v3624, 7
    %v3626 = vsub.s32 0, %v3625
    %v3627 = vrot.slane %v3295, %v3626
    %v3628 = vlaneseq
    %v3629 = vshrl.u32 %v3628, 7
    %v3630 = vsub.s32 0, %v3629
    %v3631 = vrot.slane %v3296, %v3630
    %v3632 = vlaneseq
    %v3633 = vshrl.u32 %v3632, 7
    %v3634 = vsub.s32 0, %v3633
    %v3635 = vrot.slane %v3297, %v3634
    %v3636 = vlaneseq
    %v3637 = vshrl.u32 %v3636, 7
    %v3638 = vsub.s32 0, %v3637
    %v3639 = vrot.slane %v3298, %v3638
    %v3640 = vlaneseq
    %v3641 = vshrl.u32 %v3640, 7
    %v3642 = vsub.s32 0, %v3641
    %v3643 = vrot.slane %v3299, %v3642
    %v3644 = vlaneseq
    %v3645 = vshrl.u32 %v3644, 7
    %v3646 = vsub.s32 0, %v3645
    %v3647 = vrot.slane %v3300, %v3646
    %v3648 = vlaneseq
    %v3649 = vshrl.u32 %v3648, 7
    %v3650 = vsub.s32 0, %v3649
    %v3651 = vrot.slane %v3301, %v3650
    %v3652 = vlaneseq
    %v3653 = vshrl.u32 %v3652, 7
    %v3654 = vsub.s32 0, %v3653
    %v3655 = vrot.slane %v3302, %v3654
    %v3656 = vlaneseq
    %v3657 = vshrl.u32 %v3656, 7
    %v3658 = vsub.s32 0, %v3657
    %v3659 = vrot.slane %v3303, %v3658
    %v3660 = vlaneseq
    %v3661 = vshrl.u32 %v3660, 7
    %v3662 = vsub.s32 0, %v3661
    %v3663 = vrot.slane %v3304, %v3662
    %v3664 = vlaneseq
    %v3665 = vshrl.u32 %v3664, 7
    %v3666 = vsub.s32 0, %v3665
    %v3667 = vrot.slane %v3305, %v3666
    %v3668 = vlaneseq
    %v3669 = vshrl.u32 %v3668, 7
    %v3670 = vsub.s32 0, %v3669
    %v3671 = vrot.slane %v3306, %v3670
    %v3672 = vlaneseq
    %v3673 = vshrl.u32 %v3672, 7
    %v3674 = vsub.s32 0, %v3673
    %v3675 = vrot.slane %v3307, %v3674
    %v3676 = vlaneseq
    %v3677 = vshrl.u32 %v3676, 7
    %v3678 = vsub.s32 0, %v3677
    %v3679 = vrot.slane %v3308, %v3678
    %v3680 = vlaneseq
    %v3681 = vshrl.u32 %v3680, 7
    %v3682 = vsub.s32 0, %v3681
    %v3683 = vrot.slane %v3309, %v3682
    %v3684 = vlaneseq
    %v3685 = vshrl.u32 %v3684, 7
    %v3686 = vsub.s32 0, %v3685
    %v3687 = vrot.slane %v3310, %v3686
    %v3688 = vlaneseq
    %v3689 = vshrl.u32 %v3688, 7
    %v3690 = vsub.s32 0, %v3689
    %v3691 = vrot.slane %v3311, %v3690
    %v3692 = vlaneseq
    %v3693 = vshrl.u32 %v3692, 7
    %v3694 = vsub.s32 0, %v3693
    %v3695 = vrot.slane %v3312, %v3694
    %v3696 = vlaneseq
    %v3697 = vshrl.u32 %v3696, 7
    %v3698 = vsub.s32 0, %v3697
    %v3699 = vrot.slane %v3313, %v3698
    %v3700 = vlaneseq
    %v3701 = vshrl.u32 %v3700, 7
    %v3702 = vsub.s32 0, %v3701
    %v3703 = vrot.slane %v3314, %v3702
    %v3704 = vlaneseq
    %v3705 = vshrl.u32 %v3704, 7
    %v3706 = vsub.s32 0, %v3705
    %v3707 = vrot.slane %v3315, %v3706
    %v3708 = vlaneseq
    %v3709 = vshrl.u32 %v3708, 7
    %v3710 = vsub.s32 0, %v3709
    %v3711 = vrot.slane %v3316, %v3710
    %vm3712 = vcmask 1041409
    %v3713 = vsel %vm3712, %v3463, %v3459
    %vm3714 = vcmask 1042434
    %v3715 = vsel %vm3714, %v3467, %v3713
    %vm3716 = vcmask 1043459
    %v3717 = vsel %vm3716, %v3471, %v3715
    %vm3718 = vcmask 1044484
    %v3719 = vsel %vm3718, %v3475, %v3717
    %vm3720 = vcmask 1045509
    %v3721 = vsel %vm3720, %v3479, %v3719
    %vm3722 = vcmask 1046534
    %v3723 = vsel %vm3722, %v3483, %v3721
    %vm3724 = vcmask 1047559
    %v3725 = vsel %vm3724, %v3487, %v3723
    %v3726 = vsel %vm3712, %v3495, %v3491
    %v3727 = vsel %vm3714, %v3499, %v3726
    %v3728 = vsel %vm3716, %v3503, %v3727
    %v3729 = vsel %vm3718, %v3507, %v3728
    %v3730 = vsel %vm3720, %v3511, %v3729
    %v3731 = vsel %vm3722, %v3515, %v3730
    %v3732 = vsel %vm3724, %v3519, %v3731
    %v3733 = vsel %vm3712, %v3527, %v3523
    %v3734 = vsel %vm3714, %v3531, %v3733
    %v3735 = vsel %vm3716, %v3535, %v3734
    %v3736 = vsel %vm3718, %v3539, %v3735
    %v3737 = vsel %vm3720, %v3543, %v3736
    %v3738 = vsel %vm3722, %v3547, %v3737
    %v3739 = vsel %vm3724, %v3551, %v3738
    %v3740 = vsel %vm3712, %v3559, %v3555
    %v3741 = vsel %vm3714, %v3563, %v3740
    %v3742 = vsel %vm3716, %v3567, %v3741
    %v3743 = vsel %vm3718, %v3571, %v3742
    %v3744 = vsel %vm3720, %v3575, %v3743
    %v3745 = vsel %vm3722, %v3579, %v3744
    %v3746 = vsel %vm3724, %v3583, %v3745
    %v3747 = vsel %vm3712, %v3591, %v3587
    %v3748 = vsel %vm3714, %v3595, %v3747
    %v3749 = vsel %vm3716, %v3599, %v3748
    %v3750 = vsel %vm3718, %v3603, %v3749
    %v3751 = vsel %vm3720, %v3607, %v3750
    %v3752 = vsel %vm3722, %v3611, %v3751
    %v3753 = vsel %vm3724, %v3615, %v3752
    %v3754 = vsel %vm3712, %v3623, %v3619
    %v3755 = vsel %vm3714, %v3627, %v3754
    %v3756 = vsel %vm3716, %v3631, %v3755
    %v3757 = vsel %vm3718, %v3635, %v3756
    %v3758 = vsel %vm3720, %v3639, %v3757
    %v3759 = vsel %vm3722, %v3643, %v3758
    %v3760 = vsel %vm3724, %v3647, %v3759
    %v3761 = vsel %vm3712, %v3655, %v3651
    %v3762 = vsel %vm3714, %v3659, %v3761
    %v3763 = vsel %vm3716, %v3663, %v3762
    %v3764 = vsel %vm3718, %v3667, %v3763
    %v3765 = vsel %vm3720, %v3671, %v3764
    %v3766 = vsel %vm3722, %v3675, %v3765
    %v3767 = vsel %vm3724, %v3679, %v3766
    %v3768 = vsel %vm3712, %v3687, %v3683
    %v3769 = vsel %vm3714, %v3691, %v3768
    %v3770 = vsel %vm3716, %v3695, %v3769
    %v3771 = vsel %vm3718, %v3699, %v3770
    %v3772 = vsel %vm3720, %v3703, %v3771
    %v3773 = vsel %vm3722, %v3707, %v3772
    %v3774 = vsel %vm3724, %v3711, %v3773
    %v3775 = vrot.slane %v3725, 7
    %v3776 = vrot.slane %v3732, 7
    %v3777 = vrot.slane %v3739, 7
    %v3778 = vrot.slane %v3746, 7
    %v3779 = vrot.slane %v3753, 7
    %v3780 = vrot.slane %v3760, 7
    %v3781 = vrot.slane %v3767, 7
    %v3782 = vrot.slane %v3774, 7
    %v3791 = vsel %vm180, 0.0, %v3775
    %v3792 = vsel %vm180, 0.0, %v3776
    %v3793 = vsel %vm180, 0.0, %v3777
    %v3794 = vsel %vm180, 0.0, %v3778
    %v3795 = vsel %vm180, 0.0, %v3779
    %v3796 = vsel %vm180, 0.0, %v3780
    %v3797 = vsel %vm180, 0.0, %v3781
    %v3798 = vsel %vm180, 0.0, %v3782
    %v3799 = vsel %vm180, %v3775, 0.0
    %v3800 = vsel %vm180, %v3776, 0.0
    %v3801 = vsel %vm180, %v3777, 0.0
    %v3802 = vsel %vm180, %v3778, 0.0
    %v3803 = vsel %vm180, %v3779, 0.0
    %v3804 = vsel %vm180, %v3780, 0.0
    %v3805 = vsel %vm180, %v3781, 0.0
    %v3806 = vsel %vm180, %v3782, 0.0
    %v3821 = vsel %vm346, %v347, %v350
    %v3822 = vrot.slane %v3791, 1
    %v3823 = vrot.slane %v3799, 1
    %v3824 = vsel %vm346, %v3822, %v3823
    %v3825 = vrot.slane %v3792, 1
    %v3826 = vrot.slane %v3800, 1
    %v3827 = vsel %vm346, %v3825, %v3826
    %v3828 = vrot.slane %v3793, 1
    %v3829 = vrot.slane %v3801, 1
    %v3830 = vsel %vm346, %v3828, %v3829
    %v3831 = vrot.slane %v3794, 1
    %v3832 = vrot.slane %v3802, 1
    %v3833 = vsel %vm346, %v3831, %v3832
    %v3834 = vrot.slane %v3795, 1
    %v3835 = vrot.slane %v3803, 1
    %v3836 = vsel %vm346, %v3834, %v3835
    %v3837 = vrot.slane %v3796, 1
    %v3838 = vrot.slane %v3804, 1
    %v3839 = vsel %vm346, %v3837, %v3838
    %v3840 = vrot.slane %v3797, 1
    %v3841 = vrot.slane %v3805, 1
    %v3842 = vsel %vm346, %v3840, %v3841
    %3843 = vrot.lane.b32.xlu0 %v3821, 64
    %v3844 = vpop.permute.xlu0 %3843
    %3845 = vrot.lane.b32.xlu0 %v3824, 64
    %v3846 = vpop.permute.xlu0 %3845
    %3847 = vrot.lane.b32.xlu0 %v3827, 64
    %v3848 = vpop.permute.xlu0 %3847
    %3849 = vrot.lane.b32.xlu0 %v3830, 64
    %v3850 = vpop.permute.xlu0 %3849
    %3851 = vrot.lane.b32.xlu0 %v3833, 64
    %v3852 = vpop.permute.xlu0 %3851
    %3853 = vrot.lane.b32.xlu0 %v3836, 64
    %v3854 = vpop.permute.xlu0 %3853
    %3855 = vrot.lane.b32.xlu0 %v3839, 64
    %v3856 = vpop.permute.xlu0 %3855
    %3857 = vrot.lane.b32.xlu0 %v3842, 64
    %v3858 = vpop.permute.xlu0 %3857
    %v3867 = vsel %vm523, %v524, %v527
    %v3868 = vrot.slane %v3791, 2
    %v3869 = vrot.slane %v3799, 2
    %v3870 = vsel %vm523, %v3868, %v3869
    %v3871 = vrot.slane %v3792, 2
    %v3872 = vrot.slane %v3800, 2
    %v3873 = vsel %vm523, %v3871, %v3872
    %v3874 = vrot.slane %v3793, 2
    %v3875 = vrot.slane %v3801, 2
    %v3876 = vsel %vm523, %v3874, %v3875
    %v3877 = vrot.slane %v3794, 2
    %v3878 = vrot.slane %v3802, 2
    %v3879 = vsel %vm523, %v3877, %v3878
    %v3880 = vrot.slane %v3795, 2
    %v3881 = vrot.slane %v3803, 2
    %v3882 = vsel %vm523, %v3880, %v3881
    %v3883 = vrot.slane %v3796, 2
    %v3884 = vrot.slane %v3804, 2
    %v3885 = vsel %vm523, %v3883, %v3884
    %v3886 = vrot.slane %v3797, 2
    %v3887 = vrot.slane %v3805, 2
    %v3888 = vsel %vm523, %v3886, %v3887
    %3898 = vrot.lane.b32.xlu0 %v3791, 64
    %v3899 = vpop.permute.xlu0 %3898
    %3900 = vrot.lane.b32.xlu0 %v3792, 64
    %v3901 = vpop.permute.xlu0 %3900
    %3902 = vrot.lane.b32.xlu0 %v3793, 64
    %v3903 = vpop.permute.xlu0 %3902
    %3904 = vrot.lane.b32.xlu0 %v3794, 64
    %v3905 = vpop.permute.xlu0 %3904
    %3906 = vrot.lane.b32.xlu0 %v3795, 64
    %v3907 = vpop.permute.xlu0 %3906
    %3908 = vrot.lane.b32.xlu0 %v3796, 64
    %v3909 = vpop.permute.xlu0 %3908
    %3910 = vrot.lane.b32.xlu0 %v3797, 64
    %v3911 = vpop.permute.xlu0 %3910
    %3912 = vrot.lane.b32.xlu0 %v3798, 64
    %v3913 = vpop.permute.xlu0 %3912
    %v3923 = vrot.slane %v3798, 1
    %v3924 = vrot.slane %v3806, 1
    %v3925 = vsel %vm346, %v3923, %v3924
    %v3934 = vrot.slane %v3798, 2
    %v3935 = vrot.slane %v3806, 2
    %v3936 = vsel %vm523, %v3934, %v3935
    %3937 = vrot.lane.b32.xlu0 %v3870, 64
    %v3938 = vpop.permute.xlu0 %3937
    %3939 = vrot.lane.b32.xlu0 %v3873, 64
    %v3940 = vpop.permute.xlu0 %3939
    %3941 = vrot.lane.b32.xlu0 %v3876, 64
    %v3942 = vpop.permute.xlu0 %3941
    %3943 = vrot.lane.b32.xlu0 %v3879, 64
    %v3944 = vpop.permute.xlu0 %3943
    %3945 = vrot.lane.b32.xlu0 %v3882, 64
    %v3946 = vpop.permute.xlu0 %3945
    %3947 = vrot.lane.b32.xlu0 %v3885, 64
    %v3948 = vpop.permute.xlu0 %3947
    %3949 = vrot.lane.b32.xlu0 %v3888, 64
    %v3950 = vpop.permute.xlu0 %3949
    %3951 = vrot.lane.b32.xlu0 %v3936, 64
    %v3952 = vpop.permute.xlu0 %3951
    %3961 = vrot.lane.b32.xlu0 %v3925, 64
    %v3962 = vpop.permute.xlu0 %3961
    %v3964 = vsel %vm1519, %v280, %v3844
    %v3965 = vsel %vm1519, %v3791, %v3846
    %v3966 = vsel %vm1519, %v3792, %v3848
    %v3967 = vsel %vm1519, %v3793, %v3850
    %v3968 = vsel %vm1519, %v3794, %v3852
    %v3969 = vsel %vm1519, %v3795, %v3854
    %v3970 = vsel %vm1519, %v3796, %v3856
    %v3971 = vsel %vm1519, %v3797, %v3858
    %v3972 = vsel %vm1519, %v3867, %v3899
    %v3973 = vsel %vm1519, %v3870, %v3901
    %v3974 = vsel %vm1519, %v3873, %v3903
    %v3975 = vsel %vm1519, %v3876, %v3905
    %v3976 = vsel %vm1519, %v3879, %v3907
    %v3977 = vsel %vm1519, %v3882, %v3909
    %v3978 = vsel %vm1519, %v3885, %v3911
    %v3979 = vsel %vm1519, %v3888, %v3913
    %v3980 = vsel %vm1519, %v3824, %v3938
    %v3981 = vsel %vm1519, %v3827, %v3940
    %v3982 = vsel %vm1519, %v3830, %v3942
    %v3983 = vsel %vm1519, %v3833, %v3944
    %v3984 = vsel %vm1519, %v3836, %v3946
    %v3985 = vsel %vm1519, %v3839, %v3948
    %v3986 = vsel %vm1519, %v3842, %v3950
    %v3987 = vsel %vm1519, %v3925, %v3952
    %v3988 = vsel %vm1519, %v3798, %v3962
    %v3990 = vlaneseq
    %v3991 = vshrl.u32 %v3990, 7
    %v3992 = vsub.s32 0, %v3991
    %v3993 = vrot.slane %v3389, %v3992
    %v3995 = vsel %vm1519, %v3873, 0
    %v3997 = vsel %vm1519, %v3876, 0
    %v3999 = vsel %vm1519, %v3879, 0
    %v4001 = vsel %vm1519, %v3882, 0
    %v4003 = vsel %vm1519, %v3885, 0
    %v4005 = vsel %vm1519, %v3888, 0
    %v4007 = vsel %vm1519, %v3936, 0
    %v4009 = vsel %vm1519, %v3867, 0
    %4011 = vmatprep.subr.mxu0 0.0
    %4012 = vmatpush1.msra.mxu0 %v3317
    %4013 = vmatprep.subr.mxu0 0.0
    %4014 = vmatpush1.msra.mxu0 %v3318
    %4015 = vmatprep.subr.mxu0 0.0
    %4016 = vmatpush1.msra.mxu0 %v3319
    %4017 = vmatprep.subr.mxu0 0.0
    %4018 = vmatpush1.msra.mxu0 %v3320
    %4019 = vmatprep.subr.mxu0 0.0
    %4020 = vmatpush1.msra.mxu0 %v3321
    %4021 = vmatprep.subr.mxu0 0.0
    %4022 = vmatpush1.msra.mxu0 %v3322
    %4023 = vmatprep.subr.mxu0 0.0
    %4024 = vmatpush1.msra.mxu0 %v3323
    %4025 = vmatprep.subr.mxu0 0.0
    %4026 = vmatpush1.msra.mxu0 %v3324
    %4027 = vmatprep.subr.mxu0 0.0
    %4028 = vmatpush1.msra.mxu0 %v3325
    %4029 = vmatprep.subr.mxu0 0.0
    %4030 = vmatpush1.msra.mxu0 %v3326
    %4031 = vmatprep.subr.mxu0 0.0
    %4032 = vmatpush1.msra.mxu0 %v3327
    %4033 = vmatprep.subr.mxu0 0.0
    %4034 = vmatpush1.msra.mxu0 %v3328
    %4035 = vmatprep.subr.mxu0 0.0
    %4036 = vmatpush1.msra.mxu0 %v3329
    %4037 = vmatprep.subr.mxu0 0.0
    %4038 = vmatpush1.msra.mxu0 %v3330
    %4039 = vmatprep.subr.mxu0 0.0
    %4040 = vmatpush1.msra.mxu0 %v3331
    %4041 = vmatprep.subr.mxu0 0.0
    %4042 = vmatpush1.msra.mxu0 %v3332
    %4043 = vmatprep.subr.mxu0 0.0
    %4044 = vmatpush1.msra.mxu0 %v3333
    %4045 = vmatprep.subr.mxu0 0.0
    %4046 = vmatpush1.msra.mxu0 %v3334
    %4047 = vmatprep.subr.mxu0 0.0
    %4048 = vmatpush1.msra.mxu0 %v3335
    %4049 = vmatprep.subr.mxu0 0.0
    %4050 = vmatpush1.msra.mxu0 %v3336
    %4051 = vmatprep.subr.mxu0 0.0
    %4052 = vmatpush1.msra.mxu0 %v3337
    %4053 = vmatprep.subr.mxu0 0.0
    %4054 = vmatpush1.msra.mxu0 %v3338
    %4055 = vmatprep.subr.mxu0 0.0
    %4056 = vmatpush1.msra.mxu0 %v3339
    %4057 = vmatprep.subr.mxu0 0.0
    %4058 = vmatpush1.msra.mxu0 %v3340
    %4059 = vmatprep.subr.mxu0 0.0
    %4060 = vmatpush1.msra.mxu0 %v3341
    %4061 = vmatprep.subr.mxu0 0.0
    %4062 = vmatpush1.msra.mxu0 %v3342
    %4063 = vmatprep.subr.mxu0 0.0
    %4064 = vmatpush1.msra.mxu0 %v3343
    %4065 = vmatprep.subr.mxu0 0.0
    %4066 = vmatpush1.msra.mxu0 %v3344
    %4067 = vmatprep.subr.mxu0 0.0
    %4068 = vmatpush1.msra.mxu0 %v3345
    %4069 = vmatprep.subr.mxu0 0.0
    %4070 = vmatpush1.msra.mxu0 %v3346
    %4071 = vmatprep.subr.mxu0 0.0
    %4072 = vmatpush1.msra.mxu0 %v3347
    %4073 = vmatprep.subr.mxu0 0.0
    %4074 = vmatpush1.msra.mxu0 %v3348
    %4075 = vmatprep.mubr.f32.mxu0 %v3972
    %4076 = vmatmul.mubr.f32.gmra.mrb[0].mxu0 %v3964
    %v4077 = vpop.f32.mrb[0].mxu0
    %v4078 = vadd.f32 %v3993, %v4077
    %v4079 = vpop.f32.mrb[0].mxu0
    %4080 = vmatprep.mubr.f32.mxu0 %v3973
    %4081 = vmatmul.mubr.f32.gmra.mrb[0].mxu0 %v3965
    %v4082 = vpop.f32.mrb[0].mxu0
    %v4083 = vadd.f32 %v3993, %v4082
    %v4084 = vpop.f32.mrb[0].mxu0
    %4085 = vmatprep.mubr.f32.mxu0 %v3974
    %4086 = vmatmul.mubr.f32.gmra.mrb[0].mxu0 %v3966
    %v4087 = vpop.f32.mrb[0].mxu0
    %v4088 = vadd.f32 %v3993, %v4087
    %v4089 = vpop.f32.mrb[0].mxu0
    %4090 = vmatprep.mubr.f32.mxu0 %v3975
    %4091 = vmatmul.mubr.f32.gmra.mrb[0].mxu0 %v3967
    %v4092 = vpop.f32.mrb[0].mxu0
    %v4093 = vadd.f32 %v3993, %v4092
    %v4094 = vpop.f32.mrb[0].mxu0
    %4095 = vmatprep.mubr.f32.mxu0 %v3976
    %4096 = vmatmul.mubr.f32.gmra.mrb[0].mxu0 %v3968
    %v4097 = vpop.f32.mrb[0].mxu0
    %v4098 = vadd.f32 %v3993, %v4097
    %v4099 = vpop.f32.mrb[0].mxu0
    %4100 = vmatprep.mubr.f32.mxu0 %v3977
    %4101 = vmatmul.mubr.f32.gmra.mrb[0].mxu0 %v3969
    %v4102 = vpop.f32.mrb[0].mxu0
    %v4103 = vadd.f32 %v3993, %v4102
    %v4104 = vpop.f32.mrb[0].mxu0
    %4105 = vmatprep.mubr.f32.mxu0 %v3978
    %4106 = vmatmul.mubr.f32.gmra.mrb[0].mxu0 %v3970
    %v4107 = vpop.f32.mrb[0].mxu0
    %v4108 = vadd.f32 %v3993, %v4107
    %v4109 = vpop.f32.mrb[0].mxu0
    %4110 = vmatprep.mubr.f32.mxu0 %v3979
    %4111 = vmatmul.mubr.f32.gmra.mrb[0].mxu0 %v3971
    %v4112 = vpop.f32.mrb[0].mxu0
    %v4113 = vadd.f32 %v3993, %v4112
    %v4114 = vpop.f32.mrb[0].mxu0
    %4115 = vdwg.mxu0
    %4116 = vmatprep.subr.mxu0 0.0
    %4117 = vmatpush1.msra.mxu0 %v3349
    %4118 = vmatprep.subr.mxu0 0.0
    %4119 = vmatpush1.msra.mxu0 %v3350
    %4120 = vmatprep.subr.mxu0 0.0
    %4121 = vmatpush1.msra.mxu0 %v3351
    %4122 = vmatprep.subr.mxu0 0.0
    %4123 = vmatpush1.msra.mxu0 %v3352
    %4124 = vmatprep.subr.mxu0 0.0
    %4125 = vmatpush1.msra.mxu0 %v3353
    %4126 = vmatprep.subr.mxu0 0.0
    %4127 = vmatpush1.msra.mxu0 %v3354
    %4128 = vmatprep.subr.mxu0 0.0
    %4129 = vmatpush1.msra.mxu0 %v3355
    %4130 = vmatprep.subr.mxu0 0.0
    %4131 = vmatpush1.msra.mxu0 %v3356
    %4132 = vmatprep.subr.mxu0 0.0
    %4133 = vmatpush1.msra.mxu0 %v3357
    %4134 = vmatprep.subr.mxu0 0.0
    %4135 = vmatpush1.msra.mxu0 %v3358
    %4136 = vmatprep.subr.mxu0 0.0
    %4137 = vmatpush1.msra.mxu0 %v3359
    %4138 = vmatprep.subr.mxu0 0.0
    %4139 = vmatpush1.msra.mxu0 %v3360
    %4140 = vmatprep.subr.mxu0 0.0
    %4141 = vmatpush1.msra.mxu0 %v3361
    %4142 = vmatprep.subr.mxu0 0.0
    %4143 = vmatpush1.msra.mxu0 %v3362
    %4144 = vmatprep.subr.mxu0 0.0
    %4145 = vmatpush1.msra.mxu0 %v3363
    %4146 = vmatprep.subr.mxu0 0.0
    %4147 = vmatpush1.msra.mxu0 %v3364
    %4148 = vmatprep.subr.mxu0 0.0
    %4149 = vmatpush1.msra.mxu0 %v3365
    %4150 = vmatprep.subr.mxu0 0.0
    %4151 = vmatpush1.msra.mxu0 %v3366
    %4152 = vmatprep.subr.mxu0 0.0
    %4153 = vmatpush1.msra.mxu0 %v3367
    %4154 = vmatprep.subr.mxu0 0.0
    %4155 = vmatpush1.msra.mxu0 %v3368
    %4156 = vmatprep.subr.mxu0 0.0
    %4157 = vmatpush1.msra.mxu0 %v3369
    %4158 = vmatprep.subr.mxu0 0.0
    %4159 = vmatpush1.msra.mxu0 %v3370
    %4160 = vmatprep.subr.mxu0 0.0
    %4161 = vmatpush1.msra.mxu0 %v3371
    %4162 = vmatprep.subr.mxu0 0.0
    %4163 = vmatpush1.msra.mxu0 %v3372
    %4164 = vmatprep.subr.mxu0 0.0
    %4165 = vmatpush1.msra.mxu0 %v3373
    %4166 = vmatprep.subr.mxu0 0.0
    %4167 = vmatpush1.msra.mxu0 %v3374
    %4168 = vmatprep.subr.mxu0 0.0
    %4169 = vmatpush1.msra.mxu0 %v3375
    %4170 = vmatprep.subr.mxu0 0.0
    %4171 = vmatpush1.msra.mxu0 %v3376
    %4172 = vmatprep.subr.mxu0 0.0
    %4173 = vmatpush1.msra.mxu0 %v3377
    %4174 = vmatprep.subr.mxu0 0.0
    %4175 = vmatpush1.msra.mxu0 %v3378
    %4176 = vmatprep.subr.mxu0 0.0
    %4177 = vmatpush1.msra.mxu0 %v3379
    %4178 = vmatprep.subr.mxu0 0.0
    %4179 = vmatpush1.msra.mxu0 %v3380
    %4180 = vmatprep.mubr.f32.mxu0 %v3966
    %4181 = vmatmul.mubr.f32.gmra.mrb[0].mxu0 %v3980
    %v4182 = vpop.f32.mrb[0].mxu0
    %v4183 = vadd.f32 %v4078, %v4182
    %v4184 = vpop.f32.mrb[0].mxu0
    %4185 = vmatprep.mubr.f32.mxu0 %v3967
    %4186 = vmatmul.mubr.f32.gmra.mrb[0].mxu0 %v3981
    %v4187 = vpop.f32.mrb[0].mxu0
    %v4188 = vadd.f32 %v4083, %v4187
    %v4189 = vpop.f32.mrb[0].mxu0
    %4190 = vmatprep.mubr.f32.mxu0 %v3968
    %4191 = vmatmul.mubr.f32.gmra.mrb[0].mxu0 %v3982
    %v4192 = vpop.f32.mrb[0].mxu0
    %v4193 = vadd.f32 %v4088, %v4192
    %v4194 = vpop.f32.mrb[0].mxu0
    %4195 = vmatprep.mubr.f32.mxu0 %v3969
    %4196 = vmatmul.mubr.f32.gmra.mrb[0].mxu0 %v3983
    %v4197 = vpop.f32.mrb[0].mxu0
    %v4198 = vadd.f32 %v4093, %v4197
    %v4199 = vpop.f32.mrb[0].mxu0
    %4200 = vmatprep.mubr.f32.mxu0 %v3970
    %4201 = vmatmul.mubr.f32.gmra.mrb[0].mxu0 %v3984
    %v4202 = vpop.f32.mrb[0].mxu0
    %v4203 = vadd.f32 %v4098, %v4202
    %v4204 = vpop.f32.mrb[0].mxu0
    %4205 = vmatprep.mubr.f32.mxu0 %v3971
    %4206 = vmatmul.mubr.f32.gmra.mrb[0].mxu0 %v3985
    %v4207 = vpop.f32.mrb[0].mxu0
    %v4208 = vadd.f32 %v4103, %v4207
    %v4209 = vpop.f32.mrb[0].mxu0
    %4210 = vmatprep.mubr.f32.mxu0 %v3988
    %4211 = vmatmul.mubr.f32.gmra.mrb[0].mxu0 %v3986
    %v4212 = vpop.f32.mrb[0].mxu0
    %v4213 = vadd.f32 %v4108, %v4212
    %v4214 = vpop.f32.mrb[0].mxu0
    %4215 = vmatprep.mubr.f32.mxu0 %v3964
    %4216 = vmatmul.mubr.f32.gmra.mrb[0].mxu0 %v3987
    %v4217 = vpop.f32.mrb[0].mxu0
    %v4218 = vadd.f32 %v4113, %v4217
    %v4219 = vpop.f32.mrb[0].mxu0
    %4220 = vdwg.mxu0
    %4221 = vmatprep.subr.mxu0 0.0
    %4222 = vmatpush1.msra.mxu0 %v3381
    %4223 = vmatprep.subr.mxu0 0.0
    %4224 = vmatpush1.msra.mxu0 %v3382
    %4225 = vmatprep.subr.mxu0 0.0
    %4226 = vmatpush1.msra.mxu0 %v3383
    %4227 = vmatprep.subr.mxu0 0.0
    %4228 = vmatpush1.msra.mxu0 %v3384
    %4229 = vmatprep.subr.mxu0 0.0
    %4230 = vmatpush1.msra.mxu0 %v3385
    %4231 = vmatprep.subr.mxu0 0.0
    %4232 = vmatpush1.msra.mxu0 %v3386
    %4233 = vmatprep.subr.mxu0 0.0
    %4234 = vmatpush1.msra.mxu0 %v3387
    %4235 = vmatprep.subr.mxu0 0.0
    %4236 = vmatpush1.msra.mxu0 %v3388
    %4237 = vmatprep.subr.mxu0 0.0
    %4238 = vmatpush1.msra.mxu0 0.0
    %4239 = vmatprep.subr.mxu0 0.0
    %4240 = vmatpush1.msra.mxu0 0.0
    %4241 = vmatprep.subr.mxu0 0.0
    %4242 = vmatpush1.msra.mxu0 0.0
    %4243 = vmatprep.subr.mxu0 0.0
    %4244 = vmatpush1.msra.mxu0 0.0
    %4245 = vmatprep.subr.mxu0 0.0
    %4246 = vmatpush1.msra.mxu0 0.0
    %4247 = vmatprep.subr.mxu0 0.0
    %4248 = vmatpush1.msra.mxu0 0.0
    %4249 = vmatprep.subr.mxu0 0.0
    %4250 = vmatpush1.msra.mxu0 0.0
    %4251 = vmatprep.subr.mxu0 0.0
    %4252 = vmatpush1.msra.mxu0 0.0
    %4253 = vmatprep.subr.mxu0 0.0
    %4254 = vmatpush1.msra.mxu0 0.0
    %4255 = vmatprep.subr.mxu0 0.0
    %4256 = vmatpush1.msra.mxu0 0.0
    %4257 = vmatprep.subr.mxu0 0.0
    %4258 = vmatpush1.msra.mxu0 0.0
    %4259 = vmatprep.subr.mxu0 0.0
    %4260 = vmatpush1.msra.mxu0 0.0
    %4261 = vmatprep.subr.mxu0 0.0
    %4262 = vmatpush1.msra.mxu0 0.0
    %4263 = vmatprep.subr.mxu0 0.0
    %4264 = vmatpush1.msra.mxu0 0.0
    %4265 = vmatprep.subr.mxu0 0.0
    %4266 = vmatpush1.msra.mxu0 0.0
    %4267 = vmatprep.subr.mxu0 0.0
    %4268 = vmatpush1.msra.mxu0 0.0
    %4269 = vmatprep.subr.mxu0 0.0
    %4270 = vmatpush1.msra.mxu0 0.0
    %4271 = vmatprep.subr.mxu0 0.0
    %4272 = vmatpush1.msra.mxu0 0.0
    %4273 = vmatprep.subr.mxu0 0.0
    %4274 = vmatpush1.msra.mxu0 0.0
    %4275 = vmatprep.subr.mxu0 0.0
    %4276 = vmatpush1.msra.mxu0 0.0
    %4277 = vmatprep.subr.mxu0 0.0
    %4278 = vmatpush1.msra.mxu0 0.0
    %4279 = vmatprep.subr.mxu0 0.0
    %4280 = vmatpush1.msra.mxu0 0.0
    %4281 = vmatprep.subr.mxu0 0.0
    %4282 = vmatpush1.msra.mxu0 0.0
    %4283 = vmatprep.subr.mxu0 0.0
    %4284 = vmatpush1.msra.mxu0 0.0
    %4285 = vmatprep.mubr.f32.mxu0 0.0
    %4286 = vmatmul.mubr.f32.gmra.mrb[0].mxu0 %v3995
    %v4287 = vpop.f32.mrb[0].mxu0
    %v4288 = vadd.f32 %v4183, %v4287
    %v4289 = vpop.f32.mrb[0].mxu0
    %4290 = vmatprep.mubr.f32.mxu0 0.0
    %4291 = vmatmul.mubr.f32.gmra.mrb[0].mxu0 %v3997
    %v4292 = vpop.f32.mrb[0].mxu0
    %v4293 = vadd.f32 %v4188, %v4292
    %v4294 = vpop.f32.mrb[0].mxu0
    %4295 = vmatprep.mubr.f32.mxu0 0.0
    %4296 = vmatmul.mubr.f32.gmra.mrb[0].mxu0 %v3999
    %v4297 = vpop.f32.mrb[0].mxu0
    %v4298 = vadd.f32 %v4193, %v4297
    %v4299 = vpop.f32.mrb[0].mxu0
    %4300 = vmatprep.mubr.f32.mxu0 0.0
    %4301 = vmatmul.mubr.f32.gmra.mrb[0].mxu0 %v4001
    %v4302 = vpop.f32.mrb[0].mxu0
    %v4303 = vadd.f32 %v4198, %v4302
    %v4304 = vpop.f32.mrb[0].mxu0
    %4305 = vmatprep.mubr.f32.mxu0 0.0
    %4306 = vmatmul.mubr.f32.gmra.mrb[0].mxu0 %v4003
    %v4307 = vpop.f32.mrb[0].mxu0
    %v4308 = vadd.f32 %v4203, %v4307
    %v4309 = vpop.f32.mrb[0].mxu0
    %4310 = vmatprep.mubr.f32.mxu0 0.0
    %4311 = vmatmul.mubr.f32.gmra.mrb[0].mxu0 %v4005
    %v4312 = vpop.f32.mrb[0].mxu0
    %v4313 = vadd.f32 %v4208, %v4312
    %v4314 = vpop.f32.mrb[0].mxu0
    %4315 = vmatprep.mubr.f32.mxu0 0.0
    %4316 = vmatmul.mubr.f32.gmra.mrb[0].mxu0 %v4007
    %v4317 = vpop.f32.mrb[0].mxu0
    %v4318 = vadd.f32 %v4213, %v4317
    %v4319 = vpop.f32.mrb[0].mxu0
    %4320 = vmatprep.mubr.f32.mxu0 0.0
    %4321 = vmatmul.mubr.f32.gmra.mrb[0].mxu0 %v4009
    %v4322 = vpop.f32.mrb[0].mxu0
    %v4323 = vadd.f32 %v4218, %v4322
    %v4324 = vpop.f32.mrb[0].mxu0
    %4325 = vdwg.mxu0
    %v4326 = vsel %vm1519, %v4288, 0.0
    %v4327 = vsel %vm1519, %v4293, 0.0
    %v4328 = vadd.f32 %v4326, %v4327
    %v4329 = vsel %vm1519, %v4298, 0.0
    %v4330 = vadd.f32 %v4328, %v4329
    %v4331 = vsel %vm1519, %v4303, 0.0
    %v4332 = vadd.f32 %v4330, %v4331
    %v4333 = vsel %vm1519, %v4308, 0.0
    %v4334 = vadd.f32 %v4332, %v4333
    %v4335 = vsel %vm1519, %v4313, 0.0
    %v4336 = vadd.f32 %v4334, %v4335
    %v4337 = vsel %vm1519, %v4318, 0.0
    %v4338 = vadd.f32 %v4336, %v4337
    %v4339 = vsel %vm1519, %v4323, 0.0
    %v4340 = vadd.f32 %v4338, %v4339
    %v4341 = vrot.slane %v4340, 4
    %v4342 = vadd.f32 %v4340, %v4341
    %v4343 = vrot.slane %v4342, 2
    %v4344 = vadd.f32 %v4342, %v4343
    %v4345 = vrot.slane %v4344, 1
    %v4346 = vadd.f32 %v4344, %v4345
    %v4347 = vmul.f32 %v4288, %v4288
    %v4348 = vmul.f32 %v4293, %v4293
    %v4349 = vmul.f32 %v4298, %v4298
    %v4350 = vmul.f32 %v4303, %v4303
    %v4351 = vmul.f32 %v4308, %v4308
    %v4352 = vmul.f32 %v4313, %v4313
    %v4353 = vmul.f32 %v4318, %v4318
    %v4354 = vmul.f32 %v4323, %v4323
    %v4355 = vsel %vm1519, %v4347, 0.0
    %v4356 = vsel %vm1519, %v4348, 0.0
    %v4357 = vadd.f32 %v4355, %v4356
    %v4358 = vsel %vm1519, %v4349, 0.0
    %v4359 = vadd.f32 %v4357, %v4358
    %v4360 = vsel %vm1519, %v4350, 0.0
    %v4361 = vadd.f32 %v4359, %v4360
    %v4362 = vsel %vm1519, %v4351, 0.0
    %v4363 = vadd.f32 %v4361, %v4362
    %v4364 = vsel %vm1519, %v4352, 0.0
    %v4365 = vadd.f32 %v4363, %v4364
    %v4366 = vsel %vm1519, %v4353, 0.0
    %v4367 = vadd.f32 %v4365, %v4366
    %v4368 = vsel %vm1519, %v4354, 0.0
    %v4369 = vadd.f32 %v4367, %v4368
    %v4370 = vrot.slane %v4369, 4
    %v4371 = vadd.f32 %v4369, %v4370
    %v4372 = vrot.slane %v4371, 2
    %v4373 = vadd.f32 %v4371, %v4372
    %v4374 = vrot.slane %v4373, 1
    %v4375 = vadd.f32 %v4373, %v4374
    %v4376 = vmul.f32 %v4346, 0.015625
    %v4377 = vmul.f32 %v4375, 0.015625
    %v4378 = vmul.f32 %v4376, %v4376
    %v4379 = vsub.f32 %v4377, %v4378
    %v4380 = vmax.f32 %v4379, 0.0
    %v4381 = vsub.f32 %v4288, %v4376
    %v4382 = vsub.f32 %v4293, %v4376
    %v4383 = vsub.f32 %v4298, %v4376
    %v4384 = vsub.f32 %v4303, %v4376
    %v4385 = vsub.f32 %v4308, %v4376
    %v4386 = vsub.f32 %v4313, %v4376
    %v4387 = vsub.f32 %v4318, %v4376
    %v4388 = vsub.f32 %v4323, %v4376
    %v4389 = vadd.f32 %v4380, 1e-05
    %v4390 = vrsqrt.pop %v4389
    %v4391 = vmul.f32 %v4381, %v4390
    %v4392 = vmul.f32 %v4382, %v4390
    %v4393 = vmul.f32 %v4383, %v4390
    %v4394 = vmul.f32 %v4384, %v4390
    %v4395 = vmul.f32 %v4385, %v4390
    %v4396 = vmul.f32 %v4386, %v4390
    %v4397 = vmul.f32 %v4387, %v4390
    %v4398 = vmul.f32 %v4388, %v4390
    %v4400 = vlaneseq
    %v4401 = vshrl.u32 %v4400, 7
    %v4402 = vsub.s32 0, %v4401
    %v4403 = vrot.slane %v3390, %v4402
    %v4405 = vmul.f32 %v4391, %v4403
    %v4406 = vmul.f32 %v4392, %v4403
    %v4407 = vmul.f32 %v4393, %v4403
    %v4408 = vmul.f32 %v4394, %v4403
    %v4409 = vmul.f32 %v4395, %v4403
    %v4410 = vmul.f32 %v4396, %v4403
    %v4411 = vmul.f32 %v4397, %v4403
    %v4412 = vmul.f32 %v4398, %v4403
    %v4414 = vlaneseq
    %v4415 = vshrl.u32 %v4414, 7
    %v4416 = vsub.s32 0, %v4415
    %v4417 = vrot.slane %v3391, %v4416
    %v4419 = vadd.f32 %v4405, %v4417
    %v4420 = vadd.f32 %v4406, %v4417
    %v4421 = vadd.f32 %v4407, %v4417
    %v4422 = vadd.f32 %v4408, %v4417
    %v4423 = vadd.f32 %v4409, %v4417
    %v4424 = vadd.f32 %v4410, %v4417
    %v4425 = vadd.f32 %v4411, %v4417
    %v4426 = vadd.f32 %v4412, %v4417
    %v4427 = vmax.f32 %v4419, 0.0
    %v4428 = vmax.f32 %v4420, 0.0
    %v4429 = vmax.f32 %v4421, 0.0
    %v4430 = vmax.f32 %v4422, 0.0
    %v4431 = vmax.f32 %v4423, 0.0
    %v4432 = vmax.f32 %v4424, 0.0
    %v4433 = vmax.f32 %v4425, 0.0
    %v4434 = vmax.f32 %v4426, 0.0
    %v4443 = vcombine.high %v4427, %v4427
    %v4445 = vunpack.c.l.s4 1983009808
    %v4446 = vunpack.c.0.s8 %v4445
    %v4447 = vlaneseq
    %v4448 = vshrl.u32 %v4447, 7
    %v4449 = vsub.s32 %v4446, %v4448
    %v4450 = vrot.slane %v4427, %v4449
    %v4452 = vunpack.c.l.s4 1983009808
    %v4453 = vunpack.c.0.s8 %v4452
    %v4454 = vlaneseq
    %v4455 = vshrl.u32 %v4454, 7
    %v4456 = vsub.s32 %v4453, %v4455
    %v4457 = vrot.slane %v4443, %v4456
    %v4458 = vcombine.high %v4450, %v4450
    %v4459 = vcombine.high %v4457, %v4457
    %v4460 = vcombine.high %v4428, %v4428
    %v4462 = vunpack.c.l.s4 1983009808
    %v4463 = vunpack.c.0.s8 %v4462
    %v4464 = vlaneseq
    %v4465 = vshrl.u32 %v4464, 7
    %v4466 = vsub.s32 %v4463, %v4465
    %v4467 = vrot.slane %v4428, %v4466
    %v4469 = vunpack.c.l.s4 1983009808
    %v4470 = vunpack.c.0.s8 %v4469
    %v4471 = vlaneseq
    %v4472 = vshrl.u32 %v4471, 7
    %v4473 = vsub.s32 %v4470, %v4472
    %v4474 = vrot.slane %v4460, %v4473
    %v4475 = vcombine.high %v4467, %v4467
    %v4476 = vcombine.high %v4474, %v4474
    %v4477 = vcombine.high %v4429, %v4429
    %v4479 = vunpack.c.l.s4 1983009808
    %v4480 = vunpack.c.0.s8 %v4479
    %v4481 = vlaneseq
    %v4482 = vshrl.u32 %v4481, 7
    %v4483 = vsub.s32 %v4480, %v4482
    %v4484 = vrot.slane %v4429, %v4483
    %v4486 = vunpack.c.l.s4 1983009808
    %v4487 = vunpack.c.0.s8 %v4486
    %v4488 = vlaneseq
    %v4489 = vshrl.u32 %v4488, 7
    %v4490 = vsub.s32 %v4487, %v4489
    %v4491 = vrot.slane %v4477, %v4490
    %v4492 = vcombine.high %v4484, %v4484
    %v4493 = vcombine.high %v4491, %v4491
    %v4494 = vcombine.high %v4430, %v4430
    %v4496 = vunpack.c.l.s4 1983009808
    %v4497 = vunpack.c.0.s8 %v4496
    %v4498 = vlaneseq
    %v4499 = vshrl.u32 %v4498, 7
    %v4500 = vsub.s32 %v4497, %v4499
    %v4501 = vrot.slane %v4430, %v4500
    %v4503 = vunpack.c.l.s4 1983009808
    %v4504 = vunpack.c.0.s8 %v4503
    %v4505 = vlaneseq
    %v4506 = vshrl.u32 %v4505, 7
    %v4507 = vsub.s32 %v4504, %v4506
    %v4508 = vrot.slane %v4494, %v4507
    %v4509 = vcombine.high %v4501, %v4501
    %v4510 = vcombine.high %v4508, %v4508
    %v4511 = vcombine.high %v4431, %v4431
    %v4513 = vunpack.c.l.s4 1983009808
    %v4514 = vunpack.c.0.s8 %v4513
    %v4515 = vlaneseq
    %v4516 = vshrl.u32 %v4515, 7
    %v4517 = vsub.s32 %v4514, %v4516
    %v4518 = vrot.slane %v4431, %v4517
    %v4520 = vunpack.c.l.s4 1983009808
    %v4521 = vunpack.c.0.s8 %v4520
    %v4522 = vlaneseq
    %v4523 = vshrl.u32 %v4522, 7
    %v4524 = vsub.s32 %v4521, %v4523
    %v4525 = vrot.slane %v4511, %v4524
    %v4526 = vcombine.high %v4518, %v4518
    %v4527 = vcombine.high %v4525, %v4525
    %v4528 = vcombine.high %v4432, %v4432
    %v4530 = vunpack.c.l.s4 1983009808
    %v4531 = vunpack.c.0.s8 %v4530
    %v4532 = vlaneseq
    %v4533 = vshrl.u32 %v4532, 7
    %v4534 = vsub.s32 %v4531, %v4533
    %v4535 = vrot.slane %v4432, %v4534
    %v4537 = vunpack.c.l.s4 1983009808
    %v4538 = vunpack.c.0.s8 %v4537
    %v4539 = vlaneseq
    %v4540 = vshrl.u32 %v4539, 7
    %v4541 = vsub.s32 %v4538, %v4540
    %v4542 = vrot.slane %v4528, %v4541
    %v4543 = vcombine.high %v4535, %v4535
    %v4544 = vcombine.high %v4542, %v4542
    %v4545 = vcombine.high %v4433, %v4433
    %v4547 = vunpack.c.l.s4 1983009808
    %v4548 = vunpack.c.0.s8 %v4547
    %v4549 = vlaneseq
    %v4550 = vshrl.u32 %v4549, 7
    %v4551 = vsub.s32 %v4548, %v4550
    %v4552 = vrot.slane %v4433, %v4551
    %v4554 = vunpack.c.l.s4 1983009808
    %v4555 = vunpack.c.0.s8 %v4554
    %v4556 = vlaneseq
    %v4557 = vshrl.u32 %v4556, 7
    %v4558 = vsub.s32 %v4555, %v4557
    %v4559 = vrot.slane %v4545, %v4558
    %v4560 = vcombine.high %v4552, %v4552
    %v4561 = vcombine.high %v4559, %v4559
    %v4562 = vcombine.high %v4434, %v4434
    %v4564 = vunpack.c.l.s4 1983009808
    %v4565 = vunpack.c.0.s8 %v4564
    %v4566 = vlaneseq
    %v4567 = vshrl.u32 %v4566, 7
    %v4568 = vsub.s32 %v4565, %v4567
    %v4569 = vrot.slane %v4434, %v4568
    %v4571 = vunpack.c.l.s4 1983009808
    %v4572 = vunpack.c.0.s8 %v4571
    %v4573 = vlaneseq
    %v4574 = vshrl.u32 %v4573, 7
    %v4575 = vsub.s32 %v4572, %v4574
    %v4576 = vrot.slane %v4562, %v4575
    %v4577 = vcombine.high %v4569, %v4569
    %v4578 = vcombine.high %v4576, %v4576
    %v4611 = vmax.f32 %v4450, %v4467
    %v4612 = vmax.f32 %v4458, %v4475
    %v4613 = vmax.f32 %v4457, %v4474
    %v4614 = vmax.f32 %v4459, %v4476
    %v4615 = vmax.f32 %v4484, %v4501
    %v4616 = vmax.f32 %v4492, %v4509
    %v4617 = vmax.f32 %v4491, %v4508
    %v4618 = vmax.f32 %v4493, %v4510
    %v4619 = vmax.f32 %v4518, %v4535
    %v4620 = vmax.f32 %v4526, %v4543
    %v4621 = vmax.f32 %v4525, %v4542
    %v4622 = vmax.f32 %v4527, %v4544
    %v4623 = vmax.f32 %v4552, %v4569
    %v4624 = vmax.f32 %v4560, %v4577
    %v4625 = vmax.f32 %v4559, %v4576
    %v4626 = vmax.f32 %v4561, %v4578
    %v4643 = vrot.slane %v4611, 7
    %v4644 = vrot.slane %v4643, 2
    %v4645 = vrot.slane %v4612, 7
    %v4646 = vrot.slane %v4645, 2
    %v4647 = vrot.slane %v4613, 7
    %v4648 = vrot.slane %v4647, 2
    %v4649 = vrot.slane %v4614, 7
    %v4650 = vrot.slane %v4649, 2
    %v4651 = vrot.slane %v4615, 7
    %v4652 = vrot.slane %v4651, 2
    %v4653 = vrot.slane %v4616, 7
    %v4654 = vrot.slane %v4653, 2
    %v4655 = vrot.slane %v4617, 7
    %v4656 = vrot.slane %v4655, 2
    %v4657 = vrot.slane %v4618, 7
    %v4658 = vrot.slane %v4657, 2
    %v4659 = vrot.slane %v4619, 7
    %v4660 = vrot.slane %v4659, 2
    %v4661 = vrot.slane %v4620, 7
    %v4662 = vrot.slane %v4661, 2
    %v4663 = vrot.slane %v4621, 7
    %v4664 = vrot.slane %v4663, 2
    %v4665 = vrot.slane %v4622, 7
    %v4666 = vrot.slane %v4665, 2
    %v4667 = vrot.slane %v4623, 7
    %v4668 = vrot.slane %v4667, 2
    %v4669 = vrot.slane %v4624, 7
    %v4670 = vrot.slane %v4669, 2
    %v4671 = vrot.slane %v4625, 7
    %v4672 = vrot.slane %v4671, 2
    %v4673 = vrot.slane %v4626, 7
    %v4674 = vrot.slane %v4673, 2
    %v4691 = vmax.f32 %v4611, %v4644
    %v4692 = vmax.f32 %v4612, %v4646
    %v4693 = vmax.f32 %v4613, %v4648
    %v4694 = vmax.f32 %v4614, %v4650
    %v4695 = vmax.f32 %v4615, %v4652
    %v4696 = vmax.f32 %v4616, %v4654
    %v4697 = vmax.f32 %v4617, %v4656
    %v4698 = vmax.f32 %v4618, %v4658
    %v4699 = vmax.f32 %v4619, %v4660
    %v4700 = vmax.f32 %v4620, %v4662
    %v4701 = vmax.f32 %v4621, %v4664
    %v4702 = vmax.f32 %v4622, %v4666
    %v4703 = vmax.f32 %v4623, %v4668
    %v4704 = vmax.f32 %v4624, %v4670
    %v4705 = vmax.f32 %v4625, %v4672
    %v4706 = vmax.f32 %v4626, %v4674
    %v4707 = vld [vmem:[%s9] sm:$0xff]
    %v4708 = vld [vmem:[%s9 + $0x8] sm:$0xff]
    %v4709 = vld [vmem:[%s9 + $0x10] sm:$0xff]
    %v4710 = vld [vmem:[%s9 + $0x18] sm:$0xff]
    %v4711 = vld [vmem:[%s9 + $0x20] sm:$0xff]
    %v4712 = vld [vmem:[%s9 + $0x28] sm:$0xff]
    %v4713 = vld [vmem:[%s9 + $0x30] sm:$0xff]
    %v4714 = vld [vmem:[%s9 + $0x38] sm:$0xff]
    %v4715 = vld [vmem:[%s9 + $0x40] sm:$0xff]
    %v4716 = vld [vmem:[%s9 + $0x48] sm:$0xff]
    %v4717 = vld [vmem:[%s9 + $0x50] sm:$0xff]
    %v4718 = vld [vmem:[%s9 + $0x58] sm:$0xff]
    %v4719 = vld [vmem:[%s9 + $0x60] sm:$0xff]
    %v4720 = vld [vmem:[%s9 + $0x68] sm:$0xff]
    %v4721 = vld [vmem:[%s9 + $0x70] sm:$0xff]
    %v4722 = vld [vmem:[%s9 + $0x78] sm:$0xff]
    %v4723 = vld [vmem:[%s9 + $0x80] sm:$0xff]
    %v4724 = vld [vmem:[%s9 + $0x88] sm:$0xff]
    %v4725 = vld [vmem:[%s9 + $0x90] sm:$0xff]
    %v4726 = vld [vmem:[%s9 + $0x98] sm:$0xff]
    %v4727 = vld [vmem:[%s9 + $0xa0] sm:$0xff]
    %v4728 = vld [vmem:[%s9 + $0xa8] sm:$0xff]
    %v4729 = vld [vmem:[%s9 + $0xb0] sm:$0xff]
    %v4730 = vld [vmem:[%s9 + $0xb8] sm:$0xff]
    %v4731 = vld [vmem:[%s9 + $0xc0] sm:$0xff]
    %v4732 = vld [vmem:[%s9 + $0xc8] sm:$0xff]
    %v4733 = vld [vmem:[%s9 + $0xd0] sm:$0xff]
    %v4734 = vld [vmem:[%s9 + $0xd8] sm:$0xff]
    %v4735 = vld [vmem:[%s9 + $0xe0] sm:$0xff]
    %v4736 = vld [vmem:[%s9 + $0xe8] sm:$0xff]
    %v4737 = vld [vmem:[%s9 + $0xf0] sm:$0xff]
    %v4738 = vld [vmem:[%s9 + $0xf8] sm:$0xff]
    %v4739 = vld [vmem:[%s9 + $0x100] sm:$0xff]
    %v4740 = vld [vmem:[%s9 + $0x108] sm:$0xff]
    %v4741 = vld [vmem:[%s9 + $0x110] sm:$0xff]
    %v4742 = vld [vmem:[%s9 + $0x118] sm:$0xff]
    %v4743 = vld [vmem:[%s9 + $0x120] sm:$0xff]
    %v4744 = vld [vmem:[%s9 + $0x128] sm:$0xff]
    %v4745 = vld [vmem:[%s9 + $0x130] sm:$0xff]
    %v4746 = vld [vmem:[%s9 + $0x138] sm:$0xff]
    %v4747 = vld [vmem:[%s9 + $0x140] sm:$0xff]
    %v4748 = vld [vmem:[%s9 + $0x148] sm:$0xff]
    %v4749 = vld [vmem:[%s9 + $0x150] sm:$0xff]
    %v4750 = vld [vmem:[%s9 + $0x158] sm:$0xff]
    %v4751 = vld [vmem:[%s9 + $0x160] sm:$0xff]
    %v4752 = vld [vmem:[%s9 + $0x168] sm:$0xff]
    %v4753 = vld [vmem:[%s9 + $0x170] sm:$0xff]
    %v4754 = vld [vmem:[%s9 + $0x178] sm:$0xff]
    %v4755 = vld [vmem:[%s9 + $0x180] sm:$0xff]
    %v4756 = vld [vmem:[%s9 + $0x188] sm:$0xff]
    %v4757 = vld [vmem:[%s9 + $0x190] sm:$0xff]
    %v4758 = vld [vmem:[%s9 + $0x198] sm:$0xff]
    %v4759 = vld [vmem:[%s9 + $0x1a0] sm:$0xff]
    %v4760 = vld [vmem:[%s9 + $0x1a8] sm:$0xff]
    %v4761 = vld [vmem:[%s9 + $0x1b0] sm:$0xff]
    %v4762 = vld [vmem:[%s9 + $0x1b8] sm:$0xff]
    %v4763 = vld [vmem:[%s9 + $0x1c0] sm:$0xff]
    %v4764 = vld [vmem:[%s9 + $0x1c8] sm:$0xff]
    %v4765 = vld [vmem:[%s9 + $0x1d0] sm:$0xff]
    %v4766 = vld [vmem:[%s9 + $0x1d8] sm:$0xff]
    %v4767 = vld [vmem:[%s9 + $0x1e0] sm:$0xff]
    %v4768 = vld [vmem:[%s9 + $0x1e8] sm:$0xff]
    %v4769 = vld [vmem:[%s9 + $0x1f0] sm:$0xff]
    %v4770 = vld [vmem:[%s9 + $0x1f8] sm:$0xff]
    %v4771 = vld [vmem:[%s9 + $0x200] sm:$0xff]
    %v4772 = vld [vmem:[%s9 + $0x208] sm:$0xff]
    %v4773 = vld [vmem:[%s9 + $0x210] sm:$0xff]
    %v4774 = vld [vmem:[%s9 + $0x218] sm:$0xff]
    %v4775 = vld [vmem:[%s9 + $0x220] sm:$0xff]
    %v4776 = vld [vmem:[%s9 + $0x228] sm:$0xff]
    %v4777 = vld [vmem:[%s9 + $0x230] sm:$0xff]
    %v4778 = vld [vmem:[%s9 + $0x238] sm:$0xff]
    %v4779 = vld [vmem:[%s10] sm:$0x1]
    %v4780 = vld [vmem:[%s11] sm:$0x1]
    %v4781 = vld [vmem:[%s12] sm:$0x1]
    %v4798 = vlaneseq
    %v4799 = vshrl.u32 %v4798, 7
    %v4800 = vsub.s32 0, %v4799
    %v4801 = vrot.slane %v4691, %v4800
    %v4802 = vlaneseq
    %v4803 = vshrl.u32 %v4802, 7
    %v4804 = vsub.s32 0, %v4803
    %v4805 = vrot.slane %v4692, %v4804
    %v4806 = vlaneseq
    %v4807 = vshrl.u32 %v4806, 7
    %v4808 = vsub.s32 0, %v4807
    %v4809 = vrot.slane %v4693, %v4808
    %v4810 = vlaneseq
    %v4811 = vshrl.u32 %v4810, 7
    %v4812 = vsub.s32 0, %v4811
    %v4813 = vrot.slane %v4694, %v4812
    %v4814 = vlaneseq
    %v4815 = vshrl.u32 %v4814, 7
    %v4816 = vsub.s32 0, %v4815
    %v4817 = vrot.slane %v4695, %v4816
    %v4818 = vlaneseq
    %v4819 = vshrl.u32 %v4818, 7
    %v4820 = vsub.s32 0, %v4819
    %v4821 = vrot.slane %v4696, %v4820
    %v4822 = vlaneseq
    %v4823 = vshrl.u32 %v4822, 7
    %v4824 = vsub.s32 0, %v4823
    %v4825 = vrot.slane %v4697, %v4824
    %v4826 = vlaneseq
    %v4827 = vshrl.u32 %v4826, 7
    %v4828 = vsub.s32 0, %v4827
    %v4829 = vrot.slane %v4698, %v4828
    %v4830 = vlaneseq
    %v4831 = vshrl.u32 %v4830, 7
    %v4832 = vsub.s32 0, %v4831
    %v4833 = vrot.slane %v4699, %v4832
    %v4834 = vlaneseq
    %v4835 = vshrl.u32 %v4834, 7
    %v4836 = vsub.s32 0, %v4835
    %v4837 = vrot.slane %v4700, %v4836
    %v4838 = vlaneseq
    %v4839 = vshrl.u32 %v4838, 7
    %v4840 = vsub.s32 0, %v4839
    %v4841 = vrot.slane %v4701, %v4840
    %v4842 = vlaneseq
    %v4843 = vshrl.u32 %v4842, 7
    %v4844 = vsub.s32 0, %v4843
    %v4845 = vrot.slane %v4702, %v4844
    %v4846 = vlaneseq
    %v4847 = vshrl.u32 %v4846, 7
    %v4848 = vsub.s32 0, %v4847
    %v4849 = vrot.slane %v4703, %v4848
    %v4850 = vlaneseq
    %v4851 = vshrl.u32 %v4850, 7
    %v4852 = vsub.s32 0, %v4851
    %v4853 = vrot.slane %v4704, %v4852
    %v4854 = vlaneseq
    %v4855 = vshrl.u32 %v4854, 7
    %v4856 = vsub.s32 0, %v4855
    %v4857 = vrot.slane %v4705, %v4856
    %v4858 = vlaneseq
    %v4859 = vshrl.u32 %v4858, 7
    %v4860 = vsub.s32 0, %v4859
    %v4861 = vrot.slane %v4706, %v4860
    %v4862 = vsel %vm3712, %v4805, %v4801
    %v4863 = vsel %vm3714, %v4809, %v4862
    %v4864 = vsel %vm3716, %v4813, %v4863
    %v4865 = vsel %vm3712, %v4821, %v4817
    %v4866 = vsel %vm3714, %v4825, %v4865
    %v4867 = vsel %vm3716, %v4829, %v4866
    %v4868 = vsel %vm3712, %v4837, %v4833
    %v4869 = vsel %vm3714, %v4841, %v4868
    %v4870 = vsel %vm3716, %v4845, %v4869
    %v4871 = vsel %vm3712, %v4853, %v4849
    %v4872 = vsel %vm3714, %v4857, %v4871
    %v4873 = vsel %vm3716, %v4861, %v4872
    %v4874 = vrot.slane %v4864, 7
    %v4875 = vrot.slane %v4867, 7
    %v4876 = vrot.slane %v4870, 7
    %v4877 = vrot.slane %v4873, 7
    %v4882 = vsel %vm180, 0.0, %v4874
    %v4883 = vsel %vm180, 0.0, %v4875
    %v4884 = vsel %vm180, 0.0, %v4876
    %v4885 = vsel %vm180, 0.0, %v4877
    %vm4886 = vcmask 1044480
    %v4887 = vsel %vm4886, %v280, 0.0
    %v4888 = vsel %vm4886, %v4882, 0.0
    %v4889 = vsel %vm4886, %v4883, 0.0
    %v4890 = vsel %vm4886, %v4884, 0.0
    %v4891 = vsel %vm4886, %v4885, 0.0
    %v4896 = vrot.slane %v4887, 1
    %v4897 = vrot.slane %v4888, 1
    %v4898 = vrot.slane %v4889, 1
    %v4899 = vrot.slane %v4890, 1
    %4900 = vrot.lane.b32.xlu0 %v4896, 64
    %v4901 = vpop.permute.xlu0 %4900
    %4902 = vrot.lane.b32.xlu0 %v4897, 64
    %v4903 = vpop.permute.xlu0 %4902
    %4904 = vrot.lane.b32.xlu0 %v4898, 64
    %v4905 = vpop.permute.xlu0 %4904
    %4906 = vrot.lane.b32.xlu0 %v4899, 64
    %v4907 = vpop.permute.xlu0 %4906
    %v4912 = vrot.slane %v4887, 2
    %v4913 = vrot.slane %v4888, 2
    %v4914 = vrot.slane %v4889, 2
    %v4915 = vrot.slane %v4890, 2
    %4921 = vrot.lane.b32.xlu0 %v4888, 64
    %v4922 = vpop.permute.xlu0 %4921
    %4923 = vrot.lane.b32.xlu0 %v4889, 64
    %v4924 = vpop.permute.xlu0 %4923
    %4925 = vrot.lane.b32.xlu0 %v4890, 64
    %v4926 = vpop.permute.xlu0 %4925
    %4927 = vrot.lane.b32.xlu0 %v4891, 64
    %v4928 = vpop.permute.xlu0 %4927
    %v4933 = vrot.slane %v4891, 1
    %v4938 = vrot.slane %v4891, 2
    %4939 = vrot.lane.b32.xlu0 %v4913, 64
    %v4940 = vpop.permute.xlu0 %4939
    %4941 = vrot.lane.b32.xlu0 %v4914, 64
    %v4942 = vpop.permute.xlu0 %4941
    %4943 = vrot.lane.b32.xlu0 %v4915, 64
    %v4944 = vpop.permute.xlu0 %4943
    %4945 = vrot.lane.b32.xlu0 %v4938, 64
    %v4946 = vpop.permute.xlu0 %4945
    %4951 = vrot.lane.b32.xlu0 %v4933, 64
    %v4952 = vpop.permute.xlu0 %4951
    %v4954 = vsel %vm1519, %v4887, %v4901
    %v4955 = vsel %vm1519, %v4888, %v4903
    %v4956 = vsel %vm1519, %v4889, %v4905
    %v4957 = vsel %vm1519, %v4890, %v4907
    %v4958 = vsel %vm1519, %v4912, %v4922
    %v4959 = vsel %vm1519, %v4913, %v4924
    %v4960 = vsel %vm1519, %v4914, %v4926
    %v4961 = vsel %vm1519, %v4915, %v4928
    %v4962 = vsel %vm1519, %v4897, %v4940
    %v4963 = vsel %vm1519, %v4898, %v4942
    %v4964 = vsel %vm1519, %v4899, %v4944
    %v4965 = vsel %vm1519, %v4933, %v4946
    %v4966 = vsel %vm1519, %v4891, %v4952
    %v4980 = vcombine.low %v4954, %v4958
    %v4981 = vcombine.low %v4962, %v4956
    %v4982 = vcombine.low %v4955, %v4959
    %v4983 = vcombine.low %v4963, %v4957
    %v4984 = vcombine.low %v4956, %v4960
    %v4985 = vcombine.low %v4964, %v4966
    %v4986 = vcombine.low %v4957, %v4961
    %v4987 = vcombine.low %v4965, %v4954
    %v4989 = vlaneseq
    %v4990 = vshrl.u32 %v4989, 7
    %v4991 = vsub.s32 0, %v4990
    %v4992 = vrot.slane %v4779, %v4991
    %v4994 = vcombine.low %v4980, %v4982
    %v4995 = vcombine.high %v4980, %v4982
    %v4996 = vcombine.low %v4981, %v4983
    %v4997 = vcombine.high %v4981, %v4983
    %v4998 = vcombine.low %v4914, %v4915
    %v4999 = vcombine.low %v4984, %v4986
    %v5000 = vcombine.high %v4984, %v4986
    %v5001 = vcombine.low %v4985, %v4987
    %v5002 = vcombine.high %v4985, %v4987
    %v5003 = vcombine.low %v4938, %v4912
    %v5012 = vsel %vm1519, %v4998, 0
    %v5014 = vsel %vm1519, %v5003, 0
    %5016 = vmatprep.subr.mxu0 0.0
    %5017 = vmatpush1.msra.mxu0 %v4707
    %5018 = vmatprep.subr.mxu0 0.0
    %5019 = vmatpush1.msra.mxu0 %v4708
    %5020 = vmatprep.subr.mxu0 0.0
    %5021 = vmatpush1.msra.mxu0 %v4709
    %5022 = vmatprep.subr.mxu0 0.0
    %5023 = vmatpush1.msra.mxu0 %v4710
    %5024 = vmatprep.subr.mxu0 0.0
    %5025 = vmatpush1.msra.mxu0 %v4711
    %5026 = vmatprep.subr.mxu0 0.0
    %5027 = vmatpush1.msra.mxu0 %v4712
    %5028 = vmatprep.subr.mxu0 0.0
    %5029 = vmatpush1.msra.mxu0 %v4713
    %5030 = vmatprep.subr.mxu0 0.0
    %5031 = vmatpush1.msra.mxu0 %v4714
    %5032 = vmatprep.subr.mxu0 0.0
    %5033 = vmatpush1.msra.mxu0 %v4715
    %5034 = vmatprep.subr.mxu0 0.0
    %5035 = vmatpush1.msra.mxu0 %v4716
    %5036 = vmatprep.subr.mxu0 0.0
    %5037 = vmatpush1.msra.mxu0 %v4717
    %5038 = vmatprep.subr.mxu0 0.0
    %5039 = vmatpush1.msra.mxu0 %v4718
    %5040 = vmatprep.subr.mxu0 0.0
    %5041 = vmatpush1.msra.mxu0 %v4719
    %5042 = vmatprep.subr.mxu0 0.0
    %5043 = vmatpush1.msra.mxu0 %v4720
    %5044 = vmatprep.subr.mxu0 0.0
    %5045 = vmatpush1.msra.mxu0 %v4721
    %5046 = vmatprep.subr.mxu0 0.0
    %5047 = vmatpush1.msra.mxu0 %v4722
    %5048 = vmatprep.subr.mxu0 0.0
    %5049 = vmatpush1.msra.mxu0 %v4723
    %5050 = vmatprep.subr.mxu0 0.0
    %5051 = vmatpush1.msra.mxu0 %v4724
    %5052 = vmatprep.subr.mxu0 0.0
    %5053 = vmatpush1.msra.mxu0 %v4725
    %5054 = vmatprep.subr.mxu0 0.0
    %5055 = vmatpush1.msra.mxu0 %v4726
    %5056 = vmatprep.subr.mxu0 0.0
    %5057 = vmatpush1.msra.mxu0 %v4727
    %5058 = vmatprep.subr.mxu0 0.0
    %5059 = vmatpush1.msra.mxu0 %v4728
    %5060 = vmatprep.subr.mxu0 0.0
    %5061 = vmatpush1.msra.mxu0 %v4729
    %5062 = vmatprep.subr.mxu0 0.0
    %5063 = vmatpush1.msra.mxu0 %v4730
    %5064 = vmatprep.subr.mxu0 0.0
    %5065 = vmatpush1.msra.mxu0 %v4731
    %5066 = vmatprep.subr.mxu0 0.0
    %5067 = vmatpush1.msra.mxu0 %v4732
    %5068 = vmatprep.subr.mxu0 0.0
    %5069 = vmatpush1.msra.mxu0 %v4733
    %5070 = vmatprep.subr.mxu0 0.0
    %5071 = vmatpush1.msra.mxu0 %v4734
    %5072 = vmatprep.subr.mxu0 0.0
    %5073 = vmatpush1.msra.mxu0 %v4735
    %5074 = vmatprep.subr.mxu0 0.0
    %5075 = vmatpush1.msra.mxu0 %v4736
    %5076 = vmatprep.subr.mxu0 0.0
    %5077 = vmatpush1.msra.mxu0 %v4737
    %5078 = vmatprep.subr.mxu0 0.0
    %5079 = vmatpush1.msra.mxu0 %v4738
    %5080 = vmatprep.mubr.f32.mxu0 %v4995
    %5081 = vmatmul.mubr.f32.gmra.mrb[0].mxu0 %v4994
    %v5082 = vpop.f32.mrb[0].mxu0
    %v5083 = vadd.f32 %v4992, %v5082
    %v5084 = vpop.f32.mrb[0].mxu0
    %5085 = vmatprep.mubr.f32.mxu0 %v5000
    %5086 = vmatmul.mubr.f32.gmra.mrb[0].mxu0 %v4999
    %v5087 = vpop.f32.mrb[0].mxu0
    %v5088 = vadd.f32 %v4992, %v5087
    %v5089 = vpop.f32.mrb[0].mxu0
    %5090 = vdwg.mxu0
    %5091 = vmatprep.subr.mxu0 0.0
    %5092 = vmatpush1.msra.mxu0 %v4739
    %5093 = vmatprep.subr.mxu0 0.0
    %5094 = vmatpush1.msra.mxu0 %v4740
    %5095 = vmatprep.subr.mxu0 0.0
    %5096 = vmatpush1.msra.mxu0 %v4741
    %5097 = vmatprep.subr.mxu0 0.0
    %5098 = vmatpush1.msra.mxu0 %v4742
    %5099 = vmatprep.subr.mxu0 0.0
    %5100 = vmatpush1.msra.mxu0 %v4743
    %5101 = vmatprep.subr.mxu0 0.0
    %5102 = vmatpush1.msra.mxu0 %v4744
    %5103 = vmatprep.subr.mxu0 0.0
    %5104 = vmatpush1.msra.mxu0 %v4745
    %5105 = vmatprep.subr.mxu0 0.0
    %5106 = vmatpush1.msra.mxu0 %v4746
    %5107 = vmatprep.subr.mxu0 0.0
    %5108 = vmatpush1.msra.mxu0 %v4747
    %5109 = vmatprep.subr.mxu0 0.0
    %5110 = vmatpush1.msra.mxu0 %v4748
    %5111 = vmatprep.subr.mxu0 0.0
    %5112 = vmatpush1.msra.mxu0 %v4749
    %5113 = vmatprep.subr.mxu0 0.0
    %5114 = vmatpush1.msra.mxu0 %v4750
    %5115 = vmatprep.subr.mxu0 0.0
    %5116 = vmatpush1.msra.mxu0 %v4751
    %5117 = vmatprep.subr.mxu0 0.0
    %5118 = vmatpush1.msra.mxu0 %v4752
    %5119 = vmatprep.subr.mxu0 0.0
    %5120 = vmatpush1.msra.mxu0 %v4753
    %5121 = vmatprep.subr.mxu0 0.0
    %5122 = vmatpush1.msra.mxu0 %v4754
    %5123 = vmatprep.subr.mxu0 0.0
    %5124 = vmatpush1.msra.mxu0 %v4755
    %5125 = vmatprep.subr.mxu0 0.0
    %5126 = vmatpush1.msra.mxu0 %v4756
    %5127 = vmatprep.subr.mxu0 0.0
    %5128 = vmatpush1.msra.mxu0 %v4757
    %5129 = vmatprep.subr.mxu0 0.0
    %5130 = vmatpush1.msra.mxu0 %v4758
    %5131 = vmatprep.subr.mxu0 0.0
    %5132 = vmatpush1.msra.mxu0 %v4759
    %5133 = vmatprep.subr.mxu0 0.0
    %5134 = vmatpush1.msra.mxu0 %v4760
    %5135 = vmatprep.subr.mxu0 0.0
    %5136 = vmatpush1.msra.mxu0 %v4761
    %5137 = vmatprep.subr.mxu0 0.0
    %5138 = vmatpush1.msra.mxu0 %v4762
    %5139 = vmatprep.subr.mxu0 0.0
    %5140 = vmatpush1.msra.mxu0 %v4763
    %5141 = vmatprep.subr.mxu0 0.0
    %5142 = vmatpush1.msra.mxu0 %v4764
    %5143 = vmatprep.subr.mxu0 0.0
    %5144 = vmatpush1.msra.mxu0 %v4765
    %5145 = vmatprep.subr.mxu0 0.0
    %5146 = vmatpush1.msra.mxu0 %v4766
    %5147 = vmatprep.subr.mxu0 0.0
    %5148 = vmatpush1.msra.mxu0 %v4767
    %5149 = vmatprep.subr.mxu0 0.0
    %5150 = vmatpush1.msra.mxu0 %v4768
    %5151 = vmatprep.subr.mxu0 0.0
    %5152 = vmatpush1.msra.mxu0 %v4769
    %5153 = vmatprep.subr.mxu0 0.0
    %5154 = vmatpush1.msra.mxu0 %v4770
    %5155 = vmatprep.mubr.f32.mxu0 %v4997
    %5156 = vmatmul.mubr.f32.gmra.mrb[0].mxu0 %v4996
    %v5157 = vpop.f32.mrb[0].mxu0
    %v5158 = vadd.f32 %v5083, %v5157
    %v5159 = vpop.f32.mrb[0].mxu0
    %5160 = vmatprep.mubr.f32.mxu0 %v5002
    %5161 = vmatmul.mubr.f32.gmra.mrb[0].mxu0 %v5001
    %v5162 = vpop.f32.mrb[0].mxu0
    %v5163 = vadd.f32 %v5088, %v5162
    %v5164 = vpop.f32.mrb[0].mxu0
    %5165 = vdwg.mxu0
    %5166 = vmatprep.subr.mxu0 0.0
    %5167 = vmatpush1.msra.mxu0 %v4771
    %5168 = vmatprep.subr.mxu0 0.0
    %5169 = vmatpush1.msra.mxu0 %v4772
    %5170 = vmatprep.subr.mxu0 0.0
    %5171 = vmatpush1.msra.mxu0 %v4773
    %5172 = vmatprep.subr.mxu0 0.0
    %5173 = vmatpush1.msra.mxu0 %v4774
    %5174 = vmatprep.subr.mxu0 0.0
    %5175 = vmatpush1.msra.mxu0 %v4775
    %5176 = vmatprep.subr.mxu0 0.0
    %5177 = vmatpush1.msra.mxu0 %v4776
    %5178 = vmatprep.subr.mxu0 0.0
    %5179 = vmatpush1.msra.mxu0 %v4777
    %5180 = vmatprep.subr.mxu0 0.0
    %5181 = vmatpush1.msra.mxu0 %v4778
    %5182 = vmatprep.subr.mxu0 0.0
    %5183 = vmatpush1.msra.mxu0 0.0
    %5184 = vmatprep.subr.mxu0 0.0
    %5185 = vmatpush1.msra.mxu0 0.0
    %5186 = vmatprep.subr.mxu0 0.0
    %5187 = vmatpush1.msra.mxu0 0.0
    %5188 = vmatprep.subr.mxu0 0.0
    %5189 = vmatpush1.msra.mxu0 0.0
    %5190 = vmatprep.subr.mxu0 0.0
    %5191 = vmatpush1.msra.mxu0 0.0
    %5192 = vmatprep.subr.mxu0 0.0
    %5193 = vmatpush1.msra.mxu0 0.0
    %5194 = vmatprep.subr.mxu0 0.0
    %5195 = vmatpush1.msra.mxu0 0.0
    %5196 = vmatprep.subr.mxu0 0.0
    %5197 = vmatpush1.msra.mxu0 0.0
    %5198 = vmatprep.subr.mxu0 0.0
    %5199 = vmatpush1.msra.mxu0 0.0
    %5200 = vmatprep.subr.mxu0 0.0
    %5201 = vmatpush1.msra.mxu0 0.0
    %5202 = vmatprep.subr.mxu0 0.0
    %5203 = vmatpush1.msra.mxu0 0.0
    %5204 = vmatprep.subr.mxu0 0.0
    %5205 = vmatpush1.msra.mxu0 0.0
    %5206 = vmatprep.subr.mxu0 0.0
    %5207 = vmatpush1.msra.mxu0 0.0
    %5208 = vmatprep.subr.mxu0 0.0
    %5209 = vmatpush1.msra.mxu0 0.0
    %5210 = vmatprep.subr.mxu0 0.0
    %5211 = vmatpush1.msra.mxu0 0.0
    %5212 = vmatprep.subr.mxu0 0.0
    %5213 = vmatpush1.msra.mxu0 0.0
    %5214 = vmatprep.subr.mxu0 0.0
    %5215 = vmatpush1.msra.mxu0 0.0
    %5216 = vmatprep.subr.mxu0 0.0
    %5217 = vmatpush1.msra.mxu0 0.0
    %5218 = vmatprep.subr.mxu0 0.0
    %5219 = vmatpush1.msra.mxu0 0.0
    %5220 = vmatprep.subr.mxu0 0.0
    %5221 = vmatpush1.msra.mxu0 0.0
    %5222 = vmatprep.subr.mxu0 0.0
    %5223 = vmatpush1.msra.mxu0 0.0
    %5224 = vmatprep.subr.mxu0 0.0
    %5225 = vmatpush1.msra.mxu0 0.0
    %5226 = vmatprep.subr.mxu0 0.0
    %5227 = vmatpush1.msra.mxu0 0.0
    %5228 = vmatprep.subr.mxu0 0.0
    %5229 = vmatpush1.msra.mxu0 0.0
    %5230 = vmatprep.mubr.f32.mxu0 0.0
    %5231 = vmatmul.mubr.f32.gmra.mrb[0].mxu0 %v5012
    %v5232 = vpop.f32.mrb[0].mxu0
    %v5233 = vadd.f32 %v5158, %v5232
    %v5234 = vpop.f32.mrb[0].mxu0
    %5235 = vmatprep.mubr.f32.mxu0 0.0
    %5236 = vmatmul.mubr.f32.gmra.mrb[0].mxu0 %v5014
    %v5237 = vpop.f32.mrb[0].mxu0
    %v5238 = vadd.f32 %v5163, %v5237
    %v5239 = vpop.f32.mrb[0].mxu0
    %5240 = vdwg.mxu0
    %v5241 = vsel %vm1519, %v5233, 0.0
    %v5242 = vsel %vm1519, %v5238, 0.0
    %v5243 = vadd.f32 %v5241, %v5242
    %v5244 = vrot.slane %v5243, 4
    %v5245 = vadd.f32 %v5243, %v5244
    %v5246 = vrot.slane %v5245, 2
    %v5247 = vadd.f32 %v5245, %v5246
    %v5248 = vrot.slane %v5247, 1
    %v5249 = vadd.f32 %v5247, %v5248
    %v5250 = vmul.f32 %v5233, %v5233
    %v5251 = vmul.f32 %v5238, %v5238
    %v5252 = vsel %vm1519, %v5250, 0.0
    %v5253 = vsel %vm1519, %v5251, 0.0
    %v5254 = vadd.f32 %v5252, %v5253
    %v5255 = vrot.slane %v5254, 4
    %v5256 = vadd.f32 %v5254, %v5255
    %v5257 = vrot.slane %v5256, 2
    %v5258 = vadd.f32 %v5256, %v5257
    %v5259 = vrot.slane %v5258, 1
    %v5260 = vadd.f32 %v5258, %v5259
    %v5261 = vmul.f32 %v5249, 0.0625
    %v5262 = vmul.f32 %v5260, 0.0625
    %v5263 = vmul.f32 %v5261, %v5261
    %v5264 = vsub.f32 %v5262, %v5263
    %v5265 = vmax.f32 %v5264, 0.0
    %v5266 = vsub.f32 %v5233, %v5261
    %v5267 = vsub.f32 %v5238, %v5261
    %v5268 = vadd.f32 %v5265, 1e-05
    %v5269 = vrsqrt.pop %v5268
    %v5270 = vmul.f32 %v5266, %v5269
    %v5271 = vmul.f32 %v5267, %v5269
    %v5273 = vlaneseq
    %v5274 = vshrl.u32 %v5273, 7
    %v5275 = vsub.s32 0, %v5274
    %v5276 = vrot.slane %v4780, %v5275
    %v5278 = vmul.f32 %v5270, %v5276
    %v5279 = vmul.f32 %v5271, %v5276
    %v5281 = vlaneseq
    %v5282 = vshrl.u32 %v5281, 7
    %v5283 = vsub.s32 0, %v5282
    %v5284 = vrot.slane %v4781, %v5283
    %v5286 = vadd.f32 %v5278, %v5284
    %v5287 = vadd.f32 %v5279, %v5284
    %v5288 = vmax.f32 %v5286, 0.0
    %v5289 = vmax.f32 %v5287, 0.0
    %v5292 = vcombine.high %v5288, %v5288
    %v5294 = vunpack.c.l.s4 1983009808
    %v5295 = vunpack.c.0.s8 %v5294
    %v5296 = vlaneseq
    %v5297 = vshrl.u32 %v5296, 7
    %v5298 = vsub.s32 %v5295, %v5297
    %v5299 = vrot.slane %v5288, %v5298
    %v5301 = vunpack.c.l.s4 1983009808
    %v5302 = vunpack.c.0.s8 %v5301
    %v5303 = vlaneseq
    %v5304 = vshrl.u32 %v5303, 7
    %v5305 = vsub.s32 %v5302, %v5304
    %v5306 = vrot.slane %v5292, %v5305
    %v5307 = vcombine.high %v5299, %v5299
    %v5308 = vcombine.high %v5306, %v5306
    %v5309 = vcombine.high %v5289, %v5289
    %v5311 = vunpack.c.l.s4 1983009808
    %v5312 = vunpack.c.0.s8 %v5311
    %v5313 = vlaneseq
    %v5314 = vshrl.u32 %v5313, 7
    %v5315 = vsub.s32 %v5312, %v5314
    %v5316 = vrot.slane %v5289, %v5315
    %v5318 = vunpack.c.l.s4 1983009808
    %v5319 = vunpack.c.0.s8 %v5318
    %v5320 = vlaneseq
    %v5321 = vshrl.u32 %v5320, 7
    %v5322 = vsub.s32 %v5319, %v5321
    %v5323 = vrot.slane %v5309, %v5322
    %v5324 = vcombine.high %v5316, %v5316
    %v5325 = vcombine.high %v5323, %v5323
    %v5334 = vmax.f32 %v5299, %v5306
    %v5335 = vmax.f32 %v5307, %v5308
    %v5336 = vmax.f32 %v5316, %v5323
    %v5337 = vmax.f32 %v5324, %v5325
    %v5342 = vrot.slane %v5334, 7
    %v5343 = vrot.slane %v5342, 2
    %v5344 = vrot.slane %v5335, 7
    %v5345 = vrot.slane %v5344, 2
    %v5346 = vrot.slane %v5336, 7
    %v5347 = vrot.slane %v5346, 2
    %v5348 = vrot.slane %v5337, 7
    %v5349 = vrot.slane %v5348, 2
    %v5354 = vmax.f32 %v5334, %v5343
    %v5355 = vmax.f32 %v5335, %v5345
    %v5356 = vmax.f32 %v5336, %v5347
    %v5357 = vmax.f32 %v5337, %v5349
    %v5359 = vlaneseq
    %v5360 = vshrl.u32 %v5359, 7
    %v5361 = vsub.s32 0, %v5360
    %v5362 = vrot.slane %v5355, %v5361
    %5363 = vrot.lane.b32.xlu0 %v5362, 64
    %v5364 = vpop.permute.xlu0 %5363
    %v5367 = vlaneseq
    %v5368 = vshrl.u32 %v5367, 7
    %v5369 = vsub.s32 0, %v5368
    %v5370 = vrot.slane %v5357, %v5369
    %5371 = vrot.lane.b32.xlu0 %v5370, 64
    %v5372 = vpop.permute.xlu0 %5371
    %v5374 = vsel %vm1519, %v5354, %v5364
    %v5375 = vsel %vm1519, %v5356, %v5372
    %v5376 = vld [vmem:[%s13] sm:$0xff]
    %v5377 = vld [vmem:[%s13 + $0x8] sm:$0xff]
    %v5378 = vld [vmem:[%s13 + $0x10] sm:$0xff]
    %v5379 = vld [vmem:[%s13 + $0x18] sm:$0xff]
    %v5380 = vld [vmem:[%s13 + $0x20] sm:$0xff]
    %v5381 = vld [vmem:[%s13 + $0x28] sm:$0xff]
    %v5382 = vld [vmem:[%s13 + $0x30] sm:$0xff]
    %v5383 = vld [vmem:[%s13 + $0x38] sm:$0xff]
    %v5384 = vld [vmem:[%s13 + $0x40] sm:$0xff]
    %v5385 = vld [vmem:[%s13 + $0x48] sm:$0xff]
    %v5386 = vld [vmem:[%s13 + $0x50] sm:$0xff]
    %v5387 = vld [vmem:[%s13 + $0x58] sm:$0xff]
    %v5388 = vld [vmem:[%s13 + $0x60] sm:$0xff]
    %v5389 = vld [vmem:[%s13 + $0x68] sm:$0xff]
    %v5390 = vld [vmem:[%s13 + $0x70] sm:$0xff]
    %v5391 = vld [vmem:[%s13 + $0x78] sm:$0xff]
    %v5392 = vld [vmem:[%s13 + $0x80] sm:$0xff]
    %v5393 = vld [vmem:[%s13 + $0x88] sm:$0xff]
    %v5394 = vld [vmem:[%s13 + $0x90] sm:$0xff]
    %v5395 = vld [vmem:[%s13 + $0x98] sm:$0xff]
    %v5396 = vld [vmem:[%s13 + $0xa0] sm:$0xff]
    %v5397 = vld [vmem:[%s13 + $0xa8] sm:$0xff]
    %v5398 = vld [vmem:[%s13 + $0xb0] sm:$0xff]
    %v5399 = vld [vmem:[%s13 + $0xb8] sm:$0xff]
    %v5400 = vld [vmem:[%s13 + $0xc0] sm:$0xff]
    %v5401 = vld [vmem:[%s13 + $0xc8] sm:$0xff]
    %v5402 = vld [vmem:[%s13 + $0xd0] sm:$0xff]
    %v5403 = vld [vmem:[%s13 + $0xd8] sm:$0xff]
    %v5404 = vld [vmem:[%s13 + $0xe0] sm:$0xff]
    %v5405 = vld [vmem:[%s13 + $0xe8] sm:$0xff]
    %v5406 = vld [vmem:[%s13 + $0xf0] sm:$0xff]
    %v5407 = vld [vmem:[%s13 + $0xf8] sm:$0xff]
    %v5408 = vld [vmem:[%s14] sm:$0x1]
    %5409 = vmatprep.subr.mxu0 0.0
    %5410 = vmatpush1.msra.mxu0 %v5376
    %5411 = vmatprep.subr.mxu0 0.0
    %5412 = vmatpush1.msra.mxu0 %v5377
    %5413 = vmatprep.subr.mxu0 0.0
    %5414 = vmatpush1.msra.mxu0 %v5378
    %5415 = vmatprep.subr.mxu0 0.0
    %5416 = vmatpush1.msra.mxu0 %v5379
    %5417 = vmatprep.subr.mxu0 0.0
    %5418 = vmatpush1.msra.mxu0 %v5380
    %5419 = vmatprep.subr.mxu0 0.0
    %5420 = vmatpush1.msra.mxu0 %v5381
    %5421 = vmatprep.subr.mxu0 0.0
    %5422 = vmatpush1.msra.mxu0 %v5382
    %5423 = vmatprep.subr.mxu0 0.0
    %5424 = vmatpush1.msra.mxu0 %v5383
    %5425 = vmatprep.subr.mxu0 0.0
    %5426 = vmatpush1.msra.mxu0 %v5384
    %5427 = vmatprep.subr.mxu0 0.0
    %5428 = vmatpush1.msra.mxu0 %v5385
    %5429 = vmatprep.subr.mxu0 0.0
    %5430 = vmatpush1.msra.mxu0 %v5386
    %5431 = vmatprep.subr.mxu0 0.0
    %5432 = vmatpush1.msra.mxu0 %v5387
    %5433 = vmatprep.subr.mxu0 0.0
    %5434 = vmatpush1.msra.mxu0 %v5388
    %5435 = vmatprep.subr.mxu0 0.0
    %5436 = vmatpush1.msra.mxu0 %v5389
    %5437 = vmatprep.subr.mxu0 0.0
    %5438 = vmatpush1.msra.mxu0 %v5390
    %5439 = vmatprep.subr.mxu0 0.0
    %5440 = vmatpush1.msra.mxu0 %v5391
    %5441 = vmatprep.subr.mxu0 0.0
    %5442 = vmatpush1.msra.mxu0 %v5392
    %5443 = vmatprep.subr.mxu0 0.0
    %5444 = vmatpush1.msra.mxu0 %v5393
    %5445 = vmatprep.subr.mxu0 0.0
    %5446 = vmatpush1.msra.mxu0 %v5394
    %5447 = vmatprep.subr.mxu0 0.0
    %5448 = vmatpush1.msra.mxu0 %v5395
    %5449 = vmatprep.subr.mxu0 0.0
    %5450 = vmatpush1.msra.mxu0 %v5396
    %5451 = vmatprep.subr.mxu0 0.0
    %5452 = vmatpush1.msra.mxu0 %v5397
    %5453 = vmatprep.subr.mxu0 0.0
    %5454 = vmatpush1.msra.mxu0 %v5398
    %5455 = vmatprep.subr.mxu0 0.0
    %5456 = vmatpush1.msra.mxu0 %v5399
    %5457 = vmatprep.subr.mxu0 0.0
    %5458 = vmatpush1.msra.mxu0 %v5400
    %5459 = vmatprep.subr.mxu0 0.0
    %5460 = vmatpush1.msra.mxu0 %v5401
    %5461 = vmatprep.subr.mxu0 0.0
    %5462 = vmatpush1.msra.mxu0 %v5402
    %5463 = vmatprep.subr.mxu0 0.0
    %5464 = vmatpush1.msra.mxu0 %v5403
    %5465 = vmatprep.subr.mxu0 0.0
    %5466 = vmatpush1.msra.mxu0 %v5404
    %5467 = vmatprep.subr.mxu0 0.0
    %5468 = vmatpush1.msra.mxu0 %v5405
    %5469 = vmatprep.subr.mxu0 0.0
    %5470 = vmatpush1.msra.mxu0 %v5406
    %5471 = vmatprep.subr.mxu0 0.0
    %5472 = vmatpush1.msra.mxu0 %v5407
    %5473 = vmatprep.mubr.f32.mxu0 %v5375
    %5474 = vmatmul.mubr.f32.gmra.mrb[0].mxu0 %v5374
    %v5475 = vpop.f32.mrb[0].mxu0
    %v5476 = vadd.f32 %v5408, %v5475
    %v5477 = vpop.f32.mrb[0].mxu0
    %5478 = vdwg.mxu0
    %v5479 = vld [vmem:[%s15] sm:$0xff]
    %v5480 = vld [vmem:[%s15 + $0x8] sm:$0xff]
    %v5481 = vld [vmem:[%s15 + $0x10] sm:$0xff]
    %v5482 = vld [vmem:[%s15 + $0x18] sm:$0xff]
    %v5483 = vld [vmem:[%s15 + $0x20] sm:$0xff]
    %v5484 = vld [vmem:[%s15 + $0x28] sm:$0xff]
    %v5485 = vld [vmem:[%s15 + $0x30] sm:$0xff]
    %v5486 = vld [vmem:[%s15 + $0x38] sm:$0xff]
    %v5487 = vld [vmem:[%s16] sm:$0x1]
    %v5489 = vsel %vm1519, %v5476, 0
    %5491 = vmatprep.subr.mxu0 0.0
    %5492 = vmatpush1.msra.mxu0 %v5479
    %5493 = vmatprep.subr.mxu0 0.0
    %5494 = vmatpush1.msra.mxu0 %v5480
    %5495 = vmatprep.subr.mxu0 0.0
    %5496 = vmatpush1.msra.mxu0 %v5481
    %5497 = vmatprep.subr.mxu0 0.0
    %5498 = vmatpush1.msra.mxu0 %v5482
    %5499 = vmatprep.subr.mxu0 0.0
    %5500 = vmatpush1.msra.mxu0 %v5483
    %5501 = vmatprep.subr.mxu0 0.0
    %5502 = vmatpush1.msra.mxu0 %v5484
    %5503 = vmatprep.subr.mxu0 0.0
    %5504 = vmatpush1.msra.mxu0 %v5485
    %5505 = vmatprep.subr.mxu0 0.0
    %5506 = vmatpush1.msra.mxu0 %v5486
    %5507 = vmatprep.subr.mxu0 0.0
    %5508 = vmatpush1.msra.mxu0 0.0
    %5509 = vmatprep.subr.mxu0 0.0
    %5510 = vmatpush1.msra.mxu0 0.0
    %5511 = vmatprep.subr.mxu0 0.0
    %5512 = vmatpush1.msra.mxu0 0.0
    %5513 = vmatprep.subr.mxu0 0.0
    %5514 = vmatpush1.msra.mxu0 0.0
    %5515 = vmatprep.subr.mxu0 0.0
    %5516 = vmatpush1.msra.mxu0 0.0
    %5517 = vmatprep.subr.mxu0 0.0
    %5518 = vmatpush1.msra.mxu0 0.0
    %5519 = vmatprep.subr.mxu0 0.0
    %5520 = vmatpush1.msra.mxu0 0.0
    %5521 = vmatprep.subr.mxu0 0.0
    %5522 = vmatpush1.msra.mxu0 0.0
    %5523 = vmatprep.subr.mxu0 0.0
    %5524 = vmatpush1.msra.mxu0 0.0
    %5525 = vmatprep.subr.mxu0 0.0
    %5526 = vmatpush1.msra.mxu0 0.0
    %5527 = vmatprep.subr.mxu0 0.0
    %5528 = vmatpush1.msra.mxu0 0.0
    %5529 = vmatprep.subr.mxu0 0.0
    %5530 = vmatpush1.msra.mxu0 0.0
    %5531 = vmatprep.subr.mxu0 0.0
    %5532 = vmatpush1.msra.mxu0 0.0
    %5533 = vmatprep.subr.mxu0 0.0
    %5534 = vmatpush1.msra.mxu0 0.0
    %5535 = vmatprep.subr.mxu0 0.0
    %5536 = vmatpush1.msra.mxu0 0.0
    %5537 = vmatprep.subr.mxu0 0.0
    %5538 = vmatpush1.msra.mxu0 0.0
    %5539 = vmatprep.subr.mxu0 0.0
    %5540 = vmatpush1.msra.mxu0 0.0
    %5541 = vmatprep.subr.mxu0 0.0
    %5542 = vmatpush1.msra.mxu0 0.0
    %5543 = vmatprep.subr.mxu0 0.0
    %5544 = vmatpush1.msra.mxu0 0.0
    %5545 = vmatprep.subr.mxu0 0.0
    %5546 = vmatpush1.msra.mxu0 0.0
    %5547 = vmatprep.subr.mxu0 0.0
    %5548 = vmatpush1.msra.mxu0 0.0
    %5549 = vmatprep.subr.mxu0 0.0
    %5550 = vmatpush1.msra.mxu0 0.0
    %5551 = vmatprep.subr.mxu0 0.0
    %5552 = vmatpush1.msra.mxu0 0.0
    %5553 = vmatprep.subr.mxu0 0.0
    %5554 = vmatpush1.msra.mxu0 0.0
    %5555 = vmatprep.mubr.f32.mxu0 0.0
    %5556 = vmatmul.mubr.f32.gmra.mrb[0].mxu0 %v5489
    %v5557 = vpop.f32.mrb[0].mxu0
    %v5558 = vadd.f32 %v5487, %v5557
    %v5559 = vpop.f32.mrb[0].mxu0
    %5560 = vdwg.mxu0
    %v5561 = vld [vmem:[#allocation6] sm:$0xff]
    %v5562 = vld [vmem:[#allocation6 + $0x8] sm:$0xff]
    %v5563 = vld [vmem:[#allocation6 + $0x10] sm:$0xff]
    %v5564 = vld [vmem:[#allocation6 + $0x18] sm:$0xff]
    %v5565 = vld [vmem:[#allocation6 + $0x20] sm:$0xff]
    %v5566 = vld [vmem:[#allocation6 + $0x28] sm:$0xff]
    %v5567 = vld [vmem:[#allocation6 + $0x30] sm:$0xff]
    %v5568 = vld [vmem:[#allocation6 + $0x38] sm:$0xff]
    %v5569 = vld [vmem:[#allocation6 + $0x40] sm:$0xff]
    %v5570 = vld [vmem:[#allocation6 + $0x48] sm:$0xff]
    %v5571 = vld [vmem:[#allocation6 + $0x50] sm:$0xff]
    %v5572 = vld [vmem:[#allocation6 + $0x58] sm:$0xff]
    %v5573 = vld [vmem:[#allocation6 + $0x60] sm:$0xff]
    %v5574 = vld [vmem:[#allocation6 + $0x68] sm:$0xff]
    %v5575 = vld [vmem:[#allocation6 + $0x70] sm:$0xff]
    %v5576 = vld [vmem:[#allocation6 + $0x78] sm:$0xff]
    %v5577 = vld [vmem:[#allocation6 + $0x80] sm:$0xff]
    %v5578 = vld [vmem:[#allocation6 + $0x88] sm:$0xff]
    %v5579 = vld [vmem:[#allocation6 + $0x90] sm:$0xff]
    %v5580 = vld [vmem:[#allocation6 + $0x98] sm:$0xff]
    %v5581 = vld [vmem:[#allocation6 + $0xa0] sm:$0xff]
    %v5582 = vld [vmem:[#allocation6 + $0xa8] sm:$0xff]
    %v5583 = vld [vmem:[#allocation6 + $0xb0] sm:$0xff]
    %v5584 = vld [vmem:[#allocation6 + $0xb8] sm:$0xff]
    %v5585 = vld [vmem:[#allocation6 + $0xc0] sm:$0xff]
    %v5586 = vld [vmem:[#allocation6 + $0xc8] sm:$0xff]
    %v5587 = vld [vmem:[#allocation6 + $0xd0] sm:$0xff]
    %v5588 = vld [vmem:[#allocation6 + $0xd8] sm:$0xff]
    %v5589 = vld [vmem:[#allocation6 + $0xe0] sm:$0xff]
    %v5590 = vld [vmem:[#allocation6 + $0xe8] sm:$0xff]
    %v5591 = vld [vmem:[#allocation6 + $0xf0] sm:$0xff]
    %v5592 = vld [vmem:[#allocation6 + $0xf8] sm:$0xff]
    %v5593 = vld [vmem:[#allocation6 + $0x100] sm:$0xff]
    %v5594 = vld [vmem:[#allocation6 + $0x108] sm:$0xff]
    %v5595 = vld [vmem:[#allocation6 + $0x110] sm:$0xff]
    %v5596 = vld [vmem:[#allocation6 + $0x118] sm:$0xff]
    %v5597 = vld [vmem:[#allocation6 + $0x120] sm:$0xff]
    %v5598 = vld [vmem:[#allocation6 + $0x128] sm:$0xff]
    %v5599 = vld [vmem:[#allocation6 + $0x130] sm:$0xff]
    %v5600 = vld [vmem:[#allocation6 + $0x138] sm:$0xff]
    %v5601 = vld [vmem:[#allocation6 + $0x140] sm:$0xff]
    %v5602 = vld [vmem:[#allocation6 + $0x148] sm:$0xff]
    %v5603 = vld [vmem:[#allocation6 + $0x150] sm:$0xff]
    %v5604 = vld [vmem:[#allocation6 + $0x158] sm:$0xff]
    %v5605 = vld [vmem:[#allocation6 + $0x160] sm:$0xff]
    %v5606 = vld [vmem:[#allocation6 + $0x168] sm:$0xff]
    %v5607 = vld [vmem:[#allocation6 + $0x170] sm:$0xff]
    %v5608 = vld [vmem:[#allocation6 + $0x178] sm:$0xff]
    %v5609 = vld [vmem:[%s18] sm:$0x3f]
    %v5611 = vlaneseq
    %v5612 = vshrl.u32 %v5611, 7
    %v5613 = vsub.s32 0, %v5612
    %v5614 = vrot.slane %v5609, %v5613
    %v5615 = vlaneseq
    %v5616 = vshrl.u32 %v5615, 7
    %v5617 = vsub.s32 1, %v5616
    %v5618 = vrot.slane %v5609, %v5617
    %v5619 = vlaneseq
    %v5620 = vshrl.u32 %v5619, 7
    %v5621 = vsub.s32 2, %v5620
    %v5622 = vrot.slane %v5609, %v5621
    %v5623 = vlaneseq
    %v5624 = vshrl.u32 %v5623, 7
    %v5625 = vsub.s32 3, %v5624
    %v5626 = vrot.slane %v5609, %v5625
    %v5627 = vlaneseq
    %v5628 = vshrl.u32 %v5627, 7
    %v5629 = vsub.s32 4, %v5628
    %v5630 = vrot.slane %v5609, %v5629
    %v5631 = vlaneseq
    %v5632 = vshrl.u32 %v5631, 7
    %v5633 = vsub.s32 5, %v5632
    %v5634 = vrot.slane %v5609, %v5633
    %v5642 = vsel %vm1519, %v5558, 0
    %5644 = vmatprep.subr.mxu0 %v5562
    %5645 = vmatpush1.msra.mxu0 %v5561
    %5646 = vmatprep.subr.mxu0 %v5568
    %5647 = vmatpush1.msra.mxu0 %v5567
    %5648 = vmatprep.subr.mxu0 %v5574
    %5649 = vmatpush1.msra.mxu0 %v5573
    %5650 = vmatprep.subr.mxu0 %v5580
    %5651 = vmatpush1.msra.mxu0 %v5579
    %5652 = vmatprep.subr.mxu0 %v5586
    %5653 = vmatpush1.msra.mxu0 %v5585
    %5654 = vmatprep.subr.mxu0 %v5592
    %5655 = vmatpush1.msra.mxu0 %v5591
    %5656 = vmatprep.subr.mxu0 %v5598
    %5657 = vmatpush1.msra.mxu0 %v5597
    %5658 = vmatprep.subr.mxu0 %v5604
    %5659 = vmatpush1.msra.mxu0 %v5603
    %5660 = vmatprep.subr.mxu0 0.0
    %5661 = vmatpush1.msra.mxu0 0.0
    %5662 = vmatprep.subr.mxu0 0.0
    %5663 = vmatpush1.msra.mxu0 0.0
    %5664 = vmatprep.subr.mxu0 0.0
    %5665 = vmatpush1.msra.mxu0 0.0
    %5666 = vmatprep.subr.mxu0 0.0
    %5667 = vmatpush1.msra.mxu0 0.0
    %5668 = vmatprep.subr.mxu0 0.0
    %5669 = vmatpush1.msra.mxu0 0.0
    %5670 = vmatprep.subr.mxu0 0.0
    %5671 = vmatpush1.msra.mxu0 0.0
    %5672 = vmatprep.subr.mxu0 0.0
    %5673 = vmatpush1.msra.mxu0 0.0
    %5674 = vmatprep.subr.mxu0 0.0
    %5675 = vmatpush1.msra.mxu0 0.0
    %5676 = vmatprep.subr.mxu0 0.0
    %5677 = vmatpush1.msra.mxu0 0.0
    %5678 = vmatprep.subr.mxu0 0.0
    %5679 = vmatpush1.msra.mxu0 0.0
    %5680 = vmatprep.subr.mxu0 0.0
    %5681 = vmatpush1.msra.mxu0 0.0
    %5682 = vmatprep.subr.mxu0 0.0
    %5683 = vmatpush1.msra.mxu0 0.0
    %5684 = vmatprep.subr.mxu0 0.0
    %5685 = vmatpush1.msra.mxu0 0.0
    %5686 = vmatprep.subr.mxu0 0.0
    %5687 = vmatpush1.msra.mxu0 0.0
    %5688 = vmatprep.subr.mxu0 0.0
    %5689 = vmatpush1.msra.mxu0 0.0
    %5690 = vmatprep.subr.mxu0 0.0
    %5691 = vmatpush1.msra.mxu0 0.0
    %5692 = vmatprep.subr.mxu0 0.0
    %5693 = vmatpush1.msra.mxu0 0.0
    %5694 = vmatprep.subr.mxu0 0.0
    %5695 = vmatpush1.msra.mxu0 0.0
    %5696 = vmatprep.subr.mxu0 0.0
    %5697 = vmatpush1.msra.mxu0 0.0
    %5698 = vmatprep.subr.mxu0 0.0
    %5699 = vmatpush1.msra.mxu0 0.0
    %5700 = vmatprep.subr.mxu0 0.0
    %5701 = vmatpush1.msra.mxu0 0.0
    %5702 = vmatprep.subr.mxu0 0.0
    %5703 = vmatpush1.msra.mxu0 0.0
    %5704 = vmatprep.subr.mxu0 0.0
    %5705 = vmatpush1.msra.mxu0 0.0
    %5706 = vmatprep.subr.mxu0 0.0
    %5707 = vmatpush1.msra.mxu0 0.0
    %5708 = vmatprep.mubr.f32.mxu0 0.0
    %5709 = vmatmul.mubr.f32.gmra.mrb[0].mxu0 %v5642
    %v5710 = vpop.f32.mrb[0].mxu0
    %v5711 = vadd.f32 %v5614, %v5710
    %v5712 = vpop.f32.mrb[0].mxu0
    %v5713 = vadd.f32 %v5618, %v5712
    %5714 = vdwg.mxu0
    %5715 = vmatprep.subr.mxu0 %v5564
    %5716 = vmatpush1.msra.mxu0 %v5563
    %5717 = vmatprep.subr.mxu0 %v5570
    %5718 = vmatpush1.msra.mxu0 %v5569
    %5719 = vmatprep.subr.mxu0 %v5576
    %5720 = vmatpush1.msra.mxu0 %v5575
    %5721 = vmatprep.subr.mxu0 %v5582
    %5722 = vmatpush1.msra.mxu0 %v5581
    %5723 = vmatprep.subr.mxu0 %v5588
    %5724 = vmatpush1.msra.mxu0 %v5587
    %5725 = vmatprep.subr.mxu0 %v5594
    %5726 = vmatpush1.msra.mxu0 %v5593
    %5727 = vmatprep.subr.mxu0 %v5600
    %5728 = vmatpush1.msra.mxu0 %v5599
    %5729 = vmatprep.subr.mxu0 %v5606
    %5730 = vmatpush1.msra.mxu0 %v5605
    %5731 = vmatprep.subr.mxu0 0.0
    %5732 = vmatpush1.msra.mxu0 0.0
    %5733 = vmatprep.subr.mxu0 0.0
    %5734 = vmatpush1.msra.mxu0 0.0
    %5735 = vmatprep.subr.mxu0 0.0
    %5736 = vmatpush1.msra.mxu0 0.0
    %5737 = vmatprep.subr.mxu0 0.0
    %5738 = vmatpush1.msra.mxu0 0.0
    %5739 = vmatprep.subr.mxu0 0.0
    %5740 = vmatpush1.msra.mxu0 0.0
    %5741 = vmatprep.subr.mxu0 0.0
    %5742 = vmatpush1.msra.mxu0 0.0
    %5743 = vmatprep.subr.mxu0 0.0
    %5744 = vmatpush1.msra.mxu0 0.0
    %5745 = vmatprep.subr.mxu0 0.0
    %5746 = vmatpush1.msra.mxu0 0.0
    %5747 = vmatprep.subr.mxu0 0.0
    %5748 = vmatpush1.msra.mxu0 0.0
    %5749 = vmatprep.subr.mxu0 0.0
    %5750 = vmatpush1.msra.mxu0 0.0
    %5751 = vmatprep.subr.mxu0 0.0
    %5752 = vmatpush1.msra.mxu0 0.0
    %5753 = vmatprep.subr.mxu0 0.0
    %5754 = vmatpush1.msra.mxu0 0.0
    %5755 = vmatprep.subr.mxu0 0.0
    %5756 = vmatpush1.msra.mxu0 0.0
    %5757 = vmatprep.subr.mxu0 0.0
    %5758 = vmatpush1.msra.mxu0 0.0
    %5759 = vmatprep.subr.mxu0 0.0
    %5760 = vmatpush1.msra.mxu0 0.0
    %5761 = vmatprep.subr.mxu0 0.0
    %5762 = vmatpush1.msra.mxu0 0.0
    %5763 = vmatprep.subr.mxu0 0.0
    %5764 = vmatpush1.msra.mxu0 0.0
    %5765 = vmatprep.subr.mxu0 0.0
    %5766 = vmatpush1.msra.mxu0 0.0
    %5767 = vmatprep.subr.mxu0 0.0
    %5768 = vmatpush1.msra.mxu0 0.0
    %5769 = vmatprep.subr.mxu0 0.0
    %5770 = vmatpush1.msra.mxu0 0.0
    %5771 = vmatprep.subr.mxu0 0.0
    %5772 = vmatpush1.msra.mxu0 0.0
    %5773 = vmatprep.subr.mxu0 0.0
    %5774 = vmatpush1.msra.mxu0 0.0
    %5775 = vmatprep.subr.mxu0 0.0
    %5776 = vmatpush1.msra.mxu0 0.0
    %5777 = vmatprep.subr.mxu0 0.0
    %5778 = vmatpush1.msra.mxu0 0.0
    %5779 = vmatprep.mubr.f32.mxu0 0.0
    %5780 = vmatmul.mubr.f32.gmra.mrb[0].mxu0 %v5642
    %v5781 = vpop.f32.mrb[0].mxu0
    %v5782 = vadd.f32 %v5622, %v5781
    %v5783 = vpop.f32.mrb[0].mxu0
    %v5784 = vadd.f32 %v5626, %v5783
    %5785 = vdwg.mxu0
    %5786 = vmatprep.subr.mxu0 %v5566
    %5787 = vmatpush1.msra.mxu0 %v5565
    %5788 = vmatprep.subr.mxu0 %v5572
    %5789 = vmatpush1.msra.mxu0 %v5571
    %5790 = vmatprep.subr.mxu0 %v5578
    %5791 = vmatpush1.msra.mxu0 %v5577
    %5792 = vmatprep.subr.mxu0 %v5584
    %5793 = vmatpush1.msra.mxu0 %v5583
    %5794 = vmatprep.subr.mxu0 %v5590
    %5795 = vmatpush1.msra.mxu0 %v5589
    %5796 = vmatprep.subr.mxu0 %v5596
    %5797 = vmatpush1.msra.mxu0 %v5595
    %5798 = vmatprep.subr.mxu0 %v5602
    %5799 = vmatpush1.msra.mxu0 %v5601
    %5800 = vmatprep.subr.mxu0 %v5608
    %5801 = vmatpush1.msra.mxu0 %v5607
    %5802 = vmatprep.subr.mxu0 0.0
    %5803 = vmatpush1.msra.mxu0 0.0
    %5804 = vmatprep.subr.mxu0 0.0
    %5805 = vmatpush1.msra.mxu0 0.0
    %5806 = vmatprep.subr.mxu0 0.0
    %5807 = vmatpush1.msra.mxu0 0.0
    %5808 = vmatprep.subr.mxu0 0.0
    %5809 = vmatpush1.msra.mxu0 0.0
    %5810 = vmatprep.subr.mxu0 0.0
    %5811 = vmatpush1.msra.mxu0 0.0
    %5812 = vmatprep.subr.mxu0 0.0
    %5813 = vmatpush1.msra.mxu0 0.0
    %5814 = vmatprep.subr.mxu0 0.0
    %5815 = vmatpush1.msra.mxu0 0.0
    %5816 = vmatprep.subr.mxu0 0.0
    %5817 = vmatpush1.msra.mxu0 0.0
    %5818 = vmatprep.subr.mxu0 0.0
    %5819 = vmatpush1.msra.mxu0 0.0
    %5820 = vmatprep.subr.mxu0 0.0
    %5821 = vmatpush1.msra.mxu0 0.0
    %5822 = vmatprep.subr.mxu0 0.0
    %5823 = vmatpush1.msra.mxu0 0.0
    %5824 = vmatprep.subr.mxu0 0.0
    %5825 = vmatpush1.msra.mxu0 0.0
    %5826 = vmatprep.subr.mxu0 0.0
    %5827 = vmatpush1.msra.mxu0 0.0
    %5828 = vmatprep.subr.mxu0 0.0
    %5829 = vmatpush1.msra.mxu0 0.0
    %5830 = vmatprep.subr.mxu0 0.0
    %5831 = vmatpush1.msra.mxu0 0.0
    %5832 = vmatprep.subr.mxu0 0.0
    %5833 = vmatpush1.msra.mxu0 0.0
    %5834 = vmatprep.subr.mxu0 0.0
    %5835 = vmatpush1.msra.mxu0 0.0
    %5836 = vmatprep.subr.mxu0 0.0
    %5837 = vmatpush1.msra.mxu0 0.0
    %5838 = vmatprep.subr.mxu0 0.0
    %5839 = vmatpush1.msra.mxu0 0.0
    %5840 = vmatprep.subr.mxu0 0.0
    %5841 = vmatpush1.msra.mxu0 0.0
    %5842 = vmatprep.subr.mxu0 0.0
    %5843 = vmatpush1.msra.mxu0 0.0
    %5844 = vmatprep.subr.mxu0 0.0
    %5845 = vmatpush1.msra.mxu0 0.0
    %5846 = vmatprep.subr.mxu0 0.0
    %5847 = vmatpush1.msra.mxu0 0.0
    %5848 = vmatprep.subr.mxu0 0.0
    %5849 = vmatpush1.msra.mxu0 0.0
    %5850 = vmatprep.mubr.f32.mxu0 0.0
    %5851 = vmatmul.mubr.f32.gmra.mrb[0].mxu0 %v5642
    %v5852 = vpop.f32.mrb[0].mxu0
    %v5853 = vadd.f32 %v5630, %v5852
    %v5854 = vpop.f32.mrb[0].mxu0
    %v5855 = vadd.f32 %v5634, %v5854
    %5856 = vdwg.mxu0
    %v5863 = vcombine.low %v5711, %v5713
    %v5864 = vcombine.low %v5782, %v5784
    %v5865 = vcombine.low %v5853, %v5855
    %v5867 = vunpack.c.l.s4 1966171168
    %v5868 = vunpack.c.0.s8 %v5867
    %v5869 = vlaneseq
    %v5870 = vshrl.u32 %v5869, 7
    %v5871 = vsub.s32 %v5868, %v5870
    %v5872 = vrot.slane %v5863, %v5871
    %v5874 = vunpack.c.l.s4 1966171168
    %v5875 = vunpack.c.0.s8 %v5874
    %v5876 = vlaneseq
    %v5877 = vshrl.u32 %v5876, 7
    %v5878 = vsub.s32 %v5875, %v5877
    %v5879 = vrot.slane %v5864, %v5878
    %v5881 = vunpack.c.l.s4 1966171168
    %v5882 = vunpack.c.0.s8 %v5881
    %v5883 = vlaneseq
    %v5884 = vshrl.u32 %v5883, 7
    %v5885 = vsub.s32 %v5882, %v5884
    %v5886 = vrot.slane %v5865, %v5885
    %v5887 = vcombine.low %v5872, %v5879
    %v5889 = vunpack.c.l.s4 1966171168
    %v5890 = vunpack.c.0.s8 %v5889
    %v5891 = vlaneseq
    %v5892 = vshrl.u32 %v5891, 7
    %v5893 = vsub.s32 %v5890, %v5892
    %v5894 = vrot.slane %v5887, %v5893
    %v5896 = vunpack.c.l.s4 1966171168
    %v5897 = vunpack.c.0.s8 %v5896
    %v5898 = vlaneseq
    %v5899 = vshrl.u32 %v5898, 7
    %v5900 = vsub.s32 %v5897, %v5899
    %v5901 = vrot.slane %v5886, %v5900
    %v5902 = vcombine.low %v5894, %v5901
    %v5904 = vlaneseq
    %vm5905 = vcmp.ge.s32.totalorder %v5904, 0
    %vm5906 = vcmp.lt.s32.totalorder %v5904, 768
    %vm5907 = vmand %vm5905, %vm5906
    %5908 = vst.msk [vmem:[%s19] sm:$0x3f] %vm5907, %v5902
    // Predicated region
    $region90: #{_lambda_.1} parent=1 // pred_check
      _
    $region91: #{_lambda_.1} parent=1 // pred_check_branch
      %5910 = sbr.rel (0) target = $region93
    $region92: #{_lambda_.1} parent=1 // pred_region
      _
    $region93: #{_lambda_.1} parent=1 // pred_fallthru
      _
    // Predicated region
    $region94: #{_lambda_.1} parent=1 // pred_check
      _
    $region95: #{_lambda_.1} parent=1 // pred_check_branch
      %5912 = sbr.rel (0) target = $region97
    $region96: #{_lambda_.1} parent=1 // pred_region
      _
    $region97: #{_lambda_.1} parent=1 // pred_fallthru
      _
    %5913 = vsyncpa [#allocation3], 1
    %5914 = vsyncpa [#allocation5], 1

</llo_original>
